<compile_context>
chip_gen: v7x
topology: tpu7x:2x2x1
jax: 0.10.0
libtpu: 0.0.40
codegen_flags: <defaults>
</compile_context>

<pallas_src>
import math
import functools

import jax
import jax.numpy as jnp
from jax.experimental import pallas as pl
from jax.experimental.pallas import tpu as pltpu

# ---------------- model dims (small, consistent with the module) ----------------
B = 2            # batch
N = 8            # sequence length
D = 32           # d_model (size)
H = 4            # num heads
DK = D // H      # d_k = 8
DFF = 64         # feed-forward hidden
NUM_REL = 7      # num_relation_kinds
EPS = 1e-5       # nn.LayerNorm default eps
HR = H * NUM_REL          # 28 : per-head relation-vocab lanes
QKVW = 3 * D + HR         # 124: fused q|k|v|qe width
PADW = 128                # lane-padded fused projection width (one lane tile)
VECW = 128                # packed bias/LayerNorm row width


def _layer_norm(x, g, b):
    mu = jnp.mean(x, axis=-1, keepdims=True)
    var = jnp.mean((x - mu) ** 2, axis=-1, keepdims=True)
    return (x - mu) * jax.lax.rsqrt(var + EPS) * g + b


def _split_batch(a2d, batch, seq):
    # (batch*seq, C) -> (batch, seq, C).  seq == 8 keeps each piece on sublane-tile
    # boundaries, so this is layout bookkeeping only.
    return jnp.stack([a2d[b * seq:(b + 1) * seq, :] for b in range(batch)], axis=0)


def _merge_batch(a3d):
    # (batch, seq, C) -> (batch*seq, C)
    return jnp.concatenate([a3d[b] for b in range(a3d.shape[0])], axis=0)


def encoder_layer_kernel(
    x_ref, relmask_ref, wa_ref, wb_ref, vec_ref,
    out_ref,
    *, batch, seq, n_heads, d_k, n_rel, d_ff,
):
    f32 = jnp.float32
    d_model = n_heads * d_k
    hr = n_heads * n_rel
    tok = batch * seq

    x = x_ref[...]                                   # (B*N, D)

    # packed bias / LayerNorm vectors: one (8,128) DMA for all of them
    vp = vec_ref[...]
    b_big = vp[0, :]                                 # fused q|k|v|qe bias (zero-padded)
    ln1_g = vp[1, :d_model]
    ln1_b = vp[2, :d_model]
    bo = vp[3, :d_model]
    ln2_g = vp[4, :d_model]
    ln2_b = vp[5, :d_model]
    b1 = vp[6, :d_ff]
    b2 = vp[7, :d_model]

    # weight slab A: [Wq|Wk|Wv|Wqe|0pad  |  W1]  -- slices land on lane-tile boundaries
    wa = wa_ref[...]                                 # (D, 192)
    w_big = wa[:, :PADW]                             # (D, 128)
    w1 = wa[:, PADW:PADW + d_ff]                     # (D, DFF)

    # weight slab B: [Wo ; Wvrel@Wo ; 0pad ; W2]   -- slices land on sublane boundaries
    wb = wb_ref[...]                                 # (128, D)
    wo_big = wb[:2 * d_model, :]                     # (64, D)
    w2 = wb[2 * d_model:, :]                         # (DFF, D)

    # packed [relation | mask] int32; relation one-hot is built in VMEM, so the
    # (B,N,N,DK) embedding gathers never touch HBM.
    rm = relmask_ref[...]                            # (B*N, 2N)
    rel = rm[:, :seq]                                # (B*N, N)
    msk = rm[:, seq:]                                # (B*N, N)
    oh = (rel[:, :, None] ==
          jax.lax.broadcasted_iota(jnp.int32, (tok, seq, n_rel), 2)).astype(f32)
    # NOTE: torch reference REPLACES masked scores with -1e9; adding -1e9 to an O(1)
    # score is identical after softmax (both underflow to ~0 probability).
    mask_bias = jnp.where(msk == 0, -1e9, 0.0)       # (B*N, N), head-independent

    # -------- sublayer 0: pre-LN + relation-aware multi-head attention --------
    xn = _layer_norm(x, ln1_g, ln1_b)                                       # (B*N, D)
    # single fused projection: q (pre-scaled), k, v and the relation-key projection qe
    big = jnp.dot(xn, w_big, preferred_element_type=f32) + b_big            # (B*N, 128)
    qkv3 = _split_batch(big[:, :3 * d_model], batch, seq)                   # (B, N, 3D)
    qe = big[:, 3 * d_model:3 * d_model + hr]                               # (B*N, H*R)

    # content scores: tiny per-head MXU einsums (single-batch-dim dot_generals only;
    # the MXU is idle at this footprint, so the unroll costs ~nothing).  All VPU/EUP/
    # XLU work below is done ONCE on head-stacked tensors.
    qk_heads = []
    for h in range(n_heads):
        qh = qkv3[:, :, h * d_k:(h + 1) * d_k]                              # (B, N, DK)
        kh = qkv3[:, :, d_model + h * d_k:d_model + (h + 1) * d_k]
        qk_heads.append(_merge_batch(
            jnp.einsum('bnd,bmd->bnm', qh, kh, preferred_element_type=f32)))
    qk = jnp.stack(qk_heads, axis=1)                                        # (B*N, H, N)

    # relation scores for all heads with one token-batched dot_general:
    #   qr[t,h,m] = qe[t,h,:] . onehot(rel[t,m])
    qe_h = jnp.stack([qe[:, h * n_rel:(h + 1) * n_rel] for h in range(n_heads)],
                     axis=1)                                                # (B*N, H, R)
    qr = jnp.einsum('thr,tmr->thm', qe_h, oh, preferred_element_type=f32)   # (B*N, H, N)

    # 1/sqrt(d_k) is already folded into Wq/bq (and hence Wqe/bqe) host-side.
    s = qk + qr + mask_bias[:, None, :]                                     # (B*N, H, N)

    # ONE softmax over the head-stacked scores.  Exact reciprocal (and max-subtract)
    # keeps tight parity with the XLA reference inside the 2e-4 tolerance.
    mmax = jnp.max(s, axis=-1, keepdims=True)
    e = jnp.exp(s - mmax)
    p = e * pl.reciprocal(jnp.sum(e, axis=-1, keepdims=True), approx=False)

    # content values: tiny per-head MXU einsums again (layout slicing only)
    wv_heads = []
    for h in range(n_heads):
        vh = qkv3[:, :, 2 * d_model + h * d_k:2 * d_model + (h + 1) * d_k]
        ph = _split_batch(p[:, h, :], batch, seq)                           # (B, N, N)
        wv_heads.append(jnp.einsum('bnm,bmd->bnd', ph, vh,
                                   preferred_element_type=f32))
    wv2 = _merge_batch(jnp.concatenate(wv_heads, axis=-1))                  # (B*N, D)

    # relation probabilities aggregated over keys, all heads in one dot_general
    pr = jnp.einsum('thm,tmr->thr', p, oh, preferred_element_type=f32)      # (B*N, H, R)
    pr2 = jnp.concatenate([pr[:, h, :] for h in range(n_heads)], axis=-1)   # (B*N, H*R)

    # fused output projection: [wv | pr | 0] @ [Wo ; Wvrel@Wo ; 0] + bo
    pad = 2 * d_model - (d_model + hr)                                      # 4
    lhs = jnp.concatenate([wv2, pr2, jnp.zeros((tok, pad), f32)], axis=-1)  # (B*N, 64)
    attn = jnp.dot(lhs, wo_big, preferred_element_type=f32) + bo            # (B*N, D)
    x1 = x + attn                                   # residual (dropout = identity)

    # -------- sublayer 1: pre-LN + position-wise feed forward --------
    xn2 = _layer_norm(x1, ln2_g, ln2_b)
    h1 = jnp.maximum(jnp.dot(xn2, w1, preferred_element_type=f32) + b1, 0.0)
    ffn = jnp.dot(h1, w2, preferred_element_type=f32) + b2
    out_ref[...] = x1 + ffn


def encoder_layer_pallas(x, relation, mask, params):
    f32 = jnp.float32
    scale = 1.0 / math.sqrt(DK)

    # ---- host-side weight fusion (exact reassociations; weight plumbing only) ----
    wq_s = params["wq"].astype(f32) * scale
    bq_s = params["bq"].astype(f32) * scale
    # block-diagonal per-head relation projections from the (NUM_REL, DK) tables
    wk_rel = jnp.kron(jnp.eye(H, dtype=f32), params["rel_k_emb"].T.astype(f32))  # (D, H*R)
    wv_rel = jnp.kron(jnp.eye(H, dtype=f32), params["rel_v_emb"].astype(f32))    # (H*R, D)
    # fold the relation-key projection into the fused QKV matmul
    wqe = wq_s @ wk_rel                                                     # (D, H*R)
    bqe = bq_s @ wk_rel                                                     # (H*R,)
    w_big = jnp.concatenate([wq_s, params["wk"], params["wv"], wqe], axis=1)   # (D, 124)
    b_big = jnp.concatenate([bq_s, params["bk"], params["bv"], bqe])           # (124,)
    # fold the relation-value path into the output projection
    wvo = wv_rel @ params["wo"]                                             # (H*R, D)
    wo_big = jnp.concatenate(
        [params["wo"], wvo, jnp.zeros((2 * D - D - HR, D), f32)], axis=0)   # (64, D)

    # two aligned weight slabs + one (8,128) vector tile -> 5 input DMAs total
    slab_a = jnp.concatenate(
        [w_big, jnp.zeros((D, PADW - QKVW), f32), params["w1"]], axis=1)    # (D, 192)
    slab_b = jnp.concatenate([wo_big, params["w2"]], axis=0)                # (128, D)

    def row(v):
        v = v.astype(f32)
        return jnp.pad(v, (0, VECW - v.shape[0]))

    vec_pack = jnp.stack([
        row(b_big),
        row(params["ln1_g"]), row(params["ln1_b"]),
        row(params["bo"]),
        row(params["ln2_g"]), row(params["ln2_b"]),
        row(params["b1"]), row(params["b2"]),
    ])                                                                       # (8, 128)

    x2d = x.reshape(B * N, D).astype(f32)
    relmask = jnp.concatenate(
        [relation.reshape(B * N, N).astype(jnp.int32),
         (mask.reshape(B * N, N) != 0).astype(jnp.int32)], axis=1)           # (B*N, 2N)

    kernel = functools.partial(
        encoder_layer_kernel,
        batch=B, seq=N, n_heads=H, d_k=DK, n_rel=NUM_REL, d_ff=DFF)

    def full(shape):
        return pl.BlockSpec(shape, lambda i: (0,) * len(shape))

    out2d = pl.pallas_call(
        kernel,
        out_shape=jax.ShapeDtypeStruct((B * N, D), f32),
        grid_spec=pltpu.PrefetchScalarGridSpec(
            num_scalar_prefetch=0,
            # whole (tiny) problem in one invocation; sharding over a "parallel"
            # token axis only pays once per-TC work exceeds the ~0.35us/step overhead.
            grid=(1,),
            in_specs=[
                full((B * N, D)),           # x (flattened tokens)
                full((B * N, 2 * N)),       # packed [relation | mask] int32
                full((D, PADW + DFF)),      # slab A: [Wq|Wk|Wv|Wqe|pad | W1]
                full((2 * D + DFF, D)),     # slab B: [Wo ; Wvrel@Wo ; pad ; W2]
                full((8, VECW)),            # packed biases / LayerNorm params
            ],
            out_specs=full((B * N, D)),
        ),
        compiler_params=pltpu.CompilerParams(dimension_semantics=("arbitrary",)),
    )(x2d, relmask, slab_a, slab_b, vec_pack)
    # TODO(synk): output kept (B*N, D) row-major; a fully lane-dense (1, B*N*D) store
    # would need an in-kernel lane-major relayout that is not worth it at this footprint.
    return out2d.reshape(B, N, D)


# ---------------- pure-JAX reference (same math) for a sanity check ----------------
def encoder_layer_ref(x, relation, mask, params):
    relk = jnp.take(params["rel_k_emb"], relation, axis=0)   # (B,N,N,DK)
    relv = jnp.take(params["rel_v_emb"], relation, axis=0)

    xn = _layer_norm(x, params["ln1_g"], params["ln1_b"])
    q = xn @ params["wq"] + params["bq"]
    k = xn @ params["wk"] + params["bk"]
    v = xn @ params["wv"] + params["bv"]
    qh = q.reshape(B, N, H, DK).transpose(0, 2, 1, 3)        # (B,H,N,DK)
    kh = k.reshape(B, N, H, DK).transpose(0, 2, 1, 3)
    vh = v.reshape(B, N, H, DK).transpose(0, 2, 1, 3)

    qk = jnp.einsum("bhnd,bhmd->bhnm", qh, kh)
    qr = jnp.einsum("bhnd,bnmd->bhnm", qh, relk)
    scores = (qk + qr) / math.sqrt(DK)
    scores = jnp.where(mask[:, None] == 0, -1e9, scores)
    p = jax.nn.softmax(scores, axis=-1)
    wv = jnp.einsum("bhnm,bhmd->bhnd", p, vh)
    wr = jnp.einsum("bhnm,bnmd->bhnd", p, relv)
    attn = (wv + wr).transpose(0, 2, 1, 3).reshape(B, N, D)
    x1 = x + attn @ params["wo"] + params["bo"]

    xn2 = _layer_norm(x1, params["ln2_g"], params["ln2_b"])
    ffn = jnp.maximum(xn2 @ params["w1"] + params["b1"], 0.0) @ params["w2"] + params["b2"]
    return x1 + ffn


def make_params(key):
    ks = jax.random.split(key, 12)
    s = 0.05
    return {
        "rel_k_emb": s * jax.random.normal(ks[0], (NUM_REL, DK), jnp.float32),
        "rel_v_emb": s * jax.random.normal(ks[1], (NUM_REL, DK), jnp.float32),
        "ln1_g": jnp.ones((D,), jnp.float32),
        "ln1_b": jnp.zeros((D,), jnp.float32),
        "wq": s * jax.random.normal(ks[2], (D, D), jnp.float32),
        "bq": s * jax.random.normal(ks[3], (D,), jnp.float32),
        "wk": s * jax.random.normal(ks[4], (D, D), jnp.float32),
        "bk": s * jax.random.normal(ks[5], (D,), jnp.float32),
        "wv": s * jax.random.normal(ks[6], (D, D), jnp.float32),
        "bv": s * jax.random.normal(ks[7], (D,), jnp.float32),
        "wo": s * jax.random.normal(ks[8], (D, D), jnp.float32),
        "bo": jnp.zeros((D,), jnp.float32),
        "ln2_g": jnp.ones((D,), jnp.float32),
        "ln2_b": jnp.zeros((D,), jnp.float32),
        "w1": s * jax.random.normal(ks[9], (D, DFF), jnp.float32),
        "b1": s * jax.random.normal(ks[10], (DFF,), jnp.float32),
        "w2": s * jax.random.normal(ks[11], (DFF, D), jnp.float32),
        "b2": jnp.zeros((D,), jnp.float32),
    }


if __name__ == "__main__":
    key = jax.random.PRNGKey(0)
    kx, kr, km, kp = jax.random.split(key, 4)

    x = jax.random.normal(kx, (B, N, D), jnp.float32)
    relation = jax.random.randint(kr, (B, N, N), 0, NUM_REL, dtype=jnp.int32)
    # mostly-ones mask (nonzero = attend); keep diagonal unmasked so no row is fully masked
    mask = (jax.random.uniform(km, (B, N, N)) > 0.2).astype(jnp.int32)
    mask = jnp.maximum(mask, jnp.eye(N, dtype=jnp.int32)[None])

    params = make_params(kp)

    out = encoder_layer_pallas(x, relation, mask, params)
    out = jax.block_until_ready(out)

    ref = encoder_layer_ref(x, relation, mask, params)
    assert out.shape == (B, N, D)
    # slightly relaxed vs 1e-4 to allow for MXU reassociation of the fused weights
    # (scale folded into Wq, Wq@Wkrel, Wvrel@Wo, one-hot @ block-diag embeddings).
    assert jnp.allclose(out, ref, atol=2e-4, rtol=2e-4), float(jnp.max(jnp.abs(out - ref)))

    print("KERNEL_OK")
</pallas_src>

<mosaic_0001>
module attributes {stable_mosaic.version = 11 : i64} {
  func.func @encoder_layer_kernel(%arg0: i32, %arg1: memref<16x32xf32, #tpu.memory_space<vmem>>, %arg2: memref<16x16xi32, #tpu.memory_space<vmem>>, %arg3: memref<32x192xf32, #tpu.memory_space<vmem>>, %arg4: memref<128x32xf32, #tpu.memory_space<vmem>>, %arg5: memref<8x128xf32, #tpu.memory_space<vmem>>, %arg6: memref<16x32xf32, #tpu.memory_space<vmem>>) attributes {dimension_semantics = [#tpu.dimension_semantics<arbitrary>], iteration_bounds = array<i64: 1>, scalar_prefetch = 0 : i64, scratch_operands = 0 : i64, tpu.core_type = #tpu.core_type<tc>, window_params = [{pipeline_mode = #tpu.pipeline_mode<synchronous>, transform_indices = @transform_0, window_bounds = array<i64: 16, 32>}, {pipeline_mode = #tpu.pipeline_mode<synchronous>, transform_indices = @transform_1, window_bounds = array<i64: 16, 16>}, {pipeline_mode = #tpu.pipeline_mode<synchronous>, transform_indices = @transform_2, window_bounds = array<i64: 32, 192>}, {pipeline_mode = #tpu.pipeline_mode<synchronous>, transform_indices = @transform_3, window_bounds = array<i64: 128, 32>}, {pipeline_mode = #tpu.pipeline_mode<synchronous>, transform_indices = @transform_4, window_bounds = array<i64: 8, 128>}, {pipeline_mode = #tpu.pipeline_mode<synchronous>, transform_indices = @transform_5, window_bounds = array<i64: 16, 32>}]} {
    %c0 = arith.constant 0 : index
    %c0_0 = arith.constant 0 : index
    %0 = vector.load %arg1[%c0, %c0_0] : memref<16x32xf32, #tpu.memory_space<vmem>>, vector<16x32xf32>
    %c0_1 = arith.constant 0 : index
    %c0_2 = arith.constant 0 : index
    %1 = vector.load %arg5[%c0_1, %c0_2] : memref<8x128xf32, #tpu.memory_space<vmem>>, vector<8x128xf32>
    %2 = vector.extract_strided_slice %1 {offsets = [0, 0], sizes = [1, 128], strides = [1, 1]} : vector<8x128xf32> to vector<1x128xf32>
    %3 = vector.shape_cast %2 : vector<1x128xf32> to vector<128xf32>
    %4 = vector.extract_strided_slice %1 {offsets = [1, 0], sizes = [1, 32], strides = [1, 1]} : vector<8x128xf32> to vector<1x32xf32>
    %5 = vector.shape_cast %4 : vector<1x32xf32> to vector<32xf32>
    %6 = vector.extract_strided_slice %1 {offsets = [2, 0], sizes = [1, 32], strides = [1, 1]} : vector<8x128xf32> to vector<1x32xf32>
    %7 = vector.shape_cast %6 : vector<1x32xf32> to vector<32xf32>
    %8 = vector.extract_strided_slice %1 {offsets = [3, 0], sizes = [1, 32], strides = [1, 1]} : vector<8x128xf32> to vector<1x32xf32>
    %9 = vector.shape_cast %8 : vector<1x32xf32> to vector<32xf32>
    %10 = vector.extract_strided_slice %1 {offsets = [4, 0], sizes = [1, 32], strides = [1, 1]} : vector<8x128xf32> to vector<1x32xf32>
    %11 = vector.shape_cast %10 : vector<1x32xf32> to vector<32xf32>
    %12 = vector.extract_strided_slice %1 {offsets = [5, 0], sizes = [1, 32], strides = [1, 1]} : vector<8x128xf32> to vector<1x32xf32>
    %13 = vector.shape_cast %12 : vector<1x32xf32> to vector<32xf32>
    %14 = vector.extract_strided_slice %1 {offsets = [6, 0], sizes = [1, 64], strides = [1, 1]} : vector<8x128xf32> to vector<1x64xf32>
    %15 = vector.shape_cast %14 : vector<1x64xf32> to vector<64xf32>
    %16 = vector.extract_strided_slice %1 {offsets = [7, 0], sizes = [1, 32], strides = [1, 1]} : vector<8x128xf32> to vector<1x32xf32>
    %17 = vector.shape_cast %16 : vector<1x32xf32> to vector<32xf32>
    %c0_3 = arith.constant 0 : index
    %c0_4 = arith.constant 0 : index
    %18 = vector.load %arg3[%c0_3, %c0_4] : memref<32x192xf32, #tpu.memory_space<vmem>>, vector<32x192xf32>
    %19 = vector.extract_strided_slice %18 {offsets = [0, 0], sizes = [32, 128], strides = [1, 1]} : vector<32x192xf32> to vector<32x128xf32>
    %20 = vector.extract_strided_slice %18 {offsets = [0, 128], sizes = [32, 64], strides = [1, 1]} : vector<32x192xf32> to vector<32x64xf32>
    %c0_5 = arith.constant 0 : index
    %c0_6 = arith.constant 0 : index
    %21 = vector.load %arg4[%c0_5, %c0_6] : memref<128x32xf32, #tpu.memory_space<vmem>>, vector<128x32xf32>
    %22 = vector.extract_strided_slice %21 {offsets = [0, 0], sizes = [64, 32], strides = [1, 1]} : vector<128x32xf32> to vector<64x32xf32>
    %23 = vector.extract_strided_slice %21 {offsets = [64, 0], sizes = [64, 32], strides = [1, 1]} : vector<128x32xf32> to vector<64x32xf32>
    %c0_7 = arith.constant 0 : index
    %c0_8 = arith.constant 0 : index
    %24 = vector.load %arg2[%c0_7, %c0_8] : memref<16x16xi32, #tpu.memory_space<vmem>>, vector<16x16xi32>
    %25 = vector.extract_strided_slice %24 {offsets = [0, 0], sizes = [16, 8], strides = [1, 1]} : vector<16x16xi32> to vector<16x8xi32>
    %26 = vector.extract_strided_slice %24 {offsets = [0, 8], sizes = [16, 8], strides = [1, 1]} : vector<16x16xi32> to vector<16x8xi32>
    %27 = vector.shape_cast %25 : vector<16x8xi32> to vector<16x8x1xi32>
    %28 = tpu.iota {dimensions = array<i32: 2>} : vector<16x8x7xi32>
    %29 = vector.broadcast %27 : vector<16x8x1xi32> to vector<16x8x7xi32>
    %30 = arith.cmpi eq, %29, %28 : vector<16x8x7xi32>
    %31 = arith.extui %30 : vector<16x8x7xi1> to vector<16x8x7xi32>
    %32 = arith.sitofp %31 : vector<16x8x7xi32> to vector<16x8x7xf32>
    %c0_i32 = arith.constant 0 : i32
    %33 = vector.broadcast %c0_i32 : i32 to vector<16x8xi32>
    %34 = arith.cmpi eq, %26, %33 : vector<16x8xi32>
    %cst = arith.constant -1.000000e+09 : f32
    %cst_9 = arith.constant 0.000000e+00 : f32
    %35 = vector.broadcast %cst : f32 to vector<16x8xf32>
    %36 = vector.broadcast %cst_9 : f32 to vector<16x8xf32>
    %37 = arith.select %34, %35, %36 : vector<16x8xi1>, vector<16x8xf32>
    %cst_10 = arith.constant dense<0.000000e+00> : vector<16xf32>
    %38 = vector.multi_reduction <add>, %0, %cst_10 [1] : vector<16x32xf32> to vector<16xf32>
    %39 = vector.shape_cast %38 : vector<16xf32> to vector<16x1xf32>
    %cst_11 = arith.constant 3.200000e+01 : f32
    %40 = vector.broadcast %cst_11 : f32 to vector<16x1xf32>
    %41 = arith.divf %39, %40 : vector<16x1xf32>
    %42 = vector.broadcast %41 : vector<16x1xf32> to vector<16x32xf32>
    %43 = arith.subf %0, %42 : vector<16x32xf32>
    %44 = arith.mulf %43, %43 : vector<16x32xf32>
    %cst_12 = arith.constant dense<0.000000e+00> : vector<16xf32>
    %45 = vector.multi_reduction <add>, %44, %cst_12 [1] : vector<16x32xf32> to vector<16xf32>
    %46 = vector.shape_cast %45 : vector<16xf32> to vector<16x1xf32>
    %cst_13 = arith.constant 3.200000e+01 : f32
    %47 = vector.broadcast %cst_13 : f32 to vector<16x1xf32>
    %48 = arith.divf %46, %47 : vector<16x1xf32>
    %49 = vector.broadcast %41 : vector<16x1xf32> to vector<16x32xf32>
    %50 = arith.subf %0, %49 : vector<16x32xf32>
    %cst_14 = arith.constant 9.99999974E-6 : f32
    %51 = vector.broadcast %cst_14 : f32 to vector<16x1xf32>
    %52 = arith.addf %48, %51 : vector<16x1xf32>
    %53 = math.rsqrt %52 : vector<16x1xf32>
    %54 = vector.broadcast %53 : vector<16x1xf32> to vector<16x32xf32>
    %55 = arith.mulf %50, %54 : vector<16x32xf32>
    %56 = vector.shape_cast %5 : vector<32xf32> to vector<1x32xf32>
    %57 = vector.broadcast %56 : vector<1x32xf32> to vector<16x32xf32>
    %58 = arith.mulf %55, %57 : vector<16x32xf32>
    %59 = vector.shape_cast %7 : vector<32xf32> to vector<1x32xf32>
    %60 = vector.broadcast %59 : vector<1x32xf32> to vector<16x32xf32>
    %61 = arith.addf %58, %60 : vector<16x32xf32>
    %cst_15 = arith.constant dense<0.000000e+00> : vector<16x128xf32>
    %62 = tpu.matmul %61, %19, %cst_15 {dimension_numbers = #tpu.dot_dimension_numbers<[1], [0], [0], [1], [0, 0, 1, 1], [], []>} : vector<16x32xf32>, vector<32x128xf32>, vector<16x128xf32> -> vector<16x128xf32>
    %63 = vector.shape_cast %3 : vector<128xf32> to vector<1x128xf32>
    %64 = vector.broadcast %63 : vector<1x128xf32> to vector<16x128xf32>
    %65 = arith.addf %62, %64 : vector<16x128xf32>
    %66 = vector.extract_strided_slice %65 {offsets = [0, 0], sizes = [16, 96], strides = [1, 1]} : vector<16x128xf32> to vector<16x96xf32>
    %67 = vector.extract_strided_slice %66 {offsets = [0, 0], sizes = [8, 96], strides = [1, 1]} : vector<16x96xf32> to vector<8x96xf32>
    %68 = vector.extract_strided_slice %66 {offsets = [8, 0], sizes = [8, 96], strides = [1, 1]} : vector<16x96xf32> to vector<8x96xf32>
    %69 = vector.shape_cast %67 : vector<8x96xf32> to vector<1x8x96xf32>
    %70 = vector.shape_cast %68 : vector<8x96xf32> to vector<1x8x96xf32>
    %71 = tpu.concatenate %69, %70 in 0 : vector<1x8x96xf32>, vector<1x8x96xf32> -> vector<2x8x96xf32>
    %72 = vector.extract_strided_slice %65 {offsets = [0, 96], sizes = [16, 28], strides = [1, 1]} : vector<16x128xf32> to vector<16x28xf32>
    %73 = vector.extract_strided_slice %71 {offsets = [0, 0, 0], sizes = [2, 8, 8], strides = [1, 1, 1]} : vector<2x8x96xf32> to vector<2x8x8xf32>
    %74 = vector.extract_strided_slice %71 {offsets = [0, 0, 32], sizes = [2, 8, 8], strides = [1, 1, 1]} : vector<2x8x96xf32> to vector<2x8x8xf32>
    "tpu.trace_start"() <{level = 10 : i32, message = "bnd,bmd->bnm"}> : () -> ()
    %cst_16 = arith.constant dense<0.000000e+00> : vector<2x8x8xf32>
    %75 = tpu.matmul %73, %74, %cst_16 {dimension_numbers = #tpu.dot_dimension_numbers<[2], [2], [1], [1], [0, 0, 0, 1, 1, 1], [0], [0]>} : vector<2x8x8xf32>, vector<2x8x8xf32>, vector<2x8x8xf32> -> vector<2x8x8xf32>
    "tpu.trace_stop"() : () -> ()
    %76 = vector.extract_strided_slice %75 {offsets = [0, 0, 0], sizes = [1, 8, 8], strides = [1, 1, 1]} : vector<2x8x8xf32> to vector<1x8x8xf32>
    %77 = vector.shape_cast %76 : vector<1x8x8xf32> to vector<8x8xf32>
    %78 = vector.extract_strided_slice %75 {offsets = [1, 0, 0], sizes = [1, 8, 8], strides = [1, 1, 1]} : vector<2x8x8xf32> to vector<1x8x8xf32>
    %79 = vector.shape_cast %78 : vector<1x8x8xf32> to vector<8x8xf32>
    %80 = tpu.concatenate %77, %79 in 0 : vector<8x8xf32>, vector<8x8xf32> -> vector<16x8xf32>
    %81 = vector.extract_strided_slice %71 {offsets = [0, 0, 8], sizes = [2, 8, 8], strides = [1, 1, 1]} : vector<2x8x96xf32> to vector<2x8x8xf32>
    %82 = vector.extract_strided_slice %71 {offsets = [0, 0, 40], sizes = [2, 8, 8], strides = [1, 1, 1]} : vector<2x8x96xf32> to vector<2x8x8xf32>
    "tpu.trace_start"() <{level = 10 : i32, message = "bnd,bmd->bnm"}> : () -> ()
    %cst_17 = arith.constant dense<0.000000e+00> : vector<2x8x8xf32>
    %83 = tpu.matmul %81, %82, %cst_17 {dimension_numbers = #tpu.dot_dimension_numbers<[2], [2], [1], [1], [0, 0, 0, 1, 1, 1], [0], [0]>} : vector<2x8x8xf32>, vector<2x8x8xf32>, vector<2x8x8xf32> -> vector<2x8x8xf32>
    "tpu.trace_stop"() : () -> ()
    %84 = vector.extract_strided_slice %83 {offsets = [0, 0, 0], sizes = [1, 8, 8], strides = [1, 1, 1]} : vector<2x8x8xf32> to vector<1x8x8xf32>
    %85 = vector.shape_cast %84 : vector<1x8x8xf32> to vector<8x8xf32>
    %86 = vector.extract_strided_slice %83 {offsets = [1, 0, 0], sizes = [1, 8, 8], strides = [1, 1, 1]} : vector<2x8x8xf32> to vector<1x8x8xf32>
    %87 = vector.shape_cast %86 : vector<1x8x8xf32> to vector<8x8xf32>
    %88 = tpu.concatenate %85, %87 in 0 : vector<8x8xf32>, vector<8x8xf32> -> vector<16x8xf32>
    %89 = vector.extract_strided_slice %71 {offsets = [0, 0, 16], sizes = [2, 8, 8], strides = [1, 1, 1]} : vector<2x8x96xf32> to vector<2x8x8xf32>
    %90 = vector.extract_strided_slice %71 {offsets = [0, 0, 48], sizes = [2, 8, 8], strides = [1, 1, 1]} : vector<2x8x96xf32> to vector<2x8x8xf32>
    "tpu.trace_start"() <{level = 10 : i32, message = "bnd,bmd->bnm"}> : () -> ()
    %cst_18 = arith.constant dense<0.000000e+00> : vector<2x8x8xf32>
    %91 = tpu.matmul %89, %90, %cst_18 {dimension_numbers = #tpu.dot_dimension_numbers<[2], [2], [1], [1], [0, 0, 0, 1, 1, 1], [0], [0]>} : vector<2x8x8xf32>, vector<2x8x8xf32>, vector<2x8x8xf32> -> vector<2x8x8xf32>
    "tpu.trace_stop"() : () -> ()
    %92 = vector.extract_strided_slice %91 {offsets = [0, 0, 0], sizes = [1, 8, 8], strides = [1, 1, 1]} : vector<2x8x8xf32> to vector<1x8x8xf32>
    %93 = vector.shape_cast %92 : vector<1x8x8xf32> to vector<8x8xf32>
    %94 = vector.extract_strided_slice %91 {offsets = [1, 0, 0], sizes = [1, 8, 8], strides = [1, 1, 1]} : vector<2x8x8xf32> to vector<1x8x8xf32>
    %95 = vector.shape_cast %94 : vector<1x8x8xf32> to vector<8x8xf32>
    %96 = tpu.concatenate %93, %95 in 0 : vector<8x8xf32>, vector<8x8xf32> -> vector<16x8xf32>
    %97 = vector.extract_strided_slice %71 {offsets = [0, 0, 24], sizes = [2, 8, 8], strides = [1, 1, 1]} : vector<2x8x96xf32> to vector<2x8x8xf32>
    %98 = vector.extract_strided_slice %71 {offsets = [0, 0, 56], sizes = [2, 8, 8], strides = [1, 1, 1]} : vector<2x8x96xf32> to vector<2x8x8xf32>
    "tpu.trace_start"() <{level = 10 : i32, message = "bnd,bmd->bnm"}> : () -> ()
    %cst_19 = arith.constant dense<0.000000e+00> : vector<2x8x8xf32>
    %99 = tpu.matmul %97, %98, %cst_19 {dimension_numbers = #tpu.dot_dimension_numbers<[2], [2], [1], [1], [0, 0, 0, 1, 1, 1], [0], [0]>} : vector<2x8x8xf32>, vector<2x8x8xf32>, vector<2x8x8xf32> -> vector<2x8x8xf32>
    "tpu.trace_stop"() : () -> ()
    %100 = vector.extract_strided_slice %99 {offsets = [0, 0, 0], sizes = [1, 8, 8], strides = [1, 1, 1]} : vector<2x8x8xf32> to vector<1x8x8xf32>
    %101 = vector.shape_cast %100 : vector<1x8x8xf32> to vector<8x8xf32>
    %102 = vector.extract_strided_slice %99 {offsets = [1, 0, 0], sizes = [1, 8, 8], strides = [1, 1, 1]} : vector<2x8x8xf32> to vector<1x8x8xf32>
    %103 = vector.shape_cast %102 : vector<1x8x8xf32> to vector<8x8xf32>
    %104 = tpu.concatenate %101, %103 in 0 : vector<8x8xf32>, vector<8x8xf32> -> vector<16x8xf32>
    %105 = vector.shape_cast %80 : vector<16x8xf32> to vector<16x1x8xf32>
    %106 = vector.shape_cast %88 : vector<16x8xf32> to vector<16x1x8xf32>
    %107 = vector.shape_cast %96 : vector<16x8xf32> to vector<16x1x8xf32>
    %108 = vector.shape_cast %104 : vector<16x8xf32> to vector<16x1x8xf32>
    %109 = tpu.concatenate %105, %106, %107, %108 in 1 : vector<16x1x8xf32>, vector<16x1x8xf32>, vector<16x1x8xf32>, vector<16x1x8xf32> -> vector<16x4x8xf32>
    %110 = vector.extract_strided_slice %72 {offsets = [0, 0], sizes = [16, 7], strides = [1, 1]} : vector<16x28xf32> to vector<16x7xf32>
    %111 = vector.extract_strided_slice %72 {offsets = [0, 7], sizes = [16, 7], strides = [1, 1]} : vector<16x28xf32> to vector<16x7xf32>
    %112 = vector.extract_strided_slice %72 {offsets = [0, 14], sizes = [16, 7], strides = [1, 1]} : vector<16x28xf32> to vector<16x7xf32>
    %113 = vector.extract_strided_slice %72 {offsets = [0, 21], sizes = [16, 7], strides = [1, 1]} : vector<16x28xf32> to vector<16x7xf32>
    %114 = vector.shape_cast %110 : vector<16x7xf32> to vector<16x1x7xf32>
    %115 = vector.shape_cast %111 : vector<16x7xf32> to vector<16x1x7xf32>
    %116 = vector.shape_cast %112 : vector<16x7xf32> to vector<16x1x7xf32>
    %117 = vector.shape_cast %113 : vector<16x7xf32> to vector<16x1x7xf32>
    %118 = tpu.concatenate %114, %115, %116, %117 in 1 : vector<16x1x7xf32>, vector<16x1x7xf32>, vector<16x1x7xf32>, vector<16x1x7xf32> -> vector<16x4x7xf32>
    "tpu.trace_start"() <{level = 10 : i32, message = "thr,tmr->thm"}> : () -> ()
    %cst_20 = arith.constant dense<0.000000e+00> : vector<16x4x8xf32>
    %119 = tpu.matmul %118, %32, %cst_20 {dimension_numbers = #tpu.dot_dimension_numbers<[2], [2], [1], [1], [0, 0, 0, 1, 1, 1], [0], [0]>} : vector<16x4x7xf32>, vector<16x8x7xf32>, vector<16x4x8xf32> -> vector<16x4x8xf32>
    "tpu.trace_stop"() : () -> ()
    %120 = arith.addf %109, %119 : vector<16x4x8xf32>
    %121 = vector.shape_cast %37 : vector<16x8xf32> to vector<16x1x8xf32>
    %122 = vector.broadcast %121 : vector<16x1x8xf32> to vector<16x4x8xf32>
    %123 = arith.addf %120, %122 : vector<16x4x8xf32>
    %cst_21 = arith.constant dense<0xFF800000> : vector<16x4xf32>
    %124 = vector.multi_reduction <maximumf>, %123, %cst_21 [2] : vector<16x4x8xf32> to vector<16x4xf32>
    %125 = vector.shape_cast %124 : vector<16x4xf32> to vector<16x4x1xf32>
    %126 = vector.broadcast %125 : vector<16x4x1xf32> to vector<16x4x8xf32>
    %127 = arith.subf %123, %126 : vector<16x4x8xf32>
    %128 = math.exp %127 : vector<16x4x8xf32>
    %cst_22 = arith.constant dense<0.000000e+00> : vector<16x4xf32>
    %129 = vector.multi_reduction <add>, %128, %cst_22 [2] : vector<16x4x8xf32> to vector<16x4xf32>
    %130 = vector.shape_cast %129 : vector<16x4xf32> to vector<16x4x1xf32>
    %131 = tpu.reciprocal %130 : vector<16x4x1xf32> -> vector<16x4x1xf32>
    %132 = vector.broadcast %131 : vector<16x4x1xf32> to vector<16x4x8xf32>
    %133 = arith.mulf %128, %132 : vector<16x4x8xf32>
    %134 = vector.extract_strided_slice %71 {offsets = [0, 0, 64], sizes = [2, 8, 8], strides = [1, 1, 1]} : vector<2x8x96xf32> to vector<2x8x8xf32>
    %135 = vector.extract_strided_slice %133 {offsets = [0, 0, 0], sizes = [16, 1, 8], strides = [1, 1, 1]} : vector<16x4x8xf32> to vector<16x1x8xf32>
    %136 = vector.shape_cast %135 : vector<16x1x8xf32> to vector<16x8xf32>
    %137 = vector.extract_strided_slice %136 {offsets = [0, 0], sizes = [8, 8], strides = [1, 1]} : vector<16x8xf32> to vector<8x8xf32>
    %138 = vector.extract_strided_slice %136 {offsets = [8, 0], sizes = [8, 8], strides = [1, 1]} : vector<16x8xf32> to vector<8x8xf32>
    %139 = vector.shape_cast %137 : vector<8x8xf32> to vector<1x8x8xf32>
    %140 = vector.shape_cast %138 : vector<8x8xf32> to vector<1x8x8xf32>
    %141 = tpu.concatenate %139, %140 in 0 : vector<1x8x8xf32>, vector<1x8x8xf32> -> vector<2x8x8xf32>
    "tpu.trace_start"() <{level = 10 : i32, message = "bnm,bmd->bnd"}> : () -> ()
    %cst_23 = arith.constant dense<0.000000e+00> : vector<2x8x8xf32>
    %142 = tpu.matmul %141, %134, %cst_23 {dimension_numbers = #tpu.dot_dimension_numbers<[2], [1], [1], [2], [0, 0, 0, 1, 1, 2], [0], [0]>} : vector<2x8x8xf32>, vector<2x8x8xf32>, vector<2x8x8xf32> -> vector<2x8x8xf32>
    "tpu.trace_stop"() : () -> ()
    %143 = vector.extract_strided_slice %71 {offsets = [0, 0, 72], sizes = [2, 8, 8], strides = [1, 1, 1]} : vector<2x8x96xf32> to vector<2x8x8xf32>
    %144 = vector.extract_strided_slice %133 {offsets = [0, 1, 0], sizes = [16, 1, 8], strides = [1, 1, 1]} : vector<16x4x8xf32> to vector<16x1x8xf32>
    %145 = vector.shape_cast %144 : vector<16x1x8xf32> to vector<16x8xf32>
    %146 = vector.extract_strided_slice %145 {offsets = [0, 0], sizes = [8, 8], strides = [1, 1]} : vector<16x8xf32> to vector<8x8xf32>
    %147 = vector.extract_strided_slice %145 {offsets = [8, 0], sizes = [8, 8], strides = [1, 1]} : vector<16x8xf32> to vector<8x8xf32>
    %148 = vector.shape_cast %146 : vector<8x8xf32> to vector<1x8x8xf32>
    %149 = vector.shape_cast %147 : vector<8x8xf32> to vector<1x8x8xf32>
    %150 = tpu.concatenate %148, %149 in 0 : vector<1x8x8xf32>, vector<1x8x8xf32> -> vector<2x8x8xf32>
    "tpu.trace_start"() <{level = 10 : i32, message = "bnm,bmd->bnd"}> : () -> ()
    %cst_24 = arith.constant dense<0.000000e+00> : vector<2x8x8xf32>
    %151 = tpu.matmul %150, %143, %cst_24 {dimension_numbers = #tpu.dot_dimension_numbers<[2], [1], [1], [2], [0, 0, 0, 1, 1, 2], [0], [0]>} : vector<2x8x8xf32>, vector<2x8x8xf32>, vector<2x8x8xf32> -> vector<2x8x8xf32>
    "tpu.trace_stop"() : () -> ()
    %152 = vector.extract_strided_slice %71 {offsets = [0, 0, 80], sizes = [2, 8, 8], strides = [1, 1, 1]} : vector<2x8x96xf32> to vector<2x8x8xf32>
    %153 = vector.extract_strided_slice %133 {offsets = [0, 2, 0], sizes = [16, 1, 8], strides = [1, 1, 1]} : vector<16x4x8xf32> to vector<16x1x8xf32>
    %154 = vector.shape_cast %153 : vector<16x1x8xf32> to vector<16x8xf32>
    %155 = vector.extract_strided_slice %154 {offsets = [0, 0], sizes = [8, 8], strides = [1, 1]} : vector<16x8xf32> to vector<8x8xf32>
    %156 = vector.extract_strided_slice %154 {offsets = [8, 0], sizes = [8, 8], strides = [1, 1]} : vector<16x8xf32> to vector<8x8xf32>
    %157 = vector.shape_cast %155 : vector<8x8xf32> to vector<1x8x8xf32>
    %158 = vector.shape_cast %156 : vector<8x8xf32> to vector<1x8x8xf32>
    %159 = tpu.concatenate %157, %158 in 0 : vector<1x8x8xf32>, vector<1x8x8xf32> -> vector<2x8x8xf32>
    "tpu.trace_start"() <{level = 10 : i32, message = "bnm,bmd->bnd"}> : () -> ()
    %cst_25 = arith.constant dense<0.000000e+00> : vector<2x8x8xf32>
    %160 = tpu.matmul %159, %152, %cst_25 {dimension_numbers = #tpu.dot_dimension_numbers<[2], [1], [1], [2], [0, 0, 0, 1, 1, 2], [0], [0]>} : vector<2x8x8xf32>, vector<2x8x8xf32>, vector<2x8x8xf32> -> vector<2x8x8xf32>
    "tpu.trace_stop"() : () -> ()
    %161 = vector.extract_strided_slice %71 {offsets = [0, 0, 88], sizes = [2, 8, 8], strides = [1, 1, 1]} : vector<2x8x96xf32> to vector<2x8x8xf32>
    %162 = vector.extract_strided_slice %133 {offsets = [0, 3, 0], sizes = [16, 1, 8], strides = [1, 1, 1]} : vector<16x4x8xf32> to vector<16x1x8xf32>
    %163 = vector.shape_cast %162 : vector<16x1x8xf32> to vector<16x8xf32>
    %164 = vector.extract_strided_slice %163 {offsets = [0, 0], sizes = [8, 8], strides = [1, 1]} : vector<16x8xf32> to vector<8x8xf32>
    %165 = vector.extract_strided_slice %163 {offsets = [8, 0], sizes = [8, 8], strides = [1, 1]} : vector<16x8xf32> to vector<8x8xf32>
    %166 = vector.shape_cast %164 : vector<8x8xf32> to vector<1x8x8xf32>
    %167 = vector.shape_cast %165 : vector<8x8xf32> to vector<1x8x8xf32>
    %168 = tpu.concatenate %166, %167 in 0 : vector<1x8x8xf32>, vector<1x8x8xf32> -> vector<2x8x8xf32>
    "tpu.trace_start"() <{level = 10 : i32, message = "bnm,bmd->bnd"}> : () -> ()
    %cst_26 = arith.constant dense<0.000000e+00> : vector<2x8x8xf32>
    %169 = tpu.matmul %168, %161, %cst_26 {dimension_numbers = #tpu.dot_dimension_numbers<[2], [1], [1], [2], [0, 0, 0, 1, 1, 2], [0], [0]>} : vector<2x8x8xf32>, vector<2x8x8xf32>, vector<2x8x8xf32> -> vector<2x8x8xf32>
    "tpu.trace_stop"() : () -> ()
    %170 = tpu.concatenate %142, %151, %160, %169 in 2 : vector<2x8x8xf32>, vector<2x8x8xf32>, vector<2x8x8xf32>, vector<2x8x8xf32> -> vector<2x8x32xf32>
    %171 = vector.extract_strided_slice %170 {offsets = [0, 0, 0], sizes = [1, 8, 32], strides = [1, 1, 1]} : vector<2x8x32xf32> to vector<1x8x32xf32>
    %172 = vector.shape_cast %171 : vector<1x8x32xf32> to vector<8x32xf32>
    %173 = vector.extract_strided_slice %170 {offsets = [1, 0, 0], sizes = [1, 8, 32], strides = [1, 1, 1]} : vector<2x8x32xf32> to vector<1x8x32xf32>
    %174 = vector.shape_cast %173 : vector<1x8x32xf32> to vector<8x32xf32>
    %175 = tpu.concatenate %172, %174 in 0 : vector<8x32xf32>, vector<8x32xf32> -> vector<16x32xf32>
    "tpu.trace_start"() <{level = 10 : i32, message = "thm,tmr->thr"}> : () -> ()
    %cst_27 = arith.constant dense<0.000000e+00> : vector<16x4x7xf32>
    %176 = tpu.matmul %133, %32, %cst_27 {dimension_numbers = #tpu.dot_dimension_numbers<[2], [1], [1], [2], [0, 0, 0, 1, 1, 2], [0], [0]>} : vector<16x4x8xf32>, vector<16x8x7xf32>, vector<16x4x7xf32> -> vector<16x4x7xf32>
    "tpu.trace_stop"() : () -> ()
    %177 = vector.extract_strided_slice %176 {offsets = [0, 0, 0], sizes = [16, 1, 7], strides = [1, 1, 1]} : vector<16x4x7xf32> to vector<16x1x7xf32>
    %178 = vector.shape_cast %177 : vector<16x1x7xf32> to vector<16x7xf32>
    %179 = vector.extract_strided_slice %176 {offsets = [0, 1, 0], sizes = [16, 1, 7], strides = [1, 1, 1]} : vector<16x4x7xf32> to vector<16x1x7xf32>
    %180 = vector.shape_cast %179 : vector<16x1x7xf32> to vector<16x7xf32>
    %181 = vector.extract_strided_slice %176 {offsets = [0, 2, 0], sizes = [16, 1, 7], strides = [1, 1, 1]} : vector<16x4x7xf32> to vector<16x1x7xf32>
    %182 = vector.shape_cast %181 : vector<16x1x7xf32> to vector<16x7xf32>
    %183 = vector.extract_strided_slice %176 {offsets = [0, 3, 0], sizes = [16, 1, 7], strides = [1, 1, 1]} : vector<16x4x7xf32> to vector<16x1x7xf32>
    %184 = vector.shape_cast %183 : vector<16x1x7xf32> to vector<16x7xf32>
    %185 = tpu.concatenate %178, %180, %182, %184 in 1 : vector<16x7xf32>, vector<16x7xf32>, vector<16x7xf32>, vector<16x7xf32> -> vector<16x28xf32>
    %cst_28 = arith.constant 0.000000e+00 : f32
    %186 = vector.broadcast %cst_28 : f32 to vector<16x4xf32>
    %187 = tpu.concatenate %175, %185, %186 in 1 : vector<16x32xf32>, vector<16x28xf32>, vector<16x4xf32> -> vector<16x64xf32>
    %cst_29 = arith.constant dense<0.000000e+00> : vector<16x32xf32>
    %188 = tpu.matmul %187, %22, %cst_29 {dimension_numbers = #tpu.dot_dimension_numbers<[1], [0], [0], [1], [0, 0, 1, 1], [], []>} : vector<16x64xf32>, vector<64x32xf32>, vector<16x32xf32> -> vector<16x32xf32>
    %189 = vector.shape_cast %9 : vector<32xf32> to vector<1x32xf32>
    %190 = vector.broadcast %189 : vector<1x32xf32> to vector<16x32xf32>
    %191 = arith.addf %188, %190 : vector<16x32xf32>
    %192 = arith.addf %0, %191 : vector<16x32xf32>
    %cst_30 = arith.constant dense<0.000000e+00> : vector<16xf32>
    %193 = vector.multi_reduction <add>, %192, %cst_30 [1] : vector<16x32xf32> to vector<16xf32>
    %194 = vector.shape_cast %193 : vector<16xf32> to vector<16x1xf32>
    %cst_31 = arith.constant 3.200000e+01 : f32
    %195 = vector.broadcast %cst_31 : f32 to vector<16x1xf32>
    %196 = arith.divf %194, %195 : vector<16x1xf32>
    %197 = vector.broadcast %196 : vector<16x1xf32> to vector<16x32xf32>
    %198 = arith.subf %192, %197 : vector<16x32xf32>
    %199 = arith.mulf %198, %198 : vector<16x32xf32>
    %cst_32 = arith.constant dense<0.000000e+00> : vector<16xf32>
    %200 = vector.multi_reduction <add>, %199, %cst_32 [1] : vector<16x32xf32> to vector<16xf32>
    %201 = vector.shape_cast %200 : vector<16xf32> to vector<16x1xf32>
    %cst_33 = arith.constant 3.200000e+01 : f32
    %202 = vector.broadcast %cst_33 : f32 to vector<16x1xf32>
    %203 = arith.divf %201, %202 : vector<16x1xf32>
    %204 = vector.broadcast %196 : vector<16x1xf32> to vector<16x32xf32>
    %205 = arith.subf %192, %204 : vector<16x32xf32>
    %cst_34 = arith.constant 9.99999974E-6 : f32
    %206 = vector.broadcast %cst_34 : f32 to vector<16x1xf32>
    %207 = arith.addf %203, %206 : vector<16x1xf32>
    %208 = math.rsqrt %207 : vector<16x1xf32>
    %209 = vector.broadcast %208 : vector<16x1xf32> to vector<16x32xf32>
    %210 = arith.mulf %205, %209 : vector<16x32xf32>
    %211 = vector.shape_cast %11 : vector<32xf32> to vector<1x32xf32>
    %212 = vector.broadcast %211 : vector<1x32xf32> to vector<16x32xf32>
    %213 = arith.mulf %210, %212 : vector<16x32xf32>
    %214 = vector.shape_cast %13 : vector<32xf32> to vector<1x32xf32>
    %215 = vector.broadcast %214 : vector<1x32xf32> to vector<16x32xf32>
    %216 = arith.addf %213, %215 : vector<16x32xf32>
    %cst_35 = arith.constant dense<0.000000e+00> : vector<16x64xf32>
    %217 = tpu.matmul %216, %20, %cst_35 {dimension_numbers = #tpu.dot_dimension_numbers<[1], [0], [0], [1], [0, 0, 1, 1], [], []>} : vector<16x32xf32>, vector<32x64xf32>, vector<16x64xf32> -> vector<16x64xf32>
    %218 = vector.shape_cast %15 : vector<64xf32> to vector<1x64xf32>
    %219 = vector.broadcast %218 : vector<1x64xf32> to vector<16x64xf32>
    %220 = arith.addf %217, %219 : vector<16x64xf32>
    %cst_36 = arith.constant 0.000000e+00 : f32
    %221 = vector.broadcast %cst_36 : f32 to vector<16x64xf32>
    %222 = arith.maximumf %220, %221 : vector<16x64xf32>
    %cst_37 = arith.constant dense<0.000000e+00> : vector<16x32xf32>
    %223 = tpu.matmul %222, %23, %cst_37 {dimension_numbers = #tpu.dot_dimension_numbers<[1], [0], [0], [1], [0, 0, 1, 1], [], []>} : vector<16x64xf32>, vector<64x32xf32>, vector<16x32xf32> -> vector<16x32xf32>
    %224 = vector.shape_cast %17 : vector<32xf32> to vector<1x32xf32>
    %225 = vector.broadcast %224 : vector<1x32xf32> to vector<16x32xf32>
    %226 = arith.addf %223, %225 : vector<16x32xf32>
    %227 = arith.addf %192, %226 : vector<16x32xf32>
    %c0_38 = arith.constant 0 : index
    %c0_39 = arith.constant 0 : index
    %228 = vector.load %arg6[%c0_38, %c0_39] : memref<16x32xf32, #tpu.memory_space<vmem>>, vector<16x32xf32>
    tpu.vector_store %arg6[%c0_38, %c0_39], %227 {strides = array<i32>} : memref<16x32xf32, #tpu.memory_space<vmem>>, vector<16x32xf32>,
    return
  }
  func.func @transform_0(%arg0: i32) -> (i32, i32) {
    %c0_i32 = arith.constant 0 : i32
    %c0_i32_0 = arith.constant 0 : i32
    %c0_i32_1 = arith.constant 0 : i32
    return %c0_i32, %c0_i32_0 : i32, i32
  }
  func.func @transform_1(%arg0: i32) -> (i32, i32) {
    %c0_i32 = arith.constant 0 : i32
    %c0_i32_0 = arith.constant 0 : i32
    %c0_i32_1 = arith.constant 0 : i32
    return %c0_i32, %c0_i32_0 : i32, i32
  }
  func.func @transform_2(%arg0: i32) -> (i32, i32) {
    %c0_i32 = arith.constant 0 : i32
    %c0_i32_0 = arith.constant 0 : i32
    %c0_i32_1 = arith.constant 0 : i32
    return %c0_i32, %c0_i32_0 : i32, i32
  }
  func.func @transform_3(%arg0: i32) -> (i32, i32) {
    %c0_i32 = arith.constant 0 : i32
    %c0_i32_0 = arith.constant 0 : i32
    %c0_i32_1 = arith.constant 0 : i32
    return %c0_i32, %c0_i32_0 : i32, i32
  }
  func.func @transform_4(%arg0: i32) -> (i32, i32) {
    %c0_i32 = arith.constant 0 : i32
    %c0_i32_0 = arith.constant 0 : i32
    %c0_i32_1 = arith.constant 0 : i32
    return %c0_i32, %c0_i32_0 : i32, i32
  }
  func.func @transform_5(%arg0: i32) -> (i32, i32) {
    %c0_i32 = arith.constant 0 : i32
    %c0_i32_0 = arith.constant 0 : i32
    %c0_i32_1 = arith.constant 0 : i32
    return %c0_i32, %c0_i32_0 : i32, i32
  }
}

</mosaic_0001>

<llo_original>
// kernel: tpu_custom_call.1
$region0: #{tpu_custom_call.1}
  #allocation0 [shape = 'u32[]', space=smem, size = 0x4, offset = 0x4, fixed_abs, tag = 'smem constant byte address 0x4 - core index']
  #allocation1 [shape = 'u32[144,128]{1,0:T(1,128)}', space=vmem, size = 0x12000, scoped, tag = 'internal scratch']
  %s0 = inlined_call_operand.vmem [shape: f32[16,32], index: 0, kind: input, shape index: {}]
  %s1 = inlined_call_operand.vmem [shape: s32[16,16], index: 1, kind: input, shape index: {}]
  %s2 = inlined_call_operand.vmem [shape: f32[32,192], index: 2, kind: input, shape index: {}]
  %s3 = inlined_call_operand.vmem [shape: f32[128,32], index: 3, kind: input, shape index: {}]
  %s4 = inlined_call_operand.vmem [shape: f32[8,128], index: 4, kind: input, shape index: {}]
  %s5 = inlined_call_operand.hbm [shape: f32[16,32], index: 5, kind: output, shape index: {}]
  %s6 = sld [smem:[#allocation0]]
  $region30: #{tpu_custom_call.1} parent=0
    _
  %s8 = ssub.s32 1, %s6
  %s9 = scalar_select 0, %s8, %s6
  $region1: #{tpu_custom_call.1} parent=0
    #allocation2 [shape = 'u8[8192]{0}', space=vmem, size = 0x2000, scoped, tag = 'output window, operand 0, single buffered']
    #allocation3 [shape = 's32[1]{0}', space=sflag, size = 0x4, scoped, tag = 'scoped memory for tpu_custom_call.1']
    %10 = vsyncpa [#allocation3], 0
    // Predicated region
    $region2: #{tpu_custom_call.1} parent=1 // pred_check
      _
    $region3: #{tpu_custom_call.1} parent=1 // pred_check_branch
      %12 = sbr.rel (0) target = $region5
    $region4: #{tpu_custom_call.1} parent=1 // pred_region
      _
    $region5: #{tpu_custom_call.1} parent=1 // pred_fallthru
      _
    // Predicated region
    $region6: #{tpu_custom_call.1} parent=1 // pred_check
      _
    $region7: #{tpu_custom_call.1} parent=1 // pred_check_branch
      %14 = sbr.rel (0) target = $region9
    $region8: #{tpu_custom_call.1} parent=1 // pred_region
      _
    $region9: #{tpu_custom_call.1} parent=1 // pred_fallthru
      _
    // Predicated region
    $region10: #{tpu_custom_call.1} parent=1 // pred_check
      _
    $region11: #{tpu_custom_call.1} parent=1 // pred_check_branch
      %16 = sbr.rel (0) target = $region13
    $region12: #{tpu_custom_call.1} parent=1 // pred_region
      _
    $region13: #{tpu_custom_call.1} parent=1 // pred_fallthru
      _
    // Predicated region
    $region14: #{tpu_custom_call.1} parent=1 // pred_check
      _
    $region15: #{tpu_custom_call.1} parent=1 // pred_check_branch
      %18 = sbr.rel (0) target = $region17
    $region16: #{tpu_custom_call.1} parent=1 // pred_region
      _
    $region17: #{tpu_custom_call.1} parent=1 // pred_fallthru
      _
    // Predicated region
    $region18: #{tpu_custom_call.1} parent=1 // pred_check
      _
    $region19: #{tpu_custom_call.1} parent=1 // pred_check_branch
      %20 = sbr.rel (0) target = $region21
    $region20: #{tpu_custom_call.1} parent=1 // pred_region
      _
    $region21: #{tpu_custom_call.1} parent=1 // pred_fallthru
      _
    %v21 = vld [vmem:[%s0] sm:$0xff]
    %v22 = vld [vmem:[%s0 + $0x8] sm:$0xff]
    %v23 = vld [vmem:[%s4] sm:$0xff]
    %v24 = vld [vmem:[%s2] sm:$0xff]
    %v25 = vld [vmem:[%s2 + $0x8] sm:$0xff]
    %v26 = vld [vmem:[%s2 + $0x10] sm:$0xff]
    %v27 = vld [vmem:[%s2 + $0x18] sm:$0xff]
    %v28 = vld [vmem:[%s2 + $0x20] sm:$0xff]
    %v29 = vld [vmem:[%s2 + $0x28] sm:$0xff]
    %v30 = vld [vmem:[%s2 + $0x30] sm:$0xff]
    %v31 = vld [vmem:[%s2 + $0x38] sm:$0xff]
    %v32 = vld [vmem:[%s3] sm:$0xff]
    %v33 = vld [vmem:[%s3 + $0x8] sm:$0xff]
    %v34 = vld [vmem:[%s3 + $0x10] sm:$0xff]
    %v35 = vld [vmem:[%s3 + $0x18] sm:$0xff]
    %v36 = vld [vmem:[%s3 + $0x20] sm:$0xff]
    %v37 = vld [vmem:[%s3 + $0x28] sm:$0xff]
    %v38 = vld [vmem:[%s3 + $0x30] sm:$0xff]
    %v39 = vld [vmem:[%s3 + $0x38] sm:$0xff]
    %v40 = vld [vmem:[%s3 + $0x40] sm:$0xff]
    %v41 = vld [vmem:[%s3 + $0x48] sm:$0xff]
    %v42 = vld [vmem:[%s3 + $0x50] sm:$0xff]
    %v43 = vld [vmem:[%s3 + $0x58] sm:$0xff]
    %v44 = vld [vmem:[%s3 + $0x60] sm:$0xff]
    %v45 = vld [vmem:[%s3 + $0x68] sm:$0xff]
    %v46 = vld [vmem:[%s3 + $0x70] sm:$0xff]
    %v47 = vld [vmem:[%s3 + $0x78] sm:$0xff]
    %v48 = vld [vmem:[%s1] sm:$0xff]
    %v49 = vld [vmem:[%s1 + $0x8] sm:$0xff]
    %v50 = vlaneseq
    %v51 = vshrl.u32 %v50, 7
    %v52 = vsub.s32 0, %v51
    %v53 = vrot.slane %v48, %v52
    %55 = vbcast.lane.b32.xlu0 %v53, 256
    %v56 = vpop.permute.xlu0 %55
    %v57 = vlaneseq
    %v58 = vshrl.u32 %v57, 7
    %v59 = vsub.s32 1, %v58
    %v60 = vrot.slane %v48, %v59
    %62 = vbcast.lane.b32.xlu0 %v60, 256
    %v63 = vpop.permute.xlu0 %62
    %v64 = vlaneseq
    %v65 = vshrl.u32 %v64, 7
    %v66 = vsub.s32 2, %v65
    %v67 = vrot.slane %v48, %v66
    %69 = vbcast.lane.b32.xlu0 %v67, 256
    %v70 = vpop.permute.xlu0 %69
    %v71 = vlaneseq
    %v72 = vshrl.u32 %v71, 7
    %v73 = vsub.s32 3, %v72
    %v74 = vrot.slane %v48, %v73
    %76 = vbcast.lane.b32.xlu0 %v74, 256
    %v77 = vpop.permute.xlu0 %76
    %v78 = vlaneseq
    %v79 = vshrl.u32 %v78, 7
    %v80 = vsub.s32 4, %v79
    %v81 = vrot.slane %v48, %v80
    %83 = vbcast.lane.b32.xlu0 %v81, 256
    %v84 = vpop.permute.xlu0 %83
    %v85 = vlaneseq
    %v86 = vshrl.u32 %v85, 7
    %v87 = vsub.s32 5, %v86
    %v88 = vrot.slane %v48, %v87
    %90 = vbcast.lane.b32.xlu0 %v88, 256
    %v91 = vpop.permute.xlu0 %90
    %v92 = vlaneseq
    %v93 = vshrl.u32 %v92, 7
    %v94 = vsub.s32 6, %v93
    %v95 = vrot.slane %v48, %v94
    %97 = vbcast.lane.b32.xlu0 %v95, 256
    %v98 = vpop.permute.xlu0 %97
    %v99 = vlaneseq
    %v100 = vshrl.u32 %v99, 7
    %v101 = vsub.s32 7, %v100
    %v102 = vrot.slane %v48, %v101
    %104 = vbcast.lane.b32.xlu0 %v102, 256
    %v105 = vpop.permute.xlu0 %104
    %v106 = vlaneseq
    %v107 = vshrl.u32 %v106, 7
    %v108 = vsub.s32 0, %v107
    %v109 = vrot.slane %v49, %v108
    %111 = vbcast.lane.b32.xlu0 %v109, 256
    %v112 = vpop.permute.xlu0 %111
    %v113 = vlaneseq
    %v114 = vshrl.u32 %v113, 7
    %v115 = vsub.s32 1, %v114
    %v116 = vrot.slane %v49, %v115
    %118 = vbcast.lane.b32.xlu0 %v116, 256
    %v119 = vpop.permute.xlu0 %118
    %v120 = vlaneseq
    %v121 = vshrl.u32 %v120, 7
    %v122 = vsub.s32 2, %v121
    %v123 = vrot.slane %v49, %v122
    %125 = vbcast.lane.b32.xlu0 %v123, 256
    %v126 = vpop.permute.xlu0 %125
    %v127 = vlaneseq
    %v128 = vshrl.u32 %v127, 7
    %v129 = vsub.s32 3, %v128
    %v130 = vrot.slane %v49, %v129
    %132 = vbcast.lane.b32.xlu0 %v130, 256
    %v133 = vpop.permute.xlu0 %132
    %v134 = vlaneseq
    %v135 = vshrl.u32 %v134, 7
    %v136 = vsub.s32 4, %v135
    %v137 = vrot.slane %v49, %v136
    %139 = vbcast.lane.b32.xlu0 %v137, 256
    %v140 = vpop.permute.xlu0 %139
    %v141 = vlaneseq
    %v142 = vshrl.u32 %v141, 7
    %v143 = vsub.s32 5, %v142
    %v144 = vrot.slane %v49, %v143
    %146 = vbcast.lane.b32.xlu0 %v144, 256
    %v147 = vpop.permute.xlu0 %146
    %v148 = vlaneseq
    %v149 = vshrl.u32 %v148, 7
    %v150 = vsub.s32 6, %v149
    %v151 = vrot.slane %v49, %v150
    %153 = vbcast.lane.b32.xlu0 %v151, 256
    %v154 = vpop.permute.xlu0 %153
    %v155 = vlaneseq
    %v156 = vshrl.u32 %v155, 7
    %v157 = vsub.s32 7, %v156
    %v158 = vrot.slane %v49, %v157
    %160 = vbcast.lane.b32.xlu0 %v158, 256
    %v161 = vpop.permute.xlu0 %160
    %v162 = vlaneseq
    %v163 = vand.u32 %v162, 127
    %vm164 = vcmp.eq.s32.totalorder %v56, %v163
    %vm165 = vcmp.eq.s32.totalorder %v63, %v163
    %vm166 = vcmp.eq.s32.totalorder %v70, %v163
    %vm167 = vcmp.eq.s32.totalorder %v77, %v163
    %vm168 = vcmp.eq.s32.totalorder %v84, %v163
    %vm169 = vcmp.eq.s32.totalorder %v91, %v163
    %vm170 = vcmp.eq.s32.totalorder %v98, %v163
    %vm171 = vcmp.eq.s32.totalorder %v105, %v163
    %vm172 = vcmp.eq.s32.totalorder %v112, %v163
    %vm173 = vcmp.eq.s32.totalorder %v119, %v163
    %vm174 = vcmp.eq.s32.totalorder %v126, %v163
    %vm175 = vcmp.eq.s32.totalorder %v133, %v163
    %vm176 = vcmp.eq.s32.totalorder %v140, %v163
    %vm177 = vcmp.eq.s32.totalorder %v147, %v163
    %vm178 = vcmp.eq.s32.totalorder %v154, %v163
    %vm179 = vcmp.eq.s32.totalorder %v161, %v163
    %v180 = vsel %vm164, 1, 0
    %v181 = vsel %vm165, 1, 0
    %v182 = vsel %vm166, 1, 0
    %v183 = vsel %vm167, 1, 0
    %v184 = vsel %vm168, 1, 0
    %v185 = vsel %vm169, 1, 0
    %v186 = vsel %vm170, 1, 0
    %v187 = vsel %vm171, 1, 0
    %v188 = vsel %vm172, 1, 0
    %v189 = vsel %vm173, 1, 0
    %v190 = vsel %vm174, 1, 0
    %v191 = vsel %vm175, 1, 0
    %v192 = vsel %vm176, 1, 0
    %v193 = vsel %vm177, 1, 0
    %v194 = vsel %vm178, 1, 0
    %v195 = vsel %vm179, 1, 0
    %v196 = vcvt.s32.f32 %v180
    %v197 = vcvt.s32.f32 %v181
    %v198 = vcvt.s32.f32 %v182
    %v199 = vcvt.s32.f32 %v183
    %v200 = vcvt.s32.f32 %v184
    %v201 = vcvt.s32.f32 %v185
    %v202 = vcvt.s32.f32 %v186
    %v203 = vcvt.s32.f32 %v187
    %v204 = vcvt.s32.f32 %v188
    %v205 = vcvt.s32.f32 %v189
    %v206 = vcvt.s32.f32 %v190
    %v207 = vcvt.s32.f32 %v191
    %v208 = vcvt.s32.f32 %v192
    %v209 = vcvt.s32.f32 %v193
    %v210 = vcvt.s32.f32 %v194
    %v211 = vcvt.s32.f32 %v195
    %vm212 = vcmp.eq.s32.totalorder %v48, 0
    %vm213 = vcmp.eq.s32.totalorder %v49, 0
    %v214 = vsel %vm212, -1e+09, 0.0
    %v215 = vsel %vm213, -1e+09, 0.0
    %vm216 = vcmask 261120
    %v217 = vsel %vm216, %v21, 0.0
    %218 = vadd.xlane.f32.xlu0 %v217
    %v219 = vpop.xlane.xlu0 %218
    %v220 = vsel %vm216, %v22, 0.0
    %221 = vadd.xlane.f32.xlu0 %v220
    %v222 = vpop.xlane.xlu0 %221
    %v223 = vrcp.pop 32.0
    %v224 = vmul.f32 %v219, %v223
    %v225 = vmul.f32 %v222, %v223
    %v226 = vsub.f32 %v21, %v224
    %v227 = vsub.f32 %v22, %v225
    %v228 = vmul.f32 %v226, %v226
    %v229 = vmul.f32 %v227, %v227
    %v230 = vsel %vm216, %v228, 0.0
    %231 = vadd.xlane.f32.xlu0 %v230
    %v232 = vpop.xlane.xlu0 %231
    %v233 = vsel %vm216, %v229, 0.0
    %234 = vadd.xlane.f32.xlu0 %v233
    %v235 = vpop.xlane.xlu0 %234
    %v236 = vmul.f32 %v232, %v223
    %v237 = vmul.f32 %v235, %v223
    %v238 = vadd.f32 %v236, 1e-05
    %v239 = vadd.f32 %v237, 1e-05
    %v240 = vrsqrt.pop %v238
    %v241 = vrsqrt.pop %v239
    %v242 = vmul.f32 %v226, %v240
    %v243 = vmul.f32 %v227, %v241
    %v244 = vlaneseq
    %v245 = vshrl.u32 %v244, 7
    %v246 = vsub.s32 1, %v245
    %v247 = vrot.slane %v23, %v246
    %v248 = vmul.f32 %v242, %v247
    %v249 = vmul.f32 %v243, %v247
    %v250 = vlaneseq
    %v251 = vshrl.u32 %v250, 7
    %v252 = vsub.s32 2, %v251
    %v253 = vrot.slane %v23, %v252
    %v254 = vadd.f32 %v248, %v253
    %v255 = vadd.f32 %v249, %v253
    %v256 = vlaneseq
    %v257 = vshrl.u32 %v256, 7
    %v258 = vsub.s32 0, %v257
    %v259 = vrot.slane %v23, %v258
    %v261 = vsel %vm216, %v254, 0
    %v264 = vsel %vm216, %v255, 0
    %266 = vmatprep.subr.mxu0 0.0
    %267 = vmatpush1.msra.mxu0 %v24
    %268 = vmatprep.subr.mxu0 0.0
    %269 = vmatpush1.msra.mxu0 %v26
    %270 = vmatprep.subr.mxu0 0.0
    %271 = vmatpush1.msra.mxu0 %v28
    %272 = vmatprep.subr.mxu0 0.0
    %273 = vmatpush1.msra.mxu0 %v30
    %274 = vmatprep.subr.mxu0 0.0
    %275 = vmatpush1.msra.mxu0 0.0
    %276 = vmatprep.subr.mxu0 0.0
    %277 = vmatpush1.msra.mxu0 0.0
    %278 = vmatprep.subr.mxu0 0.0
    %279 = vmatpush1.msra.mxu0 0.0
    %280 = vmatprep.subr.mxu0 0.0
    %281 = vmatpush1.msra.mxu0 0.0
    %282 = vmatprep.subr.mxu0 0.0
    %283 = vmatpush1.msra.mxu0 0.0
    %284 = vmatprep.subr.mxu0 0.0
    %285 = vmatpush1.msra.mxu0 0.0
    %286 = vmatprep.subr.mxu0 0.0
    %287 = vmatpush1.msra.mxu0 0.0
    %288 = vmatprep.subr.mxu0 0.0
    %289 = vmatpush1.msra.mxu0 0.0
    %290 = vmatprep.subr.mxu0 0.0
    %291 = vmatpush1.msra.mxu0 0.0
    %292 = vmatprep.subr.mxu0 0.0
    %293 = vmatpush1.msra.mxu0 0.0
    %294 = vmatprep.subr.mxu0 0.0
    %295 = vmatpush1.msra.mxu0 0.0
    %296 = vmatprep.subr.mxu0 0.0
    %297 = vmatpush1.msra.mxu0 0.0
    %298 = vmatprep.subr.mxu0 0.0
    %299 = vmatpush1.msra.mxu0 0.0
    %300 = vmatprep.subr.mxu0 0.0
    %301 = vmatpush1.msra.mxu0 0.0
    %302 = vmatprep.subr.mxu0 0.0
    %303 = vmatpush1.msra.mxu0 0.0
    %304 = vmatprep.subr.mxu0 0.0
    %305 = vmatpush1.msra.mxu0 0.0
    %306 = vmatprep.subr.mxu0 0.0
    %307 = vmatpush1.msra.mxu0 0.0
    %308 = vmatprep.subr.mxu0 0.0
    %309 = vmatpush1.msra.mxu0 0.0
    %310 = vmatprep.subr.mxu0 0.0
    %311 = vmatpush1.msra.mxu0 0.0
    %312 = vmatprep.subr.mxu0 0.0
    %313 = vmatpush1.msra.mxu0 0.0
    %314 = vmatprep.subr.mxu0 0.0
    %315 = vmatpush1.msra.mxu0 0.0
    %316 = vmatprep.subr.mxu0 0.0
    %317 = vmatpush1.msra.mxu0 0.0
    %318 = vmatprep.subr.mxu0 0.0
    %319 = vmatpush1.msra.mxu0 0.0
    %320 = vmatprep.subr.mxu0 0.0
    %321 = vmatpush1.msra.mxu0 0.0
    %322 = vmatprep.subr.mxu0 0.0
    %323 = vmatpush1.msra.mxu0 0.0
    %324 = vmatprep.subr.mxu0 0.0
    %325 = vmatpush1.msra.mxu0 0.0
    %326 = vmatprep.subr.mxu0 0.0
    %327 = vmatpush1.msra.mxu0 0.0
    %328 = vmatprep.subr.mxu0 0.0
    %329 = vmatpush1.msra.mxu0 0.0
    %330 = vmatprep.mubr.f32.mxu0 0.0
    %331 = vmatmul.mubr.f32.gmra.mrb[0].mxu0 %v261
    %v332 = vpop.f32.mrb[0].mxu0
    %v333 = vadd.f32 %v259, %v332
    %v334 = vpop.f32.mrb[0].mxu0
    %335 = vmatprep.mubr.f32.mxu0 0.0
    %336 = vmatmul.mubr.f32.gmra.mrb[0].mxu0 %v264
    %v337 = vpop.f32.mrb[0].mxu0
    %v338 = vadd.f32 %v259, %v337
    %v339 = vpop.f32.mrb[0].mxu0
    %340 = vdwg.mxu0
    %342 = vrot.lane.b32.xlu0 %v333, 96
    %v343 = vpop.permute.xlu0 %342
    %vm344 = vcmask 64512
    %v345 = vsel %vm344, %v333, 0
    %v347 = vsel %vm344, %v343, 0
    %349 = vmatprep.subr.mxu0 0.0
    %350 = vmatpush1.xpose.msra.mxu0 %v347
    %351 = vmatprep.subr.mxu0 0.0
    %352 = vmatpush1.xpose.msra.mxu0 0.0
    %353 = vmatprep.subr.mxu0 0.0
    %354 = vmatpush1.xpose.msra.mxu0 0.0
    %355 = vmatprep.subr.mxu0 0.0
    %356 = vmatpush1.xpose.msra.mxu0 0.0
    %357 = vmatprep.subr.mxu0 0.0
    %358 = vmatpush1.xpose.msra.mxu0 0.0
    %359 = vmatprep.subr.mxu0 0.0
    %360 = vmatpush1.xpose.msra.mxu0 0.0
    %361 = vmatprep.subr.mxu0 0.0
    %362 = vmatpush1.xpose.msra.mxu0 0.0
    %363 = vmatprep.subr.mxu0 0.0
    %364 = vmatpush1.xpose.msra.mxu0 0.0
    %365 = vmatprep.subr.mxu0 0.0
    %366 = vmatpush1.xpose.msra.mxu0 0.0
    %367 = vmatprep.subr.mxu0 0.0
    %368 = vmatpush1.xpose.msra.mxu0 0.0
    %369 = vmatprep.subr.mxu0 0.0
    %370 = vmatpush1.xpose.msra.mxu0 0.0
    %371 = vmatprep.subr.mxu0 0.0
    %372 = vmatpush1.xpose.msra.mxu0 0.0
    %373 = vmatprep.subr.mxu0 0.0
    %374 = vmatpush1.xpose.msra.mxu0 0.0
    %375 = vmatprep.subr.mxu0 0.0
    %376 = vmatpush1.xpose.msra.mxu0 0.0
    %377 = vmatprep.subr.mxu0 0.0
    %378 = vmatpush1.xpose.msra.mxu0 0.0
    %379 = vmatprep.subr.mxu0 0.0
    %380 = vmatpush1.xpose.msra.mxu0 0.0
    %381 = vmatprep.subr.mxu0 0.0
    %382 = vmatpush1.xpose.msra.mxu0 0.0
    %383 = vmatprep.subr.mxu0 0.0
    %384 = vmatpush1.xpose.msra.mxu0 0.0
    %385 = vmatprep.subr.mxu0 0.0
    %386 = vmatpush1.xpose.msra.mxu0 0.0
    %387 = vmatprep.subr.mxu0 0.0
    %388 = vmatpush1.xpose.msra.mxu0 0.0
    %389 = vmatprep.subr.mxu0 0.0
    %390 = vmatpush1.xpose.msra.mxu0 0.0
    %391 = vmatprep.subr.mxu0 0.0
    %392 = vmatpush1.xpose.msra.mxu0 0.0
    %393 = vmatprep.subr.mxu0 0.0
    %394 = vmatpush1.xpose.msra.mxu0 0.0
    %395 = vmatprep.subr.mxu0 0.0
    %396 = vmatpush1.xpose.msra.mxu0 0.0
    %397 = vmatprep.subr.mxu0 0.0
    %398 = vmatpush1.xpose.msra.mxu0 0.0
    %399 = vmatprep.subr.mxu0 0.0
    %400 = vmatpush1.xpose.msra.mxu0 0.0
    %401 = vmatprep.subr.mxu0 0.0
    %402 = vmatpush1.xpose.msra.mxu0 0.0
    %403 = vmatprep.subr.mxu0 0.0
    %404 = vmatpush1.xpose.msra.mxu0 0.0
    %405 = vmatprep.subr.mxu0 0.0
    %406 = vmatpush1.xpose.msra.mxu0 0.0
    %407 = vmatprep.subr.mxu0 0.0
    %408 = vmatpush1.xpose.msra.mxu0 0.0
    %409 = vmatprep.subr.mxu0 0.0
    %410 = vmatpush1.xpose.msra.mxu0 0.0
    %411 = vmatprep.subr.mxu0 0.0
    %412 = vmatpush1.xpose.msra.mxu0 0.0
    %413 = vmatprep.mubr.f32.mxu0 0.0
    %414 = vmatmul.mubr.f32.gmra.mrb[0].mxu0 %v345
    %v415 = vpop.f32.mrb[0].mxu0
    %v416 = vadd.f32 0.0, %v415
    %v417 = vpop.f32.mrb[0].mxu0
    %418 = vdwg.mxu0
    %420 = vrot.lane.b32.xlu0 %v338, 96
    %v421 = vpop.permute.xlu0 %420
    %v422 = vsel %vm344, %v338, 0
    %v424 = vsel %vm344, %v421, 0
    %426 = vmatprep.subr.mxu0 0.0
    %427 = vmatpush1.xpose.msra.mxu0 %v424
    %428 = vmatprep.subr.mxu0 0.0
    %429 = vmatpush1.xpose.msra.mxu0 0.0
    %430 = vmatprep.subr.mxu0 0.0
    %431 = vmatpush1.xpose.msra.mxu0 0.0
    %432 = vmatprep.subr.mxu0 0.0
    %433 = vmatpush1.xpose.msra.mxu0 0.0
    %434 = vmatprep.subr.mxu0 0.0
    %435 = vmatpush1.xpose.msra.mxu0 0.0
    %436 = vmatprep.subr.mxu0 0.0
    %437 = vmatpush1.xpose.msra.mxu0 0.0
    %438 = vmatprep.subr.mxu0 0.0
    %439 = vmatpush1.xpose.msra.mxu0 0.0
    %440 = vmatprep.subr.mxu0 0.0
    %441 = vmatpush1.xpose.msra.mxu0 0.0
    %442 = vmatprep.subr.mxu0 0.0
    %443 = vmatpush1.xpose.msra.mxu0 0.0
    %444 = vmatprep.subr.mxu0 0.0
    %445 = vmatpush1.xpose.msra.mxu0 0.0
    %446 = vmatprep.subr.mxu0 0.0
    %447 = vmatpush1.xpose.msra.mxu0 0.0
    %448 = vmatprep.subr.mxu0 0.0
    %449 = vmatpush1.xpose.msra.mxu0 0.0
    %450 = vmatprep.subr.mxu0 0.0
    %451 = vmatpush1.xpose.msra.mxu0 0.0
    %452 = vmatprep.subr.mxu0 0.0
    %453 = vmatpush1.xpose.msra.mxu0 0.0
    %454 = vmatprep.subr.mxu0 0.0
    %455 = vmatpush1.xpose.msra.mxu0 0.0
    %456 = vmatprep.subr.mxu0 0.0
    %457 = vmatpush1.xpose.msra.mxu0 0.0
    %458 = vmatprep.subr.mxu0 0.0
    %459 = vmatpush1.xpose.msra.mxu0 0.0
    %460 = vmatprep.subr.mxu0 0.0
    %461 = vmatpush1.xpose.msra.mxu0 0.0
    %462 = vmatprep.subr.mxu0 0.0
    %463 = vmatpush1.xpose.msra.mxu0 0.0
    %464 = vmatprep.subr.mxu0 0.0
    %465 = vmatpush1.xpose.msra.mxu0 0.0
    %466 = vmatprep.subr.mxu0 0.0
    %467 = vmatpush1.xpose.msra.mxu0 0.0
    %468 = vmatprep.subr.mxu0 0.0
    %469 = vmatpush1.xpose.msra.mxu0 0.0
    %470 = vmatprep.subr.mxu0 0.0
    %471 = vmatpush1.xpose.msra.mxu0 0.0
    %472 = vmatprep.subr.mxu0 0.0
    %473 = vmatpush1.xpose.msra.mxu0 0.0
    %474 = vmatprep.subr.mxu0 0.0
    %475 = vmatpush1.xpose.msra.mxu0 0.0
    %476 = vmatprep.subr.mxu0 0.0
    %477 = vmatpush1.xpose.msra.mxu0 0.0
    %478 = vmatprep.subr.mxu0 0.0
    %479 = vmatpush1.xpose.msra.mxu0 0.0
    %480 = vmatprep.subr.mxu0 0.0
    %481 = vmatpush1.xpose.msra.mxu0 0.0
    %482 = vmatprep.subr.mxu0 0.0
    %483 = vmatpush1.xpose.msra.mxu0 0.0
    %484 = vmatprep.subr.mxu0 0.0
    %485 = vmatpush1.xpose.msra.mxu0 0.0
    %486 = vmatprep.subr.mxu0 0.0
    %487 = vmatpush1.xpose.msra.mxu0 0.0
    %488 = vmatprep.subr.mxu0 0.0
    %489 = vmatpush1.xpose.msra.mxu0 0.0
    %490 = vmatprep.mubr.f32.mxu0 0.0
    %491 = vmatmul.mubr.f32.gmra.mrb[0].mxu0 %v422
    %v492 = vpop.f32.mrb[0].mxu0
    %v493 = vadd.f32 0.0, %v492
    %v494 = vpop.f32.mrb[0].mxu0
    %495 = vdwg.mxu0
    %496 = vrot.lane.b32.xlu0 %v333, 120
    %v497 = vpop.permute.xlu0 %496
    %498 = vrot.lane.b32.xlu0 %v333, 88
    %v499 = vpop.permute.xlu0 %498
    %v500 = vsel %vm344, %v497, 0
    %v502 = vsel %vm344, %v499, 0
    %504 = vmatprep.subr.mxu0 0.0
    %505 = vmatpush1.xpose.msra.mxu0 %v502
    %506 = vmatprep.subr.mxu0 0.0
    %507 = vmatpush1.xpose.msra.mxu0 0.0
    %508 = vmatprep.subr.mxu0 0.0
    %509 = vmatpush1.xpose.msra.mxu0 0.0
    %510 = vmatprep.subr.mxu0 0.0
    %511 = vmatpush1.xpose.msra.mxu0 0.0
    %512 = vmatprep.subr.mxu0 0.0
    %513 = vmatpush1.xpose.msra.mxu0 0.0
    %514 = vmatprep.subr.mxu0 0.0
    %515 = vmatpush1.xpose.msra.mxu0 0.0
    %516 = vmatprep.subr.mxu0 0.0
    %517 = vmatpush1.xpose.msra.mxu0 0.0
    %518 = vmatprep.subr.mxu0 0.0
    %519 = vmatpush1.xpose.msra.mxu0 0.0
    %520 = vmatprep.subr.mxu0 0.0
    %521 = vmatpush1.xpose.msra.mxu0 0.0
    %522 = vmatprep.subr.mxu0 0.0
    %523 = vmatpush1.xpose.msra.mxu0 0.0
    %524 = vmatprep.subr.mxu0 0.0
    %525 = vmatpush1.xpose.msra.mxu0 0.0
    %526 = vmatprep.subr.mxu0 0.0
    %527 = vmatpush1.xpose.msra.mxu0 0.0
    %528 = vmatprep.subr.mxu0 0.0
    %529 = vmatpush1.xpose.msra.mxu0 0.0
    %530 = vmatprep.subr.mxu0 0.0
    %531 = vmatpush1.xpose.msra.mxu0 0.0
    %532 = vmatprep.subr.mxu0 0.0
    %533 = vmatpush1.xpose.msra.mxu0 0.0
    %534 = vmatprep.subr.mxu0 0.0
    %535 = vmatpush1.xpose.msra.mxu0 0.0
    %536 = vmatprep.subr.mxu0 0.0
    %537 = vmatpush1.xpose.msra.mxu0 0.0
    %538 = vmatprep.subr.mxu0 0.0
    %539 = vmatpush1.xpose.msra.mxu0 0.0
    %540 = vmatprep.subr.mxu0 0.0
    %541 = vmatpush1.xpose.msra.mxu0 0.0
    %542 = vmatprep.subr.mxu0 0.0
    %543 = vmatpush1.xpose.msra.mxu0 0.0
    %544 = vmatprep.subr.mxu0 0.0
    %545 = vmatpush1.xpose.msra.mxu0 0.0
    %546 = vmatprep.subr.mxu0 0.0
    %547 = vmatpush1.xpose.msra.mxu0 0.0
    %548 = vmatprep.subr.mxu0 0.0
    %549 = vmatpush1.xpose.msra.mxu0 0.0
    %550 = vmatprep.subr.mxu0 0.0
    %551 = vmatpush1.xpose.msra.mxu0 0.0
    %552 = vmatprep.subr.mxu0 0.0
    %553 = vmatpush1.xpose.msra.mxu0 0.0
    %554 = vmatprep.subr.mxu0 0.0
    %555 = vmatpush1.xpose.msra.mxu0 0.0
    %556 = vmatprep.subr.mxu0 0.0
    %557 = vmatpush1.xpose.msra.mxu0 0.0
    %558 = vmatprep.subr.mxu0 0.0
    %559 = vmatpush1.xpose.msra.mxu0 0.0
    %560 = vmatprep.subr.mxu0 0.0
    %561 = vmatpush1.xpose.msra.mxu0 0.0
    %562 = vmatprep.subr.mxu0 0.0
    %563 = vmatpush1.xpose.msra.mxu0 0.0
    %564 = vmatprep.subr.mxu0 0.0
    %565 = vmatpush1.xpose.msra.mxu0 0.0
    %566 = vmatprep.subr.mxu0 0.0
    %567 = vmatpush1.xpose.msra.mxu0 0.0
    %568 = vmatprep.mubr.f32.mxu0 0.0
    %569 = vmatmul.mubr.f32.gmra.mrb[0].mxu0 %v500
    %v570 = vpop.f32.mrb[0].mxu0
    %v571 = vadd.f32 0.0, %v570
    %v572 = vpop.f32.mrb[0].mxu0
    %573 = vdwg.mxu0
    %574 = vrot.lane.b32.xlu0 %v338, 120
    %v575 = vpop.permute.xlu0 %574
    %576 = vrot.lane.b32.xlu0 %v338, 88
    %v577 = vpop.permute.xlu0 %576
    %v578 = vsel %vm344, %v575, 0
    %v580 = vsel %vm344, %v577, 0
    %582 = vmatprep.subr.mxu0 0.0
    %583 = vmatpush1.xpose.msra.mxu0 %v580
    %584 = vmatprep.subr.mxu0 0.0
    %585 = vmatpush1.xpose.msra.mxu0 0.0
    %586 = vmatprep.subr.mxu0 0.0
    %587 = vmatpush1.xpose.msra.mxu0 0.0
    %588 = vmatprep.subr.mxu0 0.0
    %589 = vmatpush1.xpose.msra.mxu0 0.0
    %590 = vmatprep.subr.mxu0 0.0
    %591 = vmatpush1.xpose.msra.mxu0 0.0
    %592 = vmatprep.subr.mxu0 0.0
    %593 = vmatpush1.xpose.msra.mxu0 0.0
    %594 = vmatprep.subr.mxu0 0.0
    %595 = vmatpush1.xpose.msra.mxu0 0.0
    %596 = vmatprep.subr.mxu0 0.0
    %597 = vmatpush1.xpose.msra.mxu0 0.0
    %598 = vmatprep.subr.mxu0 0.0
    %599 = vmatpush1.xpose.msra.mxu0 0.0
    %600 = vmatprep.subr.mxu0 0.0
    %601 = vmatpush1.xpose.msra.mxu0 0.0
    %602 = vmatprep.subr.mxu0 0.0
    %603 = vmatpush1.xpose.msra.mxu0 0.0
    %604 = vmatprep.subr.mxu0 0.0
    %605 = vmatpush1.xpose.msra.mxu0 0.0
    %606 = vmatprep.subr.mxu0 0.0
    %607 = vmatpush1.xpose.msra.mxu0 0.0
    %608 = vmatprep.subr.mxu0 0.0
    %609 = vmatpush1.xpose.msra.mxu0 0.0
    %610 = vmatprep.subr.mxu0 0.0
    %611 = vmatpush1.xpose.msra.mxu0 0.0
    %612 = vmatprep.subr.mxu0 0.0
    %613 = vmatpush1.xpose.msra.mxu0 0.0
    %614 = vmatprep.subr.mxu0 0.0
    %615 = vmatpush1.xpose.msra.mxu0 0.0
    %616 = vmatprep.subr.mxu0 0.0
    %617 = vmatpush1.xpose.msra.mxu0 0.0
    %618 = vmatprep.subr.mxu0 0.0
    %619 = vmatpush1.xpose.msra.mxu0 0.0
    %620 = vmatprep.subr.mxu0 0.0
    %621 = vmatpush1.xpose.msra.mxu0 0.0
    %622 = vmatprep.subr.mxu0 0.0
    %623 = vmatpush1.xpose.msra.mxu0 0.0
    %624 = vmatprep.subr.mxu0 0.0
    %625 = vmatpush1.xpose.msra.mxu0 0.0
    %626 = vmatprep.subr.mxu0 0.0
    %627 = vmatpush1.xpose.msra.mxu0 0.0
    %628 = vmatprep.subr.mxu0 0.0
    %629 = vmatpush1.xpose.msra.mxu0 0.0
    %630 = vmatprep.subr.mxu0 0.0
    %631 = vmatpush1.xpose.msra.mxu0 0.0
    %632 = vmatprep.subr.mxu0 0.0
    %633 = vmatpush1.xpose.msra.mxu0 0.0
    %634 = vmatprep.subr.mxu0 0.0
    %635 = vmatpush1.xpose.msra.mxu0 0.0
    %636 = vmatprep.subr.mxu0 0.0
    %637 = vmatpush1.xpose.msra.mxu0 0.0
    %638 = vmatprep.subr.mxu0 0.0
    %639 = vmatpush1.xpose.msra.mxu0 0.0
    %640 = vmatprep.subr.mxu0 0.0
    %641 = vmatpush1.xpose.msra.mxu0 0.0
    %642 = vmatprep.subr.mxu0 0.0
    %643 = vmatpush1.xpose.msra.mxu0 0.0
    %644 = vmatprep.subr.mxu0 0.0
    %645 = vmatpush1.xpose.msra.mxu0 0.0
    %646 = vmatprep.mubr.f32.mxu0 0.0
    %647 = vmatmul.mubr.f32.gmra.mrb[0].mxu0 %v578
    %v648 = vpop.f32.mrb[0].mxu0
    %v649 = vadd.f32 0.0, %v648
    %v650 = vpop.f32.mrb[0].mxu0
    %651 = vdwg.mxu0
    %652 = vrot.lane.b32.xlu0 %v333, 112
    %v653 = vpop.permute.xlu0 %652
    %654 = vrot.lane.b32.xlu0 %v333, 80
    %v655 = vpop.permute.xlu0 %654
    %v656 = vsel %vm344, %v653, 0
    %v658 = vsel %vm344, %v655, 0
    %660 = vmatprep.subr.mxu0 0.0
    %661 = vmatpush1.xpose.msra.mxu0 %v658
    %662 = vmatprep.subr.mxu0 0.0
    %663 = vmatpush1.xpose.msra.mxu0 0.0
    %664 = vmatprep.subr.mxu0 0.0
    %665 = vmatpush1.xpose.msra.mxu0 0.0
    %666 = vmatprep.subr.mxu0 0.0
    %667 = vmatpush1.xpose.msra.mxu0 0.0
    %668 = vmatprep.subr.mxu0 0.0
    %669 = vmatpush1.xpose.msra.mxu0 0.0
    %670 = vmatprep.subr.mxu0 0.0
    %671 = vmatpush1.xpose.msra.mxu0 0.0
    %672 = vmatprep.subr.mxu0 0.0
    %673 = vmatpush1.xpose.msra.mxu0 0.0
    %674 = vmatprep.subr.mxu0 0.0
    %675 = vmatpush1.xpose.msra.mxu0 0.0
    %676 = vmatprep.subr.mxu0 0.0
    %677 = vmatpush1.xpose.msra.mxu0 0.0
    %678 = vmatprep.subr.mxu0 0.0
    %679 = vmatpush1.xpose.msra.mxu0 0.0
    %680 = vmatprep.subr.mxu0 0.0
    %681 = vmatpush1.xpose.msra.mxu0 0.0
    %682 = vmatprep.subr.mxu0 0.0
    %683 = vmatpush1.xpose.msra.mxu0 0.0
    %684 = vmatprep.subr.mxu0 0.0
    %685 = vmatpush1.xpose.msra.mxu0 0.0
    %686 = vmatprep.subr.mxu0 0.0
    %687 = vmatpush1.xpose.msra.mxu0 0.0
    %688 = vmatprep.subr.mxu0 0.0
    %689 = vmatpush1.xpose.msra.mxu0 0.0
    %690 = vmatprep.subr.mxu0 0.0
    %691 = vmatpush1.xpose.msra.mxu0 0.0
    %692 = vmatprep.subr.mxu0 0.0
    %693 = vmatpush1.xpose.msra.mxu0 0.0
    %694 = vmatprep.subr.mxu0 0.0
    %695 = vmatpush1.xpose.msra.mxu0 0.0
    %696 = vmatprep.subr.mxu0 0.0
    %697 = vmatpush1.xpose.msra.mxu0 0.0
    %698 = vmatprep.subr.mxu0 0.0
    %699 = vmatpush1.xpose.msra.mxu0 0.0
    %700 = vmatprep.subr.mxu0 0.0
    %701 = vmatpush1.xpose.msra.mxu0 0.0
    %702 = vmatprep.subr.mxu0 0.0
    %703 = vmatpush1.xpose.msra.mxu0 0.0
    %704 = vmatprep.subr.mxu0 0.0
    %705 = vmatpush1.xpose.msra.mxu0 0.0
    %706 = vmatprep.subr.mxu0 0.0
    %707 = vmatpush1.xpose.msra.mxu0 0.0
    %708 = vmatprep.subr.mxu0 0.0
    %709 = vmatpush1.xpose.msra.mxu0 0.0
    %710 = vmatprep.subr.mxu0 0.0
    %711 = vmatpush1.xpose.msra.mxu0 0.0
    %712 = vmatprep.subr.mxu0 0.0
    %713 = vmatpush1.xpose.msra.mxu0 0.0
    %714 = vmatprep.subr.mxu0 0.0
    %715 = vmatpush1.xpose.msra.mxu0 0.0
    %716 = vmatprep.subr.mxu0 0.0
    %717 = vmatpush1.xpose.msra.mxu0 0.0
    %718 = vmatprep.subr.mxu0 0.0
    %719 = vmatpush1.xpose.msra.mxu0 0.0
    %720 = vmatprep.subr.mxu0 0.0
    %721 = vmatpush1.xpose.msra.mxu0 0.0
    %722 = vmatprep.subr.mxu0 0.0
    %723 = vmatpush1.xpose.msra.mxu0 0.0
    %724 = vmatprep.mubr.f32.mxu0 0.0
    %725 = vmatmul.mubr.f32.gmra.mrb[0].mxu0 %v656
    %v726 = vpop.f32.mrb[0].mxu0
    %v727 = vadd.f32 0.0, %v726
    %v728 = vpop.f32.mrb[0].mxu0
    %729 = vdwg.mxu0
    %730 = vrot.lane.b32.xlu0 %v338, 112
    %v731 = vpop.permute.xlu0 %730
    %732 = vrot.lane.b32.xlu0 %v338, 80
    %v733 = vpop.permute.xlu0 %732
    %v734 = vsel %vm344, %v731, 0
    %v736 = vsel %vm344, %v733, 0
    %738 = vmatprep.subr.mxu0 0.0
    %739 = vmatpush1.xpose.msra.mxu0 %v736
    %740 = vmatprep.subr.mxu0 0.0
    %741 = vmatpush1.xpose.msra.mxu0 0.0
    %742 = vmatprep.subr.mxu0 0.0
    %743 = vmatpush1.xpose.msra.mxu0 0.0
    %744 = vmatprep.subr.mxu0 0.0
    %745 = vmatpush1.xpose.msra.mxu0 0.0
    %746 = vmatprep.subr.mxu0 0.0
    %747 = vmatpush1.xpose.msra.mxu0 0.0
    %748 = vmatprep.subr.mxu0 0.0
    %749 = vmatpush1.xpose.msra.mxu0 0.0
    %750 = vmatprep.subr.mxu0 0.0
    %751 = vmatpush1.xpose.msra.mxu0 0.0
    %752 = vmatprep.subr.mxu0 0.0
    %753 = vmatpush1.xpose.msra.mxu0 0.0
    %754 = vmatprep.subr.mxu0 0.0
    %755 = vmatpush1.xpose.msra.mxu0 0.0
    %756 = vmatprep.subr.mxu0 0.0
    %757 = vmatpush1.xpose.msra.mxu0 0.0
    %758 = vmatprep.subr.mxu0 0.0
    %759 = vmatpush1.xpose.msra.mxu0 0.0
    %760 = vmatprep.subr.mxu0 0.0
    %761 = vmatpush1.xpose.msra.mxu0 0.0
    %762 = vmatprep.subr.mxu0 0.0
    %763 = vmatpush1.xpose.msra.mxu0 0.0
    %764 = vmatprep.subr.mxu0 0.0
    %765 = vmatpush1.xpose.msra.mxu0 0.0
    %766 = vmatprep.subr.mxu0 0.0
    %767 = vmatpush1.xpose.msra.mxu0 0.0
    %768 = vmatprep.subr.mxu0 0.0
    %769 = vmatpush1.xpose.msra.mxu0 0.0
    %770 = vmatprep.subr.mxu0 0.0
    %771 = vmatpush1.xpose.msra.mxu0 0.0
    %772 = vmatprep.subr.mxu0 0.0
    %773 = vmatpush1.xpose.msra.mxu0 0.0
    %774 = vmatprep.subr.mxu0 0.0
    %775 = vmatpush1.xpose.msra.mxu0 0.0
    %776 = vmatprep.subr.mxu0 0.0
    %777 = vmatpush1.xpose.msra.mxu0 0.0
    %778 = vmatprep.subr.mxu0 0.0
    %779 = vmatpush1.xpose.msra.mxu0 0.0
    %780 = vmatprep.subr.mxu0 0.0
    %781 = vmatpush1.xpose.msra.mxu0 0.0
    %782 = vmatprep.subr.mxu0 0.0
    %783 = vmatpush1.xpose.msra.mxu0 0.0
    %784 = vmatprep.subr.mxu0 0.0
    %785 = vmatpush1.xpose.msra.mxu0 0.0
    %786 = vmatprep.subr.mxu0 0.0
    %787 = vmatpush1.xpose.msra.mxu0 0.0
    %788 = vmatprep.subr.mxu0 0.0
    %789 = vmatpush1.xpose.msra.mxu0 0.0
    %790 = vmatprep.subr.mxu0 0.0
    %791 = vmatpush1.xpose.msra.mxu0 0.0
    %792 = vmatprep.subr.mxu0 0.0
    %793 = vmatpush1.xpose.msra.mxu0 0.0
    %794 = vmatprep.subr.mxu0 0.0
    %795 = vmatpush1.xpose.msra.mxu0 0.0
    %796 = vmatprep.subr.mxu0 0.0
    %797 = vmatpush1.xpose.msra.mxu0 0.0
    %798 = vmatprep.subr.mxu0 0.0
    %799 = vmatpush1.xpose.msra.mxu0 0.0
    %800 = vmatprep.subr.mxu0 0.0
    %801 = vmatpush1.xpose.msra.mxu0 0.0
    %802 = vmatprep.mubr.f32.mxu0 0.0
    %803 = vmatmul.mubr.f32.gmra.mrb[0].mxu0 %v734
    %v804 = vpop.f32.mrb[0].mxu0
    %v805 = vadd.f32 0.0, %v804
    %v806 = vpop.f32.mrb[0].mxu0
    %807 = vdwg.mxu0
    %808 = vrot.lane.b32.xlu0 %v333, 104
    %v809 = vpop.permute.xlu0 %808
    %810 = vrot.lane.b32.xlu0 %v333, 72
    %v811 = vpop.permute.xlu0 %810
    %v812 = vsel %vm344, %v809, 0
    %v814 = vsel %vm344, %v811, 0
    %816 = vmatprep.subr.mxu0 0.0
    %817 = vmatpush1.xpose.msra.mxu0 %v814
    %818 = vmatprep.subr.mxu0 0.0
    %819 = vmatpush1.xpose.msra.mxu0 0.0
    %820 = vmatprep.subr.mxu0 0.0
    %821 = vmatpush1.xpose.msra.mxu0 0.0
    %822 = vmatprep.subr.mxu0 0.0
    %823 = vmatpush1.xpose.msra.mxu0 0.0
    %824 = vmatprep.subr.mxu0 0.0
    %825 = vmatpush1.xpose.msra.mxu0 0.0
    %826 = vmatprep.subr.mxu0 0.0
    %827 = vmatpush1.xpose.msra.mxu0 0.0
    %828 = vmatprep.subr.mxu0 0.0
    %829 = vmatpush1.xpose.msra.mxu0 0.0
    %830 = vmatprep.subr.mxu0 0.0
    %831 = vmatpush1.xpose.msra.mxu0 0.0
    %832 = vmatprep.subr.mxu0 0.0
    %833 = vmatpush1.xpose.msra.mxu0 0.0
    %834 = vmatprep.subr.mxu0 0.0
    %835 = vmatpush1.xpose.msra.mxu0 0.0
    %836 = vmatprep.subr.mxu0 0.0
    %837 = vmatpush1.xpose.msra.mxu0 0.0
    %838 = vmatprep.subr.mxu0 0.0
    %839 = vmatpush1.xpose.msra.mxu0 0.0
    %840 = vmatprep.subr.mxu0 0.0
    %841 = vmatpush1.xpose.msra.mxu0 0.0
    %842 = vmatprep.subr.mxu0 0.0
    %843 = vmatpush1.xpose.msra.mxu0 0.0
    %844 = vmatprep.subr.mxu0 0.0
    %845 = vmatpush1.xpose.msra.mxu0 0.0
    %846 = vmatprep.subr.mxu0 0.0
    %847 = vmatpush1.xpose.msra.mxu0 0.0
    %848 = vmatprep.subr.mxu0 0.0
    %849 = vmatpush1.xpose.msra.mxu0 0.0
    %850 = vmatprep.subr.mxu0 0.0
    %851 = vmatpush1.xpose.msra.mxu0 0.0
    %852 = vmatprep.subr.mxu0 0.0
    %853 = vmatpush1.xpose.msra.mxu0 0.0
    %854 = vmatprep.subr.mxu0 0.0
    %855 = vmatpush1.xpose.msra.mxu0 0.0
    %856 = vmatprep.subr.mxu0 0.0
    %857 = vmatpush1.xpose.msra.mxu0 0.0
    %858 = vmatprep.subr.mxu0 0.0
    %859 = vmatpush1.xpose.msra.mxu0 0.0
    %860 = vmatprep.subr.mxu0 0.0
    %861 = vmatpush1.xpose.msra.mxu0 0.0
    %862 = vmatprep.subr.mxu0 0.0
    %863 = vmatpush1.xpose.msra.mxu0 0.0
    %864 = vmatprep.subr.mxu0 0.0
    %865 = vmatpush1.xpose.msra.mxu0 0.0
    %866 = vmatprep.subr.mxu0 0.0
    %867 = vmatpush1.xpose.msra.mxu0 0.0
    %868 = vmatprep.subr.mxu0 0.0
    %869 = vmatpush1.xpose.msra.mxu0 0.0
    %870 = vmatprep.subr.mxu0 0.0
    %871 = vmatpush1.xpose.msra.mxu0 0.0
    %872 = vmatprep.subr.mxu0 0.0
    %873 = vmatpush1.xpose.msra.mxu0 0.0
    %874 = vmatprep.subr.mxu0 0.0
    %875 = vmatpush1.xpose.msra.mxu0 0.0
    %876 = vmatprep.subr.mxu0 0.0
    %877 = vmatpush1.xpose.msra.mxu0 0.0
    %878 = vmatprep.subr.mxu0 0.0
    %879 = vmatpush1.xpose.msra.mxu0 0.0
    %880 = vmatprep.mubr.f32.mxu0 0.0
    %881 = vmatmul.mubr.f32.gmra.mrb[0].mxu0 %v812
    %v882 = vpop.f32.mrb[0].mxu0
    %v883 = vadd.f32 0.0, %v882
    %v884 = vpop.f32.mrb[0].mxu0
    %885 = vdwg.mxu0
    %886 = vrot.lane.b32.xlu0 %v338, 104
    %v887 = vpop.permute.xlu0 %886
    %888 = vrot.lane.b32.xlu0 %v338, 72
    %v889 = vpop.permute.xlu0 %888
    %v890 = vsel %vm344, %v887, 0
    %v892 = vsel %vm344, %v889, 0
    %894 = vmatprep.subr.mxu0 0.0
    %895 = vmatpush1.xpose.msra.mxu0 %v892
    %896 = vmatprep.subr.mxu0 0.0
    %897 = vmatpush1.xpose.msra.mxu0 0.0
    %898 = vmatprep.subr.mxu0 0.0
    %899 = vmatpush1.xpose.msra.mxu0 0.0
    %900 = vmatprep.subr.mxu0 0.0
    %901 = vmatpush1.xpose.msra.mxu0 0.0
    %902 = vmatprep.subr.mxu0 0.0
    %903 = vmatpush1.xpose.msra.mxu0 0.0
    %904 = vmatprep.subr.mxu0 0.0
    %905 = vmatpush1.xpose.msra.mxu0 0.0
    %906 = vmatprep.subr.mxu0 0.0
    %907 = vmatpush1.xpose.msra.mxu0 0.0
    %908 = vmatprep.subr.mxu0 0.0
    %909 = vmatpush1.xpose.msra.mxu0 0.0
    %910 = vmatprep.subr.mxu0 0.0
    %911 = vmatpush1.xpose.msra.mxu0 0.0
    %912 = vmatprep.subr.mxu0 0.0
    %913 = vmatpush1.xpose.msra.mxu0 0.0
    %914 = vmatprep.subr.mxu0 0.0
    %915 = vmatpush1.xpose.msra.mxu0 0.0
    %916 = vmatprep.subr.mxu0 0.0
    %917 = vmatpush1.xpose.msra.mxu0 0.0
    %918 = vmatprep.subr.mxu0 0.0
    %919 = vmatpush1.xpose.msra.mxu0 0.0
    %920 = vmatprep.subr.mxu0 0.0
    %921 = vmatpush1.xpose.msra.mxu0 0.0
    %922 = vmatprep.subr.mxu0 0.0
    %923 = vmatpush1.xpose.msra.mxu0 0.0
    %924 = vmatprep.subr.mxu0 0.0
    %925 = vmatpush1.xpose.msra.mxu0 0.0
    %926 = vmatprep.subr.mxu0 0.0
    %927 = vmatpush1.xpose.msra.mxu0 0.0
    %928 = vmatprep.subr.mxu0 0.0
    %929 = vmatpush1.xpose.msra.mxu0 0.0
    %930 = vmatprep.subr.mxu0 0.0
    %931 = vmatpush1.xpose.msra.mxu0 0.0
    %932 = vmatprep.subr.mxu0 0.0
    %933 = vmatpush1.xpose.msra.mxu0 0.0
    %934 = vmatprep.subr.mxu0 0.0
    %935 = vmatpush1.xpose.msra.mxu0 0.0
    %936 = vmatprep.subr.mxu0 0.0
    %937 = vmatpush1.xpose.msra.mxu0 0.0
    %938 = vmatprep.subr.mxu0 0.0
    %939 = vmatpush1.xpose.msra.mxu0 0.0
    %940 = vmatprep.subr.mxu0 0.0
    %941 = vmatpush1.xpose.msra.mxu0 0.0
    %942 = vmatprep.subr.mxu0 0.0
    %943 = vmatpush1.xpose.msra.mxu0 0.0
    %944 = vmatprep.subr.mxu0 0.0
    %945 = vmatpush1.xpose.msra.mxu0 0.0
    %946 = vmatprep.subr.mxu0 0.0
    %947 = vmatpush1.xpose.msra.mxu0 0.0
    %948 = vmatprep.subr.mxu0 0.0
    %949 = vmatpush1.xpose.msra.mxu0 0.0
    %950 = vmatprep.subr.mxu0 0.0
    %951 = vmatpush1.xpose.msra.mxu0 0.0
    %952 = vmatprep.subr.mxu0 0.0
    %953 = vmatpush1.xpose.msra.mxu0 0.0
    %954 = vmatprep.subr.mxu0 0.0
    %955 = vmatpush1.xpose.msra.mxu0 0.0
    %956 = vmatprep.subr.mxu0 0.0
    %957 = vmatpush1.xpose.msra.mxu0 0.0
    %958 = vmatprep.mubr.f32.mxu0 0.0
    %959 = vmatmul.mubr.f32.gmra.mrb[0].mxu0 %v890
    %v960 = vpop.f32.mrb[0].mxu0
    %v961 = vadd.f32 0.0, %v960
    %v962 = vpop.f32.mrb[0].mxu0
    %963 = vdwg.mxu0
    %v966 = vcombine.high %v416, %v416
    %v968 = vunpack.c.l.s4 1966171168
    %v969 = vunpack.c.0.s8 %v968
    %v970 = vlaneseq
    %v971 = vshrl.u32 %v970, 7
    %v972 = vsub.s32 %v969, %v971
    %v973 = vrot.slane %v416, %v972
    %v975 = vunpack.c.l.s4 1966171168
    %v976 = vunpack.c.0.s8 %v975
    %v977 = vlaneseq
    %v978 = vshrl.u32 %v977, 7
    %v979 = vsub.s32 %v976, %v978
    %v980 = vrot.slane %v966, %v979
    %v981 = vcombine.high %v973, %v973
    %v982 = vcombine.high %v980, %v980
    %v984 = vunpack.c.l.s4 1966171168
    %v985 = vunpack.c.0.s8 %v984
    %v986 = vlaneseq
    %v987 = vshrl.u32 %v986, 7
    %v988 = vsub.s32 %v985, %v987
    %v989 = vrot.slane %v973, %v988
    %v991 = vunpack.c.l.s4 1966171168
    %v992 = vunpack.c.0.s8 %v991
    %v993 = vlaneseq
    %v994 = vshrl.u32 %v993, 7
    %v995 = vsub.s32 %v992, %v994
    %v996 = vrot.slane %v980, %v995
    %v998 = vunpack.c.l.s4 1966171168
    %v999 = vunpack.c.0.s8 %v998
    %v1000 = vlaneseq
    %v1001 = vshrl.u32 %v1000, 7
    %v1002 = vsub.s32 %v999, %v1001
    %v1003 = vrot.slane %v981, %v1002
    %v1005 = vunpack.c.l.s4 1966171168
    %v1006 = vunpack.c.0.s8 %v1005
    %v1007 = vlaneseq
    %v1008 = vshrl.u32 %v1007, 7
    %v1009 = vsub.s32 %v1006, %v1008
    %v1010 = vrot.slane %v982, %v1009
    %v1011 = vcombine.high %v989, %v989
    %v1012 = vcombine.high %v996, %v996
    %v1013 = vcombine.high %v1003, %v1003
    %v1014 = vcombine.high %v1010, %v1010
    %v1015 = vcombine.high %v493, %v493
    %v1017 = vunpack.c.l.s4 1966171168
    %v1018 = vunpack.c.0.s8 %v1017
    %v1019 = vlaneseq
    %v1020 = vshrl.u32 %v1019, 7
    %v1021 = vsub.s32 %v1018, %v1020
    %v1022 = vrot.slane %v493, %v1021
    %v1024 = vunpack.c.l.s4 1966171168
    %v1025 = vunpack.c.0.s8 %v1024
    %v1026 = vlaneseq
    %v1027 = vshrl.u32 %v1026, 7
    %v1028 = vsub.s32 %v1025, %v1027
    %v1029 = vrot.slane %v1015, %v1028
    %v1030 = vcombine.high %v1022, %v1022
    %v1031 = vcombine.high %v1029, %v1029
    %v1033 = vunpack.c.l.s4 1966171168
    %v1034 = vunpack.c.0.s8 %v1033
    %v1035 = vlaneseq
    %v1036 = vshrl.u32 %v1035, 7
    %v1037 = vsub.s32 %v1034, %v1036
    %v1038 = vrot.slane %v1022, %v1037
    %v1040 = vunpack.c.l.s4 1966171168
    %v1041 = vunpack.c.0.s8 %v1040
    %v1042 = vlaneseq
    %v1043 = vshrl.u32 %v1042, 7
    %v1044 = vsub.s32 %v1041, %v1043
    %v1045 = vrot.slane %v1029, %v1044
    %v1047 = vunpack.c.l.s4 1966171168
    %v1048 = vunpack.c.0.s8 %v1047
    %v1049 = vlaneseq
    %v1050 = vshrl.u32 %v1049, 7
    %v1051 = vsub.s32 %v1048, %v1050
    %v1052 = vrot.slane %v1030, %v1051
    %v1054 = vunpack.c.l.s4 1966171168
    %v1055 = vunpack.c.0.s8 %v1054
    %v1056 = vlaneseq
    %v1057 = vshrl.u32 %v1056, 7
    %v1058 = vsub.s32 %v1055, %v1057
    %v1059 = vrot.slane %v1031, %v1058
    %v1060 = vcombine.high %v1038, %v1038
    %v1061 = vcombine.high %v1045, %v1045
    %v1062 = vcombine.high %v1052, %v1052
    %v1063 = vcombine.high %v1059, %v1059
    %v1082 = vcombine.high %v571, %v571
    %v1084 = vunpack.c.l.s4 1966171168
    %v1085 = vunpack.c.0.s8 %v1084
    %v1086 = vlaneseq
    %v1087 = vshrl.u32 %v1086, 7
    %v1088 = vsub.s32 %v1085, %v1087
    %v1089 = vrot.slane %v571, %v1088
    %v1091 = vunpack.c.l.s4 1966171168
    %v1092 = vunpack.c.0.s8 %v1091
    %v1093 = vlaneseq
    %v1094 = vshrl.u32 %v1093, 7
    %v1095 = vsub.s32 %v1092, %v1094
    %v1096 = vrot.slane %v1082, %v1095
    %v1097 = vcombine.high %v1089, %v1089
    %v1098 = vcombine.high %v1096, %v1096
    %v1100 = vunpack.c.l.s4 1966171168
    %v1101 = vunpack.c.0.s8 %v1100
    %v1102 = vlaneseq
    %v1103 = vshrl.u32 %v1102, 7
    %v1104 = vsub.s32 %v1101, %v1103
    %v1105 = vrot.slane %v1089, %v1104
    %v1107 = vunpack.c.l.s4 1966171168
    %v1108 = vunpack.c.0.s8 %v1107
    %v1109 = vlaneseq
    %v1110 = vshrl.u32 %v1109, 7
    %v1111 = vsub.s32 %v1108, %v1110
    %v1112 = vrot.slane %v1096, %v1111
    %v1114 = vunpack.c.l.s4 1966171168
    %v1115 = vunpack.c.0.s8 %v1114
    %v1116 = vlaneseq
    %v1117 = vshrl.u32 %v1116, 7
    %v1118 = vsub.s32 %v1115, %v1117
    %v1119 = vrot.slane %v1097, %v1118
    %v1121 = vunpack.c.l.s4 1966171168
    %v1122 = vunpack.c.0.s8 %v1121
    %v1123 = vlaneseq
    %v1124 = vshrl.u32 %v1123, 7
    %v1125 = vsub.s32 %v1122, %v1124
    %v1126 = vrot.slane %v1098, %v1125
    %v1127 = vcombine.high %v1105, %v1105
    %v1128 = vcombine.high %v1112, %v1112
    %v1129 = vcombine.high %v1119, %v1119
    %v1130 = vcombine.high %v1126, %v1126
    %v1131 = vcombine.high %v649, %v649
    %v1133 = vunpack.c.l.s4 1966171168
    %v1134 = vunpack.c.0.s8 %v1133
    %v1135 = vlaneseq
    %v1136 = vshrl.u32 %v1135, 7
    %v1137 = vsub.s32 %v1134, %v1136
    %v1138 = vrot.slane %v649, %v1137
    %v1140 = vunpack.c.l.s4 1966171168
    %v1141 = vunpack.c.0.s8 %v1140
    %v1142 = vlaneseq
    %v1143 = vshrl.u32 %v1142, 7
    %v1144 = vsub.s32 %v1141, %v1143
    %v1145 = vrot.slane %v1131, %v1144
    %v1146 = vcombine.high %v1138, %v1138
    %v1147 = vcombine.high %v1145, %v1145
    %v1149 = vunpack.c.l.s4 1966171168
    %v1150 = vunpack.c.0.s8 %v1149
    %v1151 = vlaneseq
    %v1152 = vshrl.u32 %v1151, 7
    %v1153 = vsub.s32 %v1150, %v1152
    %v1154 = vrot.slane %v1138, %v1153
    %v1156 = vunpack.c.l.s4 1966171168
    %v1157 = vunpack.c.0.s8 %v1156
    %v1158 = vlaneseq
    %v1159 = vshrl.u32 %v1158, 7
    %v1160 = vsub.s32 %v1157, %v1159
    %v1161 = vrot.slane %v1145, %v1160
    %v1163 = vunpack.c.l.s4 1966171168
    %v1164 = vunpack.c.0.s8 %v1163
    %v1165 = vlaneseq
    %v1166 = vshrl.u32 %v1165, 7
    %v1167 = vsub.s32 %v1164, %v1166
    %v1168 = vrot.slane %v1146, %v1167
    %v1170 = vunpack.c.l.s4 1966171168
    %v1171 = vunpack.c.0.s8 %v1170
    %v1172 = vlaneseq
    %v1173 = vshrl.u32 %v1172, 7
    %v1174 = vsub.s32 %v1171, %v1173
    %v1175 = vrot.slane %v1147, %v1174
    %v1176 = vcombine.high %v1154, %v1154
    %v1177 = vcombine.high %v1161, %v1161
    %v1178 = vcombine.high %v1168, %v1168
    %v1179 = vcombine.high %v1175, %v1175
    %v1182 = vcombine.high %v727, %v727
    %v1184 = vunpack.c.l.s4 1966171168
    %v1185 = vunpack.c.0.s8 %v1184
    %v1186 = vlaneseq
    %v1187 = vshrl.u32 %v1186, 7
    %v1188 = vsub.s32 %v1185, %v1187
    %v1189 = vrot.slane %v727, %v1188
    %v1191 = vunpack.c.l.s4 1966171168
    %v1192 = vunpack.c.0.s8 %v1191
    %v1193 = vlaneseq
    %v1194 = vshrl.u32 %v1193, 7
    %v1195 = vsub.s32 %v1192, %v1194
    %v1196 = vrot.slane %v1182, %v1195
    %v1197 = vcombine.high %v1189, %v1189
    %v1198 = vcombine.high %v1196, %v1196
    %v1200 = vunpack.c.l.s4 1966171168
    %v1201 = vunpack.c.0.s8 %v1200
    %v1202 = vlaneseq
    %v1203 = vshrl.u32 %v1202, 7
    %v1204 = vsub.s32 %v1201, %v1203
    %v1205 = vrot.slane %v1189, %v1204
    %v1207 = vunpack.c.l.s4 1966171168
    %v1208 = vunpack.c.0.s8 %v1207
    %v1209 = vlaneseq
    %v1210 = vshrl.u32 %v1209, 7
    %v1211 = vsub.s32 %v1208, %v1210
    %v1212 = vrot.slane %v1196, %v1211
    %v1214 = vunpack.c.l.s4 1966171168
    %v1215 = vunpack.c.0.s8 %v1214
    %v1216 = vlaneseq
    %v1217 = vshrl.u32 %v1216, 7
    %v1218 = vsub.s32 %v1215, %v1217
    %v1219 = vrot.slane %v1197, %v1218
    %v1221 = vunpack.c.l.s4 1966171168
    %v1222 = vunpack.c.0.s8 %v1221
    %v1223 = vlaneseq
    %v1224 = vshrl.u32 %v1223, 7
    %v1225 = vsub.s32 %v1222, %v1224
    %v1226 = vrot.slane %v1198, %v1225
    %v1227 = vcombine.high %v1205, %v1205
    %v1228 = vcombine.high %v1212, %v1212
    %v1229 = vcombine.high %v1219, %v1219
    %v1230 = vcombine.high %v1226, %v1226
    %v1231 = vcombine.high %v805, %v805
    %v1233 = vunpack.c.l.s4 1966171168
    %v1234 = vunpack.c.0.s8 %v1233
    %v1235 = vlaneseq
    %v1236 = vshrl.u32 %v1235, 7
    %v1237 = vsub.s32 %v1234, %v1236
    %v1238 = vrot.slane %v805, %v1237
    %v1240 = vunpack.c.l.s4 1966171168
    %v1241 = vunpack.c.0.s8 %v1240
    %v1242 = vlaneseq
    %v1243 = vshrl.u32 %v1242, 7
    %v1244 = vsub.s32 %v1241, %v1243
    %v1245 = vrot.slane %v1231, %v1244
    %v1246 = vcombine.high %v1238, %v1238
    %v1247 = vcombine.high %v1245, %v1245
    %v1249 = vunpack.c.l.s4 1966171168
    %v1250 = vunpack.c.0.s8 %v1249
    %v1251 = vlaneseq
    %v1252 = vshrl.u32 %v1251, 7
    %v1253 = vsub.s32 %v1250, %v1252
    %v1254 = vrot.slane %v1238, %v1253
    %v1256 = vunpack.c.l.s4 1966171168
    %v1257 = vunpack.c.0.s8 %v1256
    %v1258 = vlaneseq
    %v1259 = vshrl.u32 %v1258, 7
    %v1260 = vsub.s32 %v1257, %v1259
    %v1261 = vrot.slane %v1245, %v1260
    %v1263 = vunpack.c.l.s4 1966171168
    %v1264 = vunpack.c.0.s8 %v1263
    %v1265 = vlaneseq
    %v1266 = vshrl.u32 %v1265, 7
    %v1267 = vsub.s32 %v1264, %v1266
    %v1268 = vrot.slane %v1246, %v1267
    %v1270 = vunpack.c.l.s4 1966171168
    %v1271 = vunpack.c.0.s8 %v1270
    %v1272 = vlaneseq
    %v1273 = vshrl.u32 %v1272, 7
    %v1274 = vsub.s32 %v1271, %v1273
    %v1275 = vrot.slane %v1247, %v1274
    %v1276 = vcombine.high %v1254, %v1254
    %v1277 = vcombine.high %v1261, %v1261
    %v1278 = vcombine.high %v1268, %v1268
    %v1279 = vcombine.high %v1275, %v1275
    %v1282 = vcombine.high %v883, %v883
    %v1284 = vunpack.c.l.s4 1966171168
    %v1285 = vunpack.c.0.s8 %v1284
    %v1286 = vlaneseq
    %v1287 = vshrl.u32 %v1286, 7
    %v1288 = vsub.s32 %v1285, %v1287
    %v1289 = vrot.slane %v883, %v1288
    %v1291 = vunpack.c.l.s4 1966171168
    %v1292 = vunpack.c.0.s8 %v1291
    %v1293 = vlaneseq
    %v1294 = vshrl.u32 %v1293, 7
    %v1295 = vsub.s32 %v1292, %v1294
    %v1296 = vrot.slane %v1282, %v1295
    %v1297 = vcombine.high %v1289, %v1289
    %v1298 = vcombine.high %v1296, %v1296
    %v1300 = vunpack.c.l.s4 1966171168
    %v1301 = vunpack.c.0.s8 %v1300
    %v1302 = vlaneseq
    %v1303 = vshrl.u32 %v1302, 7
    %v1304 = vsub.s32 %v1301, %v1303
    %v1305 = vrot.slane %v1289, %v1304
    %v1307 = vunpack.c.l.s4 1966171168
    %v1308 = vunpack.c.0.s8 %v1307
    %v1309 = vlaneseq
    %v1310 = vshrl.u32 %v1309, 7
    %v1311 = vsub.s32 %v1308, %v1310
    %v1312 = vrot.slane %v1296, %v1311
    %v1314 = vunpack.c.l.s4 1966171168
    %v1315 = vunpack.c.0.s8 %v1314
    %v1316 = vlaneseq
    %v1317 = vshrl.u32 %v1316, 7
    %v1318 = vsub.s32 %v1315, %v1317
    %v1319 = vrot.slane %v1297, %v1318
    %v1321 = vunpack.c.l.s4 1966171168
    %v1322 = vunpack.c.0.s8 %v1321
    %v1323 = vlaneseq
    %v1324 = vshrl.u32 %v1323, 7
    %v1325 = vsub.s32 %v1322, %v1324
    %v1326 = vrot.slane %v1298, %v1325
    %v1327 = vcombine.high %v1305, %v1305
    %v1328 = vcombine.high %v1312, %v1312
    %v1329 = vcombine.high %v1319, %v1319
    %v1330 = vcombine.high %v1326, %v1326
    %v1331 = vcombine.high %v961, %v961
    %v1333 = vunpack.c.l.s4 1966171168
    %v1334 = vunpack.c.0.s8 %v1333
    %v1335 = vlaneseq
    %v1336 = vshrl.u32 %v1335, 7
    %v1337 = vsub.s32 %v1334, %v1336
    %v1338 = vrot.slane %v961, %v1337
    %v1340 = vunpack.c.l.s4 1966171168
    %v1341 = vunpack.c.0.s8 %v1340
    %v1342 = vlaneseq
    %v1343 = vshrl.u32 %v1342, 7
    %v1344 = vsub.s32 %v1341, %v1343
    %v1345 = vrot.slane %v1331, %v1344
    %v1346 = vcombine.high %v1338, %v1338
    %v1347 = vcombine.high %v1345, %v1345
    %v1349 = vunpack.c.l.s4 1966171168
    %v1350 = vunpack.c.0.s8 %v1349
    %v1351 = vlaneseq
    %v1352 = vshrl.u32 %v1351, 7
    %v1353 = vsub.s32 %v1350, %v1352
    %v1354 = vrot.slane %v1338, %v1353
    %v1356 = vunpack.c.l.s4 1966171168
    %v1357 = vunpack.c.0.s8 %v1356
    %v1358 = vlaneseq
    %v1359 = vshrl.u32 %v1358, 7
    %v1360 = vsub.s32 %v1357, %v1359
    %v1361 = vrot.slane %v1345, %v1360
    %v1363 = vunpack.c.l.s4 1966171168
    %v1364 = vunpack.c.0.s8 %v1363
    %v1365 = vlaneseq
    %v1366 = vshrl.u32 %v1365, 7
    %v1367 = vsub.s32 %v1364, %v1366
    %v1368 = vrot.slane %v1346, %v1367
    %v1370 = vunpack.c.l.s4 1966171168
    %v1371 = vunpack.c.0.s8 %v1370
    %v1372 = vlaneseq
    %v1373 = vshrl.u32 %v1372, 7
    %v1374 = vsub.s32 %v1371, %v1373
    %v1375 = vrot.slane %v1347, %v1374
    %v1376 = vcombine.high %v1354, %v1354
    %v1377 = vcombine.high %v1361, %v1361
    %v1378 = vcombine.high %v1368, %v1368
    %v1379 = vcombine.high %v1375, %v1375
    %v1380 = vlaneseq
    %v1381 = vshrl.u32 %v1380, 7
    %v1382 = vsub.s32 0, %v1381
    %v1383 = vrot.slane %v1105, %v1382
    %v1384 = vlaneseq
    %v1385 = vshrl.u32 %v1384, 7
    %v1386 = vsub.s32 0, %v1385
    %v1387 = vrot.slane %v1119, %v1386
    %v1388 = vlaneseq
    %v1389 = vshrl.u32 %v1388, 7
    %v1390 = vsub.s32 0, %v1389
    %v1391 = vrot.slane %v1127, %v1390
    %v1392 = vlaneseq
    %v1393 = vshrl.u32 %v1392, 7
    %v1394 = vsub.s32 0, %v1393
    %v1395 = vrot.slane %v1129, %v1394
    %v1396 = vlaneseq
    %v1397 = vshrl.u32 %v1396, 7
    %v1398 = vsub.s32 0, %v1397
    %v1399 = vrot.slane %v1112, %v1398
    %v1400 = vlaneseq
    %v1401 = vshrl.u32 %v1400, 7
    %v1402 = vsub.s32 0, %v1401
    %v1403 = vrot.slane %v1126, %v1402
    %v1404 = vlaneseq
    %v1405 = vshrl.u32 %v1404, 7
    %v1406 = vsub.s32 0, %v1405
    %v1407 = vrot.slane %v1128, %v1406
    %v1408 = vlaneseq
    %v1409 = vshrl.u32 %v1408, 7
    %v1410 = vsub.s32 0, %v1409
    %v1411 = vrot.slane %v1130, %v1410
    %v1412 = vlaneseq
    %v1413 = vshrl.u32 %v1412, 7
    %v1414 = vsub.s32 0, %v1413
    %v1415 = vrot.slane %v1154, %v1414
    %v1416 = vlaneseq
    %v1417 = vshrl.u32 %v1416, 7
    %v1418 = vsub.s32 0, %v1417
    %v1419 = vrot.slane %v1168, %v1418
    %v1420 = vlaneseq
    %v1421 = vshrl.u32 %v1420, 7
    %v1422 = vsub.s32 0, %v1421
    %v1423 = vrot.slane %v1176, %v1422
    %v1424 = vlaneseq
    %v1425 = vshrl.u32 %v1424, 7
    %v1426 = vsub.s32 0, %v1425
    %v1427 = vrot.slane %v1178, %v1426
    %v1428 = vlaneseq
    %v1429 = vshrl.u32 %v1428, 7
    %v1430 = vsub.s32 0, %v1429
    %v1431 = vrot.slane %v1161, %v1430
    %v1432 = vlaneseq
    %v1433 = vshrl.u32 %v1432, 7
    %v1434 = vsub.s32 0, %v1433
    %v1435 = vrot.slane %v1175, %v1434
    %v1436 = vlaneseq
    %v1437 = vshrl.u32 %v1436, 7
    %v1438 = vsub.s32 0, %v1437
    %v1439 = vrot.slane %v1177, %v1438
    %v1440 = vlaneseq
    %v1441 = vshrl.u32 %v1440, 7
    %v1442 = vsub.s32 0, %v1441
    %v1443 = vrot.slane %v1179, %v1442
    %v1460 = vlaneseq
    %v1461 = vshrl.u32 %v1460, 7
    %v1462 = vsub.s32 0, %v1461
    %v1463 = vrot.slane %v1205, %v1462
    %v1464 = vlaneseq
    %v1465 = vshrl.u32 %v1464, 7
    %v1466 = vsub.s32 0, %v1465
    %v1467 = vrot.slane %v1219, %v1466
    %v1468 = vlaneseq
    %v1469 = vshrl.u32 %v1468, 7
    %v1470 = vsub.s32 0, %v1469
    %v1471 = vrot.slane %v1227, %v1470
    %v1472 = vlaneseq
    %v1473 = vshrl.u32 %v1472, 7
    %v1474 = vsub.s32 0, %v1473
    %v1475 = vrot.slane %v1229, %v1474
    %v1476 = vlaneseq
    %v1477 = vshrl.u32 %v1476, 7
    %v1478 = vsub.s32 0, %v1477
    %v1479 = vrot.slane %v1212, %v1478
    %v1480 = vlaneseq
    %v1481 = vshrl.u32 %v1480, 7
    %v1482 = vsub.s32 0, %v1481
    %v1483 = vrot.slane %v1226, %v1482
    %v1484 = vlaneseq
    %v1485 = vshrl.u32 %v1484, 7
    %v1486 = vsub.s32 0, %v1485
    %v1487 = vrot.slane %v1228, %v1486
    %v1488 = vlaneseq
    %v1489 = vshrl.u32 %v1488, 7
    %v1490 = vsub.s32 0, %v1489
    %v1491 = vrot.slane %v1230, %v1490
    %v1492 = vlaneseq
    %v1493 = vshrl.u32 %v1492, 7
    %v1494 = vsub.s32 0, %v1493
    %v1495 = vrot.slane %v1254, %v1494
    %v1496 = vlaneseq
    %v1497 = vshrl.u32 %v1496, 7
    %v1498 = vsub.s32 0, %v1497
    %v1499 = vrot.slane %v1268, %v1498
    %v1500 = vlaneseq
    %v1501 = vshrl.u32 %v1500, 7
    %v1502 = vsub.s32 0, %v1501
    %v1503 = vrot.slane %v1276, %v1502
    %v1504 = vlaneseq
    %v1505 = vshrl.u32 %v1504, 7
    %v1506 = vsub.s32 0, %v1505
    %v1507 = vrot.slane %v1278, %v1506
    %v1508 = vlaneseq
    %v1509 = vshrl.u32 %v1508, 7
    %v1510 = vsub.s32 0, %v1509
    %v1511 = vrot.slane %v1261, %v1510
    %v1512 = vlaneseq
    %v1513 = vshrl.u32 %v1512, 7
    %v1514 = vsub.s32 0, %v1513
    %v1515 = vrot.slane %v1275, %v1514
    %v1516 = vlaneseq
    %v1517 = vshrl.u32 %v1516, 7
    %v1518 = vsub.s32 0, %v1517
    %v1519 = vrot.slane %v1277, %v1518
    %v1520 = vlaneseq
    %v1521 = vshrl.u32 %v1520, 7
    %v1522 = vsub.s32 0, %v1521
    %v1523 = vrot.slane %v1279, %v1522
    %v1540 = vlaneseq
    %v1541 = vshrl.u32 %v1540, 7
    %v1542 = vsub.s32 0, %v1541
    %v1543 = vrot.slane %v1305, %v1542
    %v1544 = vlaneseq
    %v1545 = vshrl.u32 %v1544, 7
    %v1546 = vsub.s32 0, %v1545
    %v1547 = vrot.slane %v1319, %v1546
    %v1548 = vlaneseq
    %v1549 = vshrl.u32 %v1548, 7
    %v1550 = vsub.s32 0, %v1549
    %v1551 = vrot.slane %v1327, %v1550
    %v1552 = vlaneseq
    %v1553 = vshrl.u32 %v1552, 7
    %v1554 = vsub.s32 0, %v1553
    %v1555 = vrot.slane %v1329, %v1554
    %v1556 = vlaneseq
    %v1557 = vshrl.u32 %v1556, 7
    %v1558 = vsub.s32 0, %v1557
    %v1559 = vrot.slane %v1312, %v1558
    %v1560 = vlaneseq
    %v1561 = vshrl.u32 %v1560, 7
    %v1562 = vsub.s32 0, %v1561
    %v1563 = vrot.slane %v1326, %v1562
    %v1564 = vlaneseq
    %v1565 = vshrl.u32 %v1564, 7
    %v1566 = vsub.s32 0, %v1565
    %v1567 = vrot.slane %v1328, %v1566
    %v1568 = vlaneseq
    %v1569 = vshrl.u32 %v1568, 7
    %v1570 = vsub.s32 0, %v1569
    %v1571 = vrot.slane %v1330, %v1570
    %v1572 = vlaneseq
    %v1573 = vshrl.u32 %v1572, 7
    %v1574 = vsub.s32 0, %v1573
    %v1575 = vrot.slane %v1354, %v1574
    %v1576 = vlaneseq
    %v1577 = vshrl.u32 %v1576, 7
    %v1578 = vsub.s32 0, %v1577
    %v1579 = vrot.slane %v1368, %v1578
    %v1580 = vlaneseq
    %v1581 = vshrl.u32 %v1580, 7
    %v1582 = vsub.s32 0, %v1581
    %v1583 = vrot.slane %v1376, %v1582
    %v1584 = vlaneseq
    %v1585 = vshrl.u32 %v1584, 7
    %v1586 = vsub.s32 0, %v1585
    %v1587 = vrot.slane %v1378, %v1586
    %v1588 = vlaneseq
    %v1589 = vshrl.u32 %v1588, 7
    %v1590 = vsub.s32 0, %v1589
    %v1591 = vrot.slane %v1361, %v1590
    %v1592 = vlaneseq
    %v1593 = vshrl.u32 %v1592, 7
    %v1594 = vsub.s32 0, %v1593
    %v1595 = vrot.slane %v1375, %v1594
    %v1596 = vlaneseq
    %v1597 = vshrl.u32 %v1596, 7
    %v1598 = vsub.s32 0, %v1597
    %v1599 = vrot.slane %v1377, %v1598
    %v1600 = vlaneseq
    %v1601 = vshrl.u32 %v1600, 7
    %v1602 = vsub.s32 0, %v1601
    %v1603 = vrot.slane %v1379, %v1602
    %vm1620 = vcmask 1040384
    %v1621 = vsel %vm1620, %v989, %v1383
    %v1622 = vsel %vm1620, %v1003, %v1387
    %v1623 = vsel %vm1620, %v1011, %v1391
    %v1624 = vsel %vm1620, %v1013, %v1395
    %v1625 = vsel %vm1620, %v996, %v1399
    %v1626 = vsel %vm1620, %v1010, %v1403
    %v1627 = vsel %vm1620, %v1012, %v1407
    %v1628 = vsel %vm1620, %v1014, %v1411
    %v1629 = vsel %vm1620, %v1038, %v1415
    %v1630 = vsel %vm1620, %v1052, %v1419
    %v1631 = vsel %vm1620, %v1060, %v1423
    %v1632 = vsel %vm1620, %v1062, %v1427
    %v1633 = vsel %vm1620, %v1045, %v1431
    %v1634 = vsel %vm1620, %v1059, %v1435
    %v1635 = vsel %vm1620, %v1061, %v1439
    %v1636 = vsel %vm1620, %v1063, %v1443
    %vm1637 = vcmask 1041408
    %v1638 = vsel %vm1637, %v1621, %v1463
    %v1639 = vsel %vm1637, %v1622, %v1467
    %v1640 = vsel %vm1637, %v1623, %v1471
    %v1641 = vsel %vm1637, %v1624, %v1475
    %v1642 = vsel %vm1637, %v1625, %v1479
    %v1643 = vsel %vm1637, %v1626, %v1483
    %v1644 = vsel %vm1637, %v1627, %v1487
    %v1645 = vsel %vm1637, %v1628, %v1491
    %v1646 = vsel %vm1637, %v1629, %v1495
    %v1647 = vsel %vm1637, %v1630, %v1499
    %v1648 = vsel %vm1637, %v1631, %v1503
    %v1649 = vsel %vm1637, %v1632, %v1507
    %v1650 = vsel %vm1637, %v1633, %v1511
    %v1651 = vsel %vm1637, %v1634, %v1515
    %v1652 = vsel %vm1637, %v1635, %v1519
    %v1653 = vsel %vm1637, %v1636, %v1523
    %vm1654 = vcmask 1042432
    %v1655 = vsel %vm1654, %v1638, %v1543
    %v1656 = vsel %vm1654, %v1639, %v1547
    %v1657 = vsel %vm1654, %v1640, %v1551
    %v1658 = vsel %vm1654, %v1641, %v1555
    %v1659 = vsel %vm1654, %v1642, %v1559
    %v1660 = vsel %vm1654, %v1643, %v1563
    %v1661 = vsel %vm1654, %v1644, %v1567
    %v1662 = vsel %vm1654, %v1645, %v1571
    %v1663 = vsel %vm1654, %v1646, %v1575
    %v1664 = vsel %vm1654, %v1647, %v1579
    %v1665 = vsel %vm1654, %v1648, %v1583
    %v1666 = vsel %vm1654, %v1649, %v1587
    %v1667 = vsel %vm1654, %v1650, %v1591
    %v1668 = vsel %vm1654, %v1651, %v1595
    %v1669 = vsel %vm1654, %v1652, %v1599
    %v1670 = vsel %vm1654, %v1653, %v1603
    %v1671 = vcombine.high %v333, %v333
    %v1673 = vunpack.c.l.s4 1966171168
    %v1674 = vunpack.c.0.s8 %v1673
    %v1675 = vlaneseq
    %v1676 = vshrl.u32 %v1675, 7
    %v1677 = vsub.s32 %v1674, %v1676
    %v1678 = vrot.slane %v333, %v1677
    %v1680 = vunpack.c.l.s4 1966171168
    %v1681 = vunpack.c.0.s8 %v1680
    %v1682 = vlaneseq
    %v1683 = vshrl.u32 %v1682, 7
    %v1684 = vsub.s32 %v1681, %v1683
    %v1685 = vrot.slane %v1671, %v1684
    %v1686 = vcombine.high %v1678, %v1678
    %v1687 = vcombine.high %v1685, %v1685
    %v1689 = vunpack.c.l.s4 1966171168
    %v1690 = vunpack.c.0.s8 %v1689
    %v1691 = vlaneseq
    %v1692 = vshrl.u32 %v1691, 7
    %v1693 = vsub.s32 %v1690, %v1692
    %v1694 = vrot.slane %v1678, %v1693
    %v1696 = vunpack.c.l.s4 1966171168
    %v1697 = vunpack.c.0.s8 %v1696
    %v1698 = vlaneseq
    %v1699 = vshrl.u32 %v1698, 7
    %v1700 = vsub.s32 %v1697, %v1699
    %v1701 = vrot.slane %v1685, %v1700
    %v1703 = vunpack.c.l.s4 1966171168
    %v1704 = vunpack.c.0.s8 %v1703
    %v1705 = vlaneseq
    %v1706 = vshrl.u32 %v1705, 7
    %v1707 = vsub.s32 %v1704, %v1706
    %v1708 = vrot.slane %v1686, %v1707
    %v1710 = vunpack.c.l.s4 1966171168
    %v1711 = vunpack.c.0.s8 %v1710
    %v1712 = vlaneseq
    %v1713 = vshrl.u32 %v1712, 7
    %v1714 = vsub.s32 %v1711, %v1713
    %v1715 = vrot.slane %v1687, %v1714
    %v1716 = vcombine.high %v1694, %v1694
    %v1717 = vcombine.high %v1701, %v1701
    %v1718 = vcombine.high %v1708, %v1708
    %v1719 = vcombine.high %v1715, %v1715
    %v1720 = vcombine.high %v338, %v338
    %v1722 = vunpack.c.l.s4 1966171168
    %v1723 = vunpack.c.0.s8 %v1722
    %v1724 = vlaneseq
    %v1725 = vshrl.u32 %v1724, 7
    %v1726 = vsub.s32 %v1723, %v1725
    %v1727 = vrot.slane %v338, %v1726
    %v1729 = vunpack.c.l.s4 1966171168
    %v1730 = vunpack.c.0.s8 %v1729
    %v1731 = vlaneseq
    %v1732 = vshrl.u32 %v1731, 7
    %v1733 = vsub.s32 %v1730, %v1732
    %v1734 = vrot.slane %v1720, %v1733
    %v1735 = vcombine.high %v1727, %v1727
    %v1736 = vcombine.high %v1734, %v1734
    %v1738 = vunpack.c.l.s4 1966171168
    %v1739 = vunpack.c.0.s8 %v1738
    %v1740 = vlaneseq
    %v1741 = vshrl.u32 %v1740, 7
    %v1742 = vsub.s32 %v1739, %v1741
    %v1743 = vrot.slane %v1727, %v1742
    %v1745 = vunpack.c.l.s4 1966171168
    %v1746 = vunpack.c.0.s8 %v1745
    %v1747 = vlaneseq
    %v1748 = vshrl.u32 %v1747, 7
    %v1749 = vsub.s32 %v1746, %v1748
    %v1750 = vrot.slane %v1734, %v1749
    %v1752 = vunpack.c.l.s4 1966171168
    %v1753 = vunpack.c.0.s8 %v1752
    %v1754 = vlaneseq
    %v1755 = vshrl.u32 %v1754, 7
    %v1756 = vsub.s32 %v1753, %v1755
    %v1757 = vrot.slane %v1735, %v1756
    %v1759 = vunpack.c.l.s4 1966171168
    %v1760 = vunpack.c.0.s8 %v1759
    %v1761 = vlaneseq
    %v1762 = vshrl.u32 %v1761, 7
    %v1763 = vsub.s32 %v1760, %v1762
    %v1764 = vrot.slane %v1736, %v1763
    %v1765 = vcombine.high %v1743, %v1743
    %v1766 = vcombine.high %v1750, %v1750
    %v1767 = vcombine.high %v1757, %v1757
    %v1768 = vcombine.high %v1764, %v1764
    %v1785 = vlaneseq
    %v1786 = vshrl.u32 %v1785, 7
    %v1787 = vsub.s32 0, %v1786
    %v1788 = vrot.slane %v1694, %v1787
    %v1789 = vlaneseq
    %v1790 = vshrl.u32 %v1789, 7
    %v1791 = vsub.s32 0, %v1790
    %v1792 = vrot.slane %v1708, %v1791
    %v1793 = vlaneseq
    %v1794 = vshrl.u32 %v1793, 7
    %v1795 = vsub.s32 0, %v1794
    %v1796 = vrot.slane %v1716, %v1795
    %v1797 = vlaneseq
    %v1798 = vshrl.u32 %v1797, 7
    %v1799 = vsub.s32 0, %v1798
    %v1800 = vrot.slane %v1718, %v1799
    %v1801 = vlaneseq
    %v1802 = vshrl.u32 %v1801, 7
    %v1803 = vsub.s32 0, %v1802
    %v1804 = vrot.slane %v1701, %v1803
    %v1805 = vlaneseq
    %v1806 = vshrl.u32 %v1805, 7
    %v1807 = vsub.s32 0, %v1806
    %v1808 = vrot.slane %v1715, %v1807
    %v1809 = vlaneseq
    %v1810 = vshrl.u32 %v1809, 7
    %v1811 = vsub.s32 0, %v1810
    %v1812 = vrot.slane %v1717, %v1811
    %v1813 = vlaneseq
    %v1814 = vshrl.u32 %v1813, 7
    %v1815 = vsub.s32 0, %v1814
    %v1816 = vrot.slane %v1719, %v1815
    %v1817 = vlaneseq
    %v1818 = vshrl.u32 %v1817, 7
    %v1819 = vsub.s32 0, %v1818
    %v1820 = vrot.slane %v1743, %v1819
    %v1821 = vlaneseq
    %v1822 = vshrl.u32 %v1821, 7
    %v1823 = vsub.s32 0, %v1822
    %v1824 = vrot.slane %v1757, %v1823
    %v1825 = vlaneseq
    %v1826 = vshrl.u32 %v1825, 7
    %v1827 = vsub.s32 0, %v1826
    %v1828 = vrot.slane %v1765, %v1827
    %v1829 = vlaneseq
    %v1830 = vshrl.u32 %v1829, 7
    %v1831 = vsub.s32 0, %v1830
    %v1832 = vrot.slane %v1767, %v1831
    %v1833 = vlaneseq
    %v1834 = vshrl.u32 %v1833, 7
    %v1835 = vsub.s32 0, %v1834
    %v1836 = vrot.slane %v1750, %v1835
    %v1837 = vlaneseq
    %v1838 = vshrl.u32 %v1837, 7
    %v1839 = vsub.s32 0, %v1838
    %v1840 = vrot.slane %v1764, %v1839
    %v1841 = vlaneseq
    %v1842 = vshrl.u32 %v1841, 7
    %v1843 = vsub.s32 0, %v1842
    %v1844 = vrot.slane %v1766, %v1843
    %v1845 = vlaneseq
    %v1846 = vshrl.u32 %v1845, 7
    %v1847 = vsub.s32 0, %v1846
    %v1848 = vrot.slane %v1768, %v1847
    %1849 = vrot.lane.b32.xlu0 %v1788, 121
    %v1850 = vpop.permute.xlu0 %1849
    %1851 = vrot.lane.b32.xlu0 %v1792, 121
    %v1852 = vpop.permute.xlu0 %1851
    %1853 = vrot.lane.b32.xlu0 %v1796, 121
    %v1854 = vpop.permute.xlu0 %1853
    %1855 = vrot.lane.b32.xlu0 %v1800, 121
    %v1856 = vpop.permute.xlu0 %1855
    %1857 = vrot.lane.b32.xlu0 %v1804, 121
    %v1858 = vpop.permute.xlu0 %1857
    %1859 = vrot.lane.b32.xlu0 %v1808, 121
    %v1860 = vpop.permute.xlu0 %1859
    %1861 = vrot.lane.b32.xlu0 %v1812, 121
    %v1862 = vpop.permute.xlu0 %1861
    %1863 = vrot.lane.b32.xlu0 %v1816, 121
    %v1864 = vpop.permute.xlu0 %1863
    %1865 = vrot.lane.b32.xlu0 %v1820, 121
    %v1866 = vpop.permute.xlu0 %1865
    %1867 = vrot.lane.b32.xlu0 %v1824, 121
    %v1868 = vpop.permute.xlu0 %1867
    %1869 = vrot.lane.b32.xlu0 %v1828, 121
    %v1870 = vpop.permute.xlu0 %1869
    %1871 = vrot.lane.b32.xlu0 %v1832, 121
    %v1872 = vpop.permute.xlu0 %1871
    %1873 = vrot.lane.b32.xlu0 %v1836, 121
    %v1874 = vpop.permute.xlu0 %1873
    %1875 = vrot.lane.b32.xlu0 %v1840, 121
    %v1876 = vpop.permute.xlu0 %1875
    %1877 = vrot.lane.b32.xlu0 %v1844, 121
    %v1878 = vpop.permute.xlu0 %1877
    %1879 = vrot.lane.b32.xlu0 %v1848, 121
    %v1880 = vpop.permute.xlu0 %1879
    %1897 = vrot.lane.b32.xlu0 %v1788, 114
    %v1898 = vpop.permute.xlu0 %1897
    %1899 = vrot.lane.b32.xlu0 %v1792, 114
    %v1900 = vpop.permute.xlu0 %1899
    %1901 = vrot.lane.b32.xlu0 %v1796, 114
    %v1902 = vpop.permute.xlu0 %1901
    %1903 = vrot.lane.b32.xlu0 %v1800, 114
    %v1904 = vpop.permute.xlu0 %1903
    %1905 = vrot.lane.b32.xlu0 %v1804, 114
    %v1906 = vpop.permute.xlu0 %1905
    %1907 = vrot.lane.b32.xlu0 %v1808, 114
    %v1908 = vpop.permute.xlu0 %1907
    %1909 = vrot.lane.b32.xlu0 %v1812, 114
    %v1910 = vpop.permute.xlu0 %1909
    %1911 = vrot.lane.b32.xlu0 %v1816, 114
    %v1912 = vpop.permute.xlu0 %1911
    %1913 = vrot.lane.b32.xlu0 %v1820, 114
    %v1914 = vpop.permute.xlu0 %1913
    %1915 = vrot.lane.b32.xlu0 %v1824, 114
    %v1916 = vpop.permute.xlu0 %1915
    %1917 = vrot.lane.b32.xlu0 %v1828, 114
    %v1918 = vpop.permute.xlu0 %1917
    %1919 = vrot.lane.b32.xlu0 %v1832, 114
    %v1920 = vpop.permute.xlu0 %1919
    %1921 = vrot.lane.b32.xlu0 %v1836, 114
    %v1922 = vpop.permute.xlu0 %1921
    %1923 = vrot.lane.b32.xlu0 %v1840, 114
    %v1924 = vpop.permute.xlu0 %1923
    %1925 = vrot.lane.b32.xlu0 %v1844, 114
    %v1926 = vpop.permute.xlu0 %1925
    %1927 = vrot.lane.b32.xlu0 %v1848, 114
    %v1928 = vpop.permute.xlu0 %1927
    %1945 = vrot.lane.b32.xlu0 %v1788, 107
    %v1946 = vpop.permute.xlu0 %1945
    %1947 = vrot.lane.b32.xlu0 %v1792, 107
    %v1948 = vpop.permute.xlu0 %1947
    %1949 = vrot.lane.b32.xlu0 %v1796, 107
    %v1950 = vpop.permute.xlu0 %1949
    %1951 = vrot.lane.b32.xlu0 %v1800, 107
    %v1952 = vpop.permute.xlu0 %1951
    %1953 = vrot.lane.b32.xlu0 %v1804, 107
    %v1954 = vpop.permute.xlu0 %1953
    %1955 = vrot.lane.b32.xlu0 %v1808, 107
    %v1956 = vpop.permute.xlu0 %1955
    %1957 = vrot.lane.b32.xlu0 %v1812, 107
    %v1958 = vpop.permute.xlu0 %1957
    %1959 = vrot.lane.b32.xlu0 %v1816, 107
    %v1960 = vpop.permute.xlu0 %1959
    %1961 = vrot.lane.b32.xlu0 %v1820, 107
    %v1962 = vpop.permute.xlu0 %1961
    %1963 = vrot.lane.b32.xlu0 %v1824, 107
    %v1964 = vpop.permute.xlu0 %1963
    %1965 = vrot.lane.b32.xlu0 %v1828, 107
    %v1966 = vpop.permute.xlu0 %1965
    %1967 = vrot.lane.b32.xlu0 %v1832, 107
    %v1968 = vpop.permute.xlu0 %1967
    %1969 = vrot.lane.b32.xlu0 %v1836, 107
    %v1970 = vpop.permute.xlu0 %1969
    %1971 = vrot.lane.b32.xlu0 %v1840, 107
    %v1972 = vpop.permute.xlu0 %1971
    %1973 = vrot.lane.b32.xlu0 %v1844, 107
    %v1974 = vpop.permute.xlu0 %1973
    %1975 = vrot.lane.b32.xlu0 %v1848, 107
    %v1976 = vpop.permute.xlu0 %1975
    %v1993 = vsel %vm1620, %v1694, %v1850
    %v1994 = vsel %vm1620, %v1708, %v1852
    %v1995 = vsel %vm1620, %v1716, %v1854
    %v1996 = vsel %vm1620, %v1718, %v1856
    %v1997 = vsel %vm1620, %v1701, %v1858
    %v1998 = vsel %vm1620, %v1715, %v1860
    %v1999 = vsel %vm1620, %v1717, %v1862
    %v2000 = vsel %vm1620, %v1719, %v1864
    %v2001 = vsel %vm1620, %v1743, %v1866
    %v2002 = vsel %vm1620, %v1757, %v1868
    %v2003 = vsel %vm1620, %v1765, %v1870
    %v2004 = vsel %vm1620, %v1767, %v1872
    %v2005 = vsel %vm1620, %v1750, %v1874
    %v2006 = vsel %vm1620, %v1764, %v1876
    %v2007 = vsel %vm1620, %v1766, %v1878
    %v2008 = vsel %vm1620, %v1768, %v1880
    %v2009 = vsel %vm1637, %v1993, %v1898
    %v2010 = vsel %vm1637, %v1994, %v1900
    %v2011 = vsel %vm1637, %v1995, %v1902
    %v2012 = vsel %vm1637, %v1996, %v1904
    %v2013 = vsel %vm1637, %v1997, %v1906
    %v2014 = vsel %vm1637, %v1998, %v1908
    %v2015 = vsel %vm1637, %v1999, %v1910
    %v2016 = vsel %vm1637, %v2000, %v1912
    %v2017 = vsel %vm1637, %v2001, %v1914
    %v2018 = vsel %vm1637, %v2002, %v1916
    %v2019 = vsel %vm1637, %v2003, %v1918
    %v2020 = vsel %vm1637, %v2004, %v1920
    %v2021 = vsel %vm1637, %v2005, %v1922
    %v2022 = vsel %vm1637, %v2006, %v1924
    %v2023 = vsel %vm1637, %v2007, %v1926
    %v2024 = vsel %vm1637, %v2008, %v1928
    %v2025 = vsel %vm1654, %v2009, %v1946
    %v2026 = vsel %vm1654, %v2010, %v1948
    %v2027 = vsel %vm1654, %v2011, %v1950
    %v2028 = vsel %vm1654, %v2012, %v1952
    %v2029 = vsel %vm1654, %v2013, %v1954
    %v2030 = vsel %vm1654, %v2014, %v1956
    %v2031 = vsel %vm1654, %v2015, %v1958
    %v2032 = vsel %vm1654, %v2016, %v1960
    %v2033 = vsel %vm1654, %v2017, %v1962
    %v2034 = vsel %vm1654, %v2018, %v1964
    %v2035 = vsel %vm1654, %v2019, %v1966
    %v2036 = vsel %vm1654, %v2020, %v1968
    %v2037 = vsel %vm1654, %v2021, %v1970
    %v2038 = vsel %vm1654, %v2022, %v1972
    %v2039 = vsel %vm1654, %v2023, %v1974
    %v2040 = vsel %vm1654, %v2024, %v1976
    %2042 = vrot.lane.b32.xlu0 %v2025, 32
    %v2043 = vpop.permute.xlu0 %2042
    %vm2044 = vcmask 56320
    %v2045 = vsel %vm2044, %v2043, 0
    %v2048 = vsel %vm2044, %v196, 0
    %2050 = vmatprep.subr.mxu0 0.0
    %2051 = vmatpush1.xpose.msra.mxu0 %v2048
    %2052 = vmatprep.subr.mxu0 0.0
    %2053 = vmatpush1.xpose.msra.mxu0 0.0
    %2054 = vmatprep.subr.mxu0 0.0
    %2055 = vmatpush1.xpose.msra.mxu0 0.0
    %2056 = vmatprep.subr.mxu0 0.0
    %2057 = vmatpush1.xpose.msra.mxu0 0.0
    %2058 = vmatprep.subr.mxu0 0.0
    %2059 = vmatpush1.xpose.msra.mxu0 0.0
    %2060 = vmatprep.subr.mxu0 0.0
    %2061 = vmatpush1.xpose.msra.mxu0 0.0
    %2062 = vmatprep.subr.mxu0 0.0
    %2063 = vmatpush1.xpose.msra.mxu0 0.0
    %2064 = vmatprep.subr.mxu0 0.0
    %2065 = vmatpush1.xpose.msra.mxu0 0.0
    %2066 = vmatprep.subr.mxu0 0.0
    %2067 = vmatpush1.xpose.msra.mxu0 0.0
    %2068 = vmatprep.subr.mxu0 0.0
    %2069 = vmatpush1.xpose.msra.mxu0 0.0
    %2070 = vmatprep.subr.mxu0 0.0
    %2071 = vmatpush1.xpose.msra.mxu0 0.0
    %2072 = vmatprep.subr.mxu0 0.0
    %2073 = vmatpush1.xpose.msra.mxu0 0.0
    %2074 = vmatprep.subr.mxu0 0.0
    %2075 = vmatpush1.xpose.msra.mxu0 0.0
    %2076 = vmatprep.subr.mxu0 0.0
    %2077 = vmatpush1.xpose.msra.mxu0 0.0
    %2078 = vmatprep.subr.mxu0 0.0
    %2079 = vmatpush1.xpose.msra.mxu0 0.0
    %2080 = vmatprep.subr.mxu0 0.0
    %2081 = vmatpush1.xpose.msra.mxu0 0.0
    %2082 = vmatprep.subr.mxu0 0.0
    %2083 = vmatpush1.xpose.msra.mxu0 0.0
    %2084 = vmatprep.subr.mxu0 0.0
    %2085 = vmatpush1.xpose.msra.mxu0 0.0
    %2086 = vmatprep.subr.mxu0 0.0
    %2087 = vmatpush1.xpose.msra.mxu0 0.0
    %2088 = vmatprep.subr.mxu0 0.0
    %2089 = vmatpush1.xpose.msra.mxu0 0.0
    %2090 = vmatprep.subr.mxu0 0.0
    %2091 = vmatpush1.xpose.msra.mxu0 0.0
    %2092 = vmatprep.subr.mxu0 0.0
    %2093 = vmatpush1.xpose.msra.mxu0 0.0
    %2094 = vmatprep.subr.mxu0 0.0
    %2095 = vmatpush1.xpose.msra.mxu0 0.0
    %2096 = vmatprep.subr.mxu0 0.0
    %2097 = vmatpush1.xpose.msra.mxu0 0.0
    %2098 = vmatprep.subr.mxu0 0.0
    %2099 = vmatpush1.xpose.msra.mxu0 0.0
    %2100 = vmatprep.subr.mxu0 0.0
    %2101 = vmatpush1.xpose.msra.mxu0 0.0
    %2102 = vmatprep.subr.mxu0 0.0
    %2103 = vmatpush1.xpose.msra.mxu0 0.0
    %2104 = vmatprep.subr.mxu0 0.0
    %2105 = vmatpush1.xpose.msra.mxu0 0.0
    %2106 = vmatprep.subr.mxu0 0.0
    %2107 = vmatpush1.xpose.msra.mxu0 0.0
    %2108 = vmatprep.subr.mxu0 0.0
    %2109 = vmatpush1.xpose.msra.mxu0 0.0
    %2110 = vmatprep.subr.mxu0 0.0
    %2111 = vmatpush1.xpose.msra.mxu0 0.0
    %2112 = vmatprep.subr.mxu0 0.0
    %2113 = vmatpush1.xpose.msra.mxu0 0.0
    %2114 = vmatprep.mubr.f32.mxu0 0.0
    %2115 = vmatmul.mubr.f32.gmra.mrb[0].mxu0 %v2045
    %v2116 = vpop.f32.mrb[0].mxu0
    %v2117 = vadd.f32 0.0, %v2116
    %v2118 = vpop.f32.mrb[0].mxu0
    %2119 = vdwg.mxu0
    %2121 = vrot.lane.b32.xlu0 %v2026, 32
    %v2122 = vpop.permute.xlu0 %2121
    %v2123 = vsel %vm2044, %v2122, 0
    %v2126 = vsel %vm2044, %v197, 0
    %2128 = vmatprep.subr.mxu0 0.0
    %2129 = vmatpush1.xpose.msra.mxu0 %v2126
    %2130 = vmatprep.subr.mxu0 0.0
    %2131 = vmatpush1.xpose.msra.mxu0 0.0
    %2132 = vmatprep.subr.mxu0 0.0
    %2133 = vmatpush1.xpose.msra.mxu0 0.0
    %2134 = vmatprep.subr.mxu0 0.0
    %2135 = vmatpush1.xpose.msra.mxu0 0.0
    %2136 = vmatprep.subr.mxu0 0.0
    %2137 = vmatpush1.xpose.msra.mxu0 0.0
    %2138 = vmatprep.subr.mxu0 0.0
    %2139 = vmatpush1.xpose.msra.mxu0 0.0
    %2140 = vmatprep.subr.mxu0 0.0
    %2141 = vmatpush1.xpose.msra.mxu0 0.0
    %2142 = vmatprep.subr.mxu0 0.0
    %2143 = vmatpush1.xpose.msra.mxu0 0.0
    %2144 = vmatprep.subr.mxu0 0.0
    %2145 = vmatpush1.xpose.msra.mxu0 0.0
    %2146 = vmatprep.subr.mxu0 0.0
    %2147 = vmatpush1.xpose.msra.mxu0 0.0
    %2148 = vmatprep.subr.mxu0 0.0
    %2149 = vmatpush1.xpose.msra.mxu0 0.0
    %2150 = vmatprep.subr.mxu0 0.0
    %2151 = vmatpush1.xpose.msra.mxu0 0.0
    %2152 = vmatprep.subr.mxu0 0.0
    %2153 = vmatpush1.xpose.msra.mxu0 0.0
    %2154 = vmatprep.subr.mxu0 0.0
    %2155 = vmatpush1.xpose.msra.mxu0 0.0
    %2156 = vmatprep.subr.mxu0 0.0
    %2157 = vmatpush1.xpose.msra.mxu0 0.0
    %2158 = vmatprep.subr.mxu0 0.0
    %2159 = vmatpush1.xpose.msra.mxu0 0.0
    %2160 = vmatprep.subr.mxu0 0.0
    %2161 = vmatpush1.xpose.msra.mxu0 0.0
    %2162 = vmatprep.subr.mxu0 0.0
    %2163 = vmatpush1.xpose.msra.mxu0 0.0
    %2164 = vmatprep.subr.mxu0 0.0
    %2165 = vmatpush1.xpose.msra.mxu0 0.0
    %2166 = vmatprep.subr.mxu0 0.0
    %2167 = vmatpush1.xpose.msra.mxu0 0.0
    %2168 = vmatprep.subr.mxu0 0.0
    %2169 = vmatpush1.xpose.msra.mxu0 0.0
    %2170 = vmatprep.subr.mxu0 0.0
    %2171 = vmatpush1.xpose.msra.mxu0 0.0
    %2172 = vmatprep.subr.mxu0 0.0
    %2173 = vmatpush1.xpose.msra.mxu0 0.0
    %2174 = vmatprep.subr.mxu0 0.0
    %2175 = vmatpush1.xpose.msra.mxu0 0.0
    %2176 = vmatprep.subr.mxu0 0.0
    %2177 = vmatpush1.xpose.msra.mxu0 0.0
    %2178 = vmatprep.subr.mxu0 0.0
    %2179 = vmatpush1.xpose.msra.mxu0 0.0
    %2180 = vmatprep.subr.mxu0 0.0
    %2181 = vmatpush1.xpose.msra.mxu0 0.0
    %2182 = vmatprep.subr.mxu0 0.0
    %2183 = vmatpush1.xpose.msra.mxu0 0.0
    %2184 = vmatprep.subr.mxu0 0.0
    %2185 = vmatpush1.xpose.msra.mxu0 0.0
    %2186 = vmatprep.subr.mxu0 0.0
    %2187 = vmatpush1.xpose.msra.mxu0 0.0
    %2188 = vmatprep.subr.mxu0 0.0
    %2189 = vmatpush1.xpose.msra.mxu0 0.0
    %2190 = vmatprep.subr.mxu0 0.0
    %2191 = vmatpush1.xpose.msra.mxu0 0.0
    %2192 = vmatprep.mubr.f32.mxu0 0.0
    %2193 = vmatmul.mubr.f32.gmra.mrb[0].mxu0 %v2123
    %v2194 = vpop.f32.mrb[0].mxu0
    %v2195 = vadd.f32 0.0, %v2194
    %v2196 = vpop.f32.mrb[0].mxu0
    %2197 = vdwg.mxu0
    %2199 = vrot.lane.b32.xlu0 %v2027, 32
    %v2200 = vpop.permute.xlu0 %2199
    %v2201 = vsel %vm2044, %v2200, 0
    %v2204 = vsel %vm2044, %v198, 0
    %2206 = vmatprep.subr.mxu0 0.0
    %2207 = vmatpush1.xpose.msra.mxu0 %v2204
    %2208 = vmatprep.subr.mxu0 0.0
    %2209 = vmatpush1.xpose.msra.mxu0 0.0
    %2210 = vmatprep.subr.mxu0 0.0
    %2211 = vmatpush1.xpose.msra.mxu0 0.0
    %2212 = vmatprep.subr.mxu0 0.0
    %2213 = vmatpush1.xpose.msra.mxu0 0.0
    %2214 = vmatprep.subr.mxu0 0.0
    %2215 = vmatpush1.xpose.msra.mxu0 0.0
    %2216 = vmatprep.subr.mxu0 0.0
    %2217 = vmatpush1.xpose.msra.mxu0 0.0
    %2218 = vmatprep.subr.mxu0 0.0
    %2219 = vmatpush1.xpose.msra.mxu0 0.0
    %2220 = vmatprep.subr.mxu0 0.0
    %2221 = vmatpush1.xpose.msra.mxu0 0.0
    %2222 = vmatprep.subr.mxu0 0.0
    %2223 = vmatpush1.xpose.msra.mxu0 0.0
    %2224 = vmatprep.subr.mxu0 0.0
    %2225 = vmatpush1.xpose.msra.mxu0 0.0
    %2226 = vmatprep.subr.mxu0 0.0
    %2227 = vmatpush1.xpose.msra.mxu0 0.0
    %2228 = vmatprep.subr.mxu0 0.0
    %2229 = vmatpush1.xpose.msra.mxu0 0.0
    %2230 = vmatprep.subr.mxu0 0.0
    %2231 = vmatpush1.xpose.msra.mxu0 0.0
    %2232 = vmatprep.subr.mxu0 0.0
    %2233 = vmatpush1.xpose.msra.mxu0 0.0
    %2234 = vmatprep.subr.mxu0 0.0
    %2235 = vmatpush1.xpose.msra.mxu0 0.0
    %2236 = vmatprep.subr.mxu0 0.0
    %2237 = vmatpush1.xpose.msra.mxu0 0.0
    %2238 = vmatprep.subr.mxu0 0.0
    %2239 = vmatpush1.xpose.msra.mxu0 0.0
    %2240 = vmatprep.subr.mxu0 0.0
    %2241 = vmatpush1.xpose.msra.mxu0 0.0
    %2242 = vmatprep.subr.mxu0 0.0
    %2243 = vmatpush1.xpose.msra.mxu0 0.0
    %2244 = vmatprep.subr.mxu0 0.0
    %2245 = vmatpush1.xpose.msra.mxu0 0.0
    %2246 = vmatprep.subr.mxu0 0.0
    %2247 = vmatpush1.xpose.msra.mxu0 0.0
    %2248 = vmatprep.subr.mxu0 0.0
    %2249 = vmatpush1.xpose.msra.mxu0 0.0
    %2250 = vmatprep.subr.mxu0 0.0
    %2251 = vmatpush1.xpose.msra.mxu0 0.0
    %2252 = vmatprep.subr.mxu0 0.0
    %2253 = vmatpush1.xpose.msra.mxu0 0.0
    %2254 = vmatprep.subr.mxu0 0.0
    %2255 = vmatpush1.xpose.msra.mxu0 0.0
    %2256 = vmatprep.subr.mxu0 0.0
    %2257 = vmatpush1.xpose.msra.mxu0 0.0
    %2258 = vmatprep.subr.mxu0 0.0
    %2259 = vmatpush1.xpose.msra.mxu0 0.0
    %2260 = vmatprep.subr.mxu0 0.0
    %2261 = vmatpush1.xpose.msra.mxu0 0.0
    %2262 = vmatprep.subr.mxu0 0.0
    %2263 = vmatpush1.xpose.msra.mxu0 0.0
    %2264 = vmatprep.subr.mxu0 0.0
    %2265 = vmatpush1.xpose.msra.mxu0 0.0
    %2266 = vmatprep.subr.mxu0 0.0
    %2267 = vmatpush1.xpose.msra.mxu0 0.0
    %2268 = vmatprep.subr.mxu0 0.0
    %2269 = vmatpush1.xpose.msra.mxu0 0.0
    %2270 = vmatprep.mubr.f32.mxu0 0.0
    %2271 = vmatmul.mubr.f32.gmra.mrb[0].mxu0 %v2201
    %v2272 = vpop.f32.mrb[0].mxu0
    %v2273 = vadd.f32 0.0, %v2272
    %v2274 = vpop.f32.mrb[0].mxu0
    %2275 = vdwg.mxu0
    %2277 = vrot.lane.b32.xlu0 %v2028, 32
    %v2278 = vpop.permute.xlu0 %2277
    %v2279 = vsel %vm2044, %v2278, 0
    %v2282 = vsel %vm2044, %v199, 0
    %2284 = vmatprep.subr.mxu0 0.0
    %2285 = vmatpush1.xpose.msra.mxu0 %v2282
    %2286 = vmatprep.subr.mxu0 0.0
    %2287 = vmatpush1.xpose.msra.mxu0 0.0
    %2288 = vmatprep.subr.mxu0 0.0
    %2289 = vmatpush1.xpose.msra.mxu0 0.0
    %2290 = vmatprep.subr.mxu0 0.0
    %2291 = vmatpush1.xpose.msra.mxu0 0.0
    %2292 = vmatprep.subr.mxu0 0.0
    %2293 = vmatpush1.xpose.msra.mxu0 0.0
    %2294 = vmatprep.subr.mxu0 0.0
    %2295 = vmatpush1.xpose.msra.mxu0 0.0
    %2296 = vmatprep.subr.mxu0 0.0
    %2297 = vmatpush1.xpose.msra.mxu0 0.0
    %2298 = vmatprep.subr.mxu0 0.0
    %2299 = vmatpush1.xpose.msra.mxu0 0.0
    %2300 = vmatprep.subr.mxu0 0.0
    %2301 = vmatpush1.xpose.msra.mxu0 0.0
    %2302 = vmatprep.subr.mxu0 0.0
    %2303 = vmatpush1.xpose.msra.mxu0 0.0
    %2304 = vmatprep.subr.mxu0 0.0
    %2305 = vmatpush1.xpose.msra.mxu0 0.0
    %2306 = vmatprep.subr.mxu0 0.0
    %2307 = vmatpush1.xpose.msra.mxu0 0.0
    %2308 = vmatprep.subr.mxu0 0.0
    %2309 = vmatpush1.xpose.msra.mxu0 0.0
    %2310 = vmatprep.subr.mxu0 0.0
    %2311 = vmatpush1.xpose.msra.mxu0 0.0
    %2312 = vmatprep.subr.mxu0 0.0
    %2313 = vmatpush1.xpose.msra.mxu0 0.0
    %2314 = vmatprep.subr.mxu0 0.0
    %2315 = vmatpush1.xpose.msra.mxu0 0.0
    %2316 = vmatprep.subr.mxu0 0.0
    %2317 = vmatpush1.xpose.msra.mxu0 0.0
    %2318 = vmatprep.subr.mxu0 0.0
    %2319 = vmatpush1.xpose.msra.mxu0 0.0
    %2320 = vmatprep.subr.mxu0 0.0
    %2321 = vmatpush1.xpose.msra.mxu0 0.0
    %2322 = vmatprep.subr.mxu0 0.0
    %2323 = vmatpush1.xpose.msra.mxu0 0.0
    %2324 = vmatprep.subr.mxu0 0.0
    %2325 = vmatpush1.xpose.msra.mxu0 0.0
    %2326 = vmatprep.subr.mxu0 0.0
    %2327 = vmatpush1.xpose.msra.mxu0 0.0
    %2328 = vmatprep.subr.mxu0 0.0
    %2329 = vmatpush1.xpose.msra.mxu0 0.0
    %2330 = vmatprep.subr.mxu0 0.0
    %2331 = vmatpush1.xpose.msra.mxu0 0.0
    %2332 = vmatprep.subr.mxu0 0.0
    %2333 = vmatpush1.xpose.msra.mxu0 0.0
    %2334 = vmatprep.subr.mxu0 0.0
    %2335 = vmatpush1.xpose.msra.mxu0 0.0
    %2336 = vmatprep.subr.mxu0 0.0
    %2337 = vmatpush1.xpose.msra.mxu0 0.0
    %2338 = vmatprep.subr.mxu0 0.0
    %2339 = vmatpush1.xpose.msra.mxu0 0.0
    %2340 = vmatprep.subr.mxu0 0.0
    %2341 = vmatpush1.xpose.msra.mxu0 0.0
    %2342 = vmatprep.subr.mxu0 0.0
    %2343 = vmatpush1.xpose.msra.mxu0 0.0
    %2344 = vmatprep.subr.mxu0 0.0
    %2345 = vmatpush1.xpose.msra.mxu0 0.0
    %2346 = vmatprep.subr.mxu0 0.0
    %2347 = vmatpush1.xpose.msra.mxu0 0.0
    %2348 = vmatprep.mubr.f32.mxu0 0.0
    %2349 = vmatmul.mubr.f32.gmra.mrb[0].mxu0 %v2279
    %v2350 = vpop.f32.mrb[0].mxu0
    %v2351 = vadd.f32 0.0, %v2350
    %v2352 = vpop.f32.mrb[0].mxu0
    %2353 = vdwg.mxu0
    %2355 = vrot.lane.b32.xlu0 %v2029, 32
    %v2356 = vpop.permute.xlu0 %2355
    %v2357 = vsel %vm2044, %v2356, 0
    %v2360 = vsel %vm2044, %v200, 0
    %2362 = vmatprep.subr.mxu0 0.0
    %2363 = vmatpush1.xpose.msra.mxu0 %v2360
    %2364 = vmatprep.subr.mxu0 0.0
    %2365 = vmatpush1.xpose.msra.mxu0 0.0
    %2366 = vmatprep.subr.mxu0 0.0
    %2367 = vmatpush1.xpose.msra.mxu0 0.0
    %2368 = vmatprep.subr.mxu0 0.0
    %2369 = vmatpush1.xpose.msra.mxu0 0.0
    %2370 = vmatprep.subr.mxu0 0.0
    %2371 = vmatpush1.xpose.msra.mxu0 0.0
    %2372 = vmatprep.subr.mxu0 0.0
    %2373 = vmatpush1.xpose.msra.mxu0 0.0
    %2374 = vmatprep.subr.mxu0 0.0
    %2375 = vmatpush1.xpose.msra.mxu0 0.0
    %2376 = vmatprep.subr.mxu0 0.0
    %2377 = vmatpush1.xpose.msra.mxu0 0.0
    %2378 = vmatprep.subr.mxu0 0.0
    %2379 = vmatpush1.xpose.msra.mxu0 0.0
    %2380 = vmatprep.subr.mxu0 0.0
    %2381 = vmatpush1.xpose.msra.mxu0 0.0
    %2382 = vmatprep.subr.mxu0 0.0
    %2383 = vmatpush1.xpose.msra.mxu0 0.0
    %2384 = vmatprep.subr.mxu0 0.0
    %2385 = vmatpush1.xpose.msra.mxu0 0.0
    %2386 = vmatprep.subr.mxu0 0.0
    %2387 = vmatpush1.xpose.msra.mxu0 0.0
    %2388 = vmatprep.subr.mxu0 0.0
    %2389 = vmatpush1.xpose.msra.mxu0 0.0
    %2390 = vmatprep.subr.mxu0 0.0
    %2391 = vmatpush1.xpose.msra.mxu0 0.0
    %2392 = vmatprep.subr.mxu0 0.0
    %2393 = vmatpush1.xpose.msra.mxu0 0.0
    %2394 = vmatprep.subr.mxu0 0.0
    %2395 = vmatpush1.xpose.msra.mxu0 0.0
    %2396 = vmatprep.subr.mxu0 0.0
    %2397 = vmatpush1.xpose.msra.mxu0 0.0
    %2398 = vmatprep.subr.mxu0 0.0
    %2399 = vmatpush1.xpose.msra.mxu0 0.0
    %2400 = vmatprep.subr.mxu0 0.0
    %2401 = vmatpush1.xpose.msra.mxu0 0.0
    %2402 = vmatprep.subr.mxu0 0.0
    %2403 = vmatpush1.xpose.msra.mxu0 0.0
    %2404 = vmatprep.subr.mxu0 0.0
    %2405 = vmatpush1.xpose.msra.mxu0 0.0
    %2406 = vmatprep.subr.mxu0 0.0
    %2407 = vmatpush1.xpose.msra.mxu0 0.0
    %2408 = vmatprep.subr.mxu0 0.0
    %2409 = vmatpush1.xpose.msra.mxu0 0.0
    %2410 = vmatprep.subr.mxu0 0.0
    %2411 = vmatpush1.xpose.msra.mxu0 0.0
    %2412 = vmatprep.subr.mxu0 0.0
    %2413 = vmatpush1.xpose.msra.mxu0 0.0
    %2414 = vmatprep.subr.mxu0 0.0
    %2415 = vmatpush1.xpose.msra.mxu0 0.0
    %2416 = vmatprep.subr.mxu0 0.0
    %2417 = vmatpush1.xpose.msra.mxu0 0.0
    %2418 = vmatprep.subr.mxu0 0.0
    %2419 = vmatpush1.xpose.msra.mxu0 0.0
    %2420 = vmatprep.subr.mxu0 0.0
    %2421 = vmatpush1.xpose.msra.mxu0 0.0
    %2422 = vmatprep.subr.mxu0 0.0
    %2423 = vmatpush1.xpose.msra.mxu0 0.0
    %2424 = vmatprep.subr.mxu0 0.0
    %2425 = vmatpush1.xpose.msra.mxu0 0.0
    %2426 = vmatprep.mubr.f32.mxu0 0.0
    %2427 = vmatmul.mubr.f32.gmra.mrb[0].mxu0 %v2357
    %v2428 = vpop.f32.mrb[0].mxu0
    %v2429 = vadd.f32 0.0, %v2428
    %v2430 = vpop.f32.mrb[0].mxu0
    %2431 = vdwg.mxu0
    %2433 = vrot.lane.b32.xlu0 %v2030, 32
    %v2434 = vpop.permute.xlu0 %2433
    %v2435 = vsel %vm2044, %v2434, 0
    %v2438 = vsel %vm2044, %v201, 0
    %2440 = vmatprep.subr.mxu0 0.0
    %2441 = vmatpush1.xpose.msra.mxu0 %v2438
    %2442 = vmatprep.subr.mxu0 0.0
    %2443 = vmatpush1.xpose.msra.mxu0 0.0
    %2444 = vmatprep.subr.mxu0 0.0
    %2445 = vmatpush1.xpose.msra.mxu0 0.0
    %2446 = vmatprep.subr.mxu0 0.0
    %2447 = vmatpush1.xpose.msra.mxu0 0.0
    %2448 = vmatprep.subr.mxu0 0.0
    %2449 = vmatpush1.xpose.msra.mxu0 0.0
    %2450 = vmatprep.subr.mxu0 0.0
    %2451 = vmatpush1.xpose.msra.mxu0 0.0
    %2452 = vmatprep.subr.mxu0 0.0
    %2453 = vmatpush1.xpose.msra.mxu0 0.0
    %2454 = vmatprep.subr.mxu0 0.0
    %2455 = vmatpush1.xpose.msra.mxu0 0.0
    %2456 = vmatprep.subr.mxu0 0.0
    %2457 = vmatpush1.xpose.msra.mxu0 0.0
    %2458 = vmatprep.subr.mxu0 0.0
    %2459 = vmatpush1.xpose.msra.mxu0 0.0
    %2460 = vmatprep.subr.mxu0 0.0
    %2461 = vmatpush1.xpose.msra.mxu0 0.0
    %2462 = vmatprep.subr.mxu0 0.0
    %2463 = vmatpush1.xpose.msra.mxu0 0.0
    %2464 = vmatprep.subr.mxu0 0.0
    %2465 = vmatpush1.xpose.msra.mxu0 0.0
    %2466 = vmatprep.subr.mxu0 0.0
    %2467 = vmatpush1.xpose.msra.mxu0 0.0
    %2468 = vmatprep.subr.mxu0 0.0
    %2469 = vmatpush1.xpose.msra.mxu0 0.0
    %2470 = vmatprep.subr.mxu0 0.0
    %2471 = vmatpush1.xpose.msra.mxu0 0.0
    %2472 = vmatprep.subr.mxu0 0.0
    %2473 = vmatpush1.xpose.msra.mxu0 0.0
    %2474 = vmatprep.subr.mxu0 0.0
    %2475 = vmatpush1.xpose.msra.mxu0 0.0
    %2476 = vmatprep.subr.mxu0 0.0
    %2477 = vmatpush1.xpose.msra.mxu0 0.0
    %2478 = vmatprep.subr.mxu0 0.0
    %2479 = vmatpush1.xpose.msra.mxu0 0.0
    %2480 = vmatprep.subr.mxu0 0.0
    %2481 = vmatpush1.xpose.msra.mxu0 0.0
    %2482 = vmatprep.subr.mxu0 0.0
    %2483 = vmatpush1.xpose.msra.mxu0 0.0
    %2484 = vmatprep.subr.mxu0 0.0
    %2485 = vmatpush1.xpose.msra.mxu0 0.0
    %2486 = vmatprep.subr.mxu0 0.0
    %2487 = vmatpush1.xpose.msra.mxu0 0.0
    %2488 = vmatprep.subr.mxu0 0.0
    %2489 = vmatpush1.xpose.msra.mxu0 0.0
    %2490 = vmatprep.subr.mxu0 0.0
    %2491 = vmatpush1.xpose.msra.mxu0 0.0
    %2492 = vmatprep.subr.mxu0 0.0
    %2493 = vmatpush1.xpose.msra.mxu0 0.0
    %2494 = vmatprep.subr.mxu0 0.0
    %2495 = vmatpush1.xpose.msra.mxu0 0.0
    %2496 = vmatprep.subr.mxu0 0.0
    %2497 = vmatpush1.xpose.msra.mxu0 0.0
    %2498 = vmatprep.subr.mxu0 0.0
    %2499 = vmatpush1.xpose.msra.mxu0 0.0
    %2500 = vmatprep.subr.mxu0 0.0
    %2501 = vmatpush1.xpose.msra.mxu0 0.0
    %2502 = vmatprep.subr.mxu0 0.0
    %2503 = vmatpush1.xpose.msra.mxu0 0.0
    %2504 = vmatprep.mubr.f32.mxu0 0.0
    %2505 = vmatmul.mubr.f32.gmra.mrb[0].mxu0 %v2435
    %v2506 = vpop.f32.mrb[0].mxu0
    %v2507 = vadd.f32 0.0, %v2506
    %v2508 = vpop.f32.mrb[0].mxu0
    %2509 = vdwg.mxu0
    %2511 = vrot.lane.b32.xlu0 %v2031, 32
    %v2512 = vpop.permute.xlu0 %2511
    %v2513 = vsel %vm2044, %v2512, 0
    %v2516 = vsel %vm2044, %v202, 0
    %2518 = vmatprep.subr.mxu0 0.0
    %2519 = vmatpush1.xpose.msra.mxu0 %v2516
    %2520 = vmatprep.subr.mxu0 0.0
    %2521 = vmatpush1.xpose.msra.mxu0 0.0
    %2522 = vmatprep.subr.mxu0 0.0
    %2523 = vmatpush1.xpose.msra.mxu0 0.0
    %2524 = vmatprep.subr.mxu0 0.0
    %2525 = vmatpush1.xpose.msra.mxu0 0.0
    %2526 = vmatprep.subr.mxu0 0.0
    %2527 = vmatpush1.xpose.msra.mxu0 0.0
    %2528 = vmatprep.subr.mxu0 0.0
    %2529 = vmatpush1.xpose.msra.mxu0 0.0
    %2530 = vmatprep.subr.mxu0 0.0
    %2531 = vmatpush1.xpose.msra.mxu0 0.0
    %2532 = vmatprep.subr.mxu0 0.0
    %2533 = vmatpush1.xpose.msra.mxu0 0.0
    %2534 = vmatprep.subr.mxu0 0.0
    %2535 = vmatpush1.xpose.msra.mxu0 0.0
    %2536 = vmatprep.subr.mxu0 0.0
    %2537 = vmatpush1.xpose.msra.mxu0 0.0
    %2538 = vmatprep.subr.mxu0 0.0
    %2539 = vmatpush1.xpose.msra.mxu0 0.0
    %2540 = vmatprep.subr.mxu0 0.0
    %2541 = vmatpush1.xpose.msra.mxu0 0.0
    %2542 = vmatprep.subr.mxu0 0.0
    %2543 = vmatpush1.xpose.msra.mxu0 0.0
    %2544 = vmatprep.subr.mxu0 0.0
    %2545 = vmatpush1.xpose.msra.mxu0 0.0
    %2546 = vmatprep.subr.mxu0 0.0
    %2547 = vmatpush1.xpose.msra.mxu0 0.0
    %2548 = vmatprep.subr.mxu0 0.0
    %2549 = vmatpush1.xpose.msra.mxu0 0.0
    %2550 = vmatprep.subr.mxu0 0.0
    %2551 = vmatpush1.xpose.msra.mxu0 0.0
    %2552 = vmatprep.subr.mxu0 0.0
    %2553 = vmatpush1.xpose.msra.mxu0 0.0
    %2554 = vmatprep.subr.mxu0 0.0
    %2555 = vmatpush1.xpose.msra.mxu0 0.0
    %2556 = vmatprep.subr.mxu0 0.0
    %2557 = vmatpush1.xpose.msra.mxu0 0.0
    %2558 = vmatprep.subr.mxu0 0.0
    %2559 = vmatpush1.xpose.msra.mxu0 0.0
    %2560 = vmatprep.subr.mxu0 0.0
    %2561 = vmatpush1.xpose.msra.mxu0 0.0
    %2562 = vmatprep.subr.mxu0 0.0
    %2563 = vmatpush1.xpose.msra.mxu0 0.0
    %2564 = vmatprep.subr.mxu0 0.0
    %2565 = vmatpush1.xpose.msra.mxu0 0.0
    %2566 = vmatprep.subr.mxu0 0.0
    %2567 = vmatpush1.xpose.msra.mxu0 0.0
    %2568 = vmatprep.subr.mxu0 0.0
    %2569 = vmatpush1.xpose.msra.mxu0 0.0
    %2570 = vmatprep.subr.mxu0 0.0
    %2571 = vmatpush1.xpose.msra.mxu0 0.0
    %2572 = vmatprep.subr.mxu0 0.0
    %2573 = vmatpush1.xpose.msra.mxu0 0.0
    %2574 = vmatprep.subr.mxu0 0.0
    %2575 = vmatpush1.xpose.msra.mxu0 0.0
    %2576 = vmatprep.subr.mxu0 0.0
    %2577 = vmatpush1.xpose.msra.mxu0 0.0
    %2578 = vmatprep.subr.mxu0 0.0
    %2579 = vmatpush1.xpose.msra.mxu0 0.0
    %2580 = vmatprep.subr.mxu0 0.0
    %2581 = vmatpush1.xpose.msra.mxu0 0.0
    %2582 = vmatprep.mubr.f32.mxu0 0.0
    %2583 = vmatmul.mubr.f32.gmra.mrb[0].mxu0 %v2513
    %v2584 = vpop.f32.mrb[0].mxu0
    %v2585 = vadd.f32 0.0, %v2584
    %v2586 = vpop.f32.mrb[0].mxu0
    %2587 = vdwg.mxu0
    %2589 = vrot.lane.b32.xlu0 %v2032, 32
    %v2590 = vpop.permute.xlu0 %2589
    %v2591 = vsel %vm2044, %v2590, 0
    %v2594 = vsel %vm2044, %v203, 0
    %2596 = vmatprep.subr.mxu0 0.0
    %2597 = vmatpush1.xpose.msra.mxu0 %v2594
    %2598 = vmatprep.subr.mxu0 0.0
    %2599 = vmatpush1.xpose.msra.mxu0 0.0
    %2600 = vmatprep.subr.mxu0 0.0
    %2601 = vmatpush1.xpose.msra.mxu0 0.0
    %2602 = vmatprep.subr.mxu0 0.0
    %2603 = vmatpush1.xpose.msra.mxu0 0.0
    %2604 = vmatprep.subr.mxu0 0.0
    %2605 = vmatpush1.xpose.msra.mxu0 0.0
    %2606 = vmatprep.subr.mxu0 0.0
    %2607 = vmatpush1.xpose.msra.mxu0 0.0
    %2608 = vmatprep.subr.mxu0 0.0
    %2609 = vmatpush1.xpose.msra.mxu0 0.0
    %2610 = vmatprep.subr.mxu0 0.0
    %2611 = vmatpush1.xpose.msra.mxu0 0.0
    %2612 = vmatprep.subr.mxu0 0.0
    %2613 = vmatpush1.xpose.msra.mxu0 0.0
    %2614 = vmatprep.subr.mxu0 0.0
    %2615 = vmatpush1.xpose.msra.mxu0 0.0
    %2616 = vmatprep.subr.mxu0 0.0
    %2617 = vmatpush1.xpose.msra.mxu0 0.0
    %2618 = vmatprep.subr.mxu0 0.0
    %2619 = vmatpush1.xpose.msra.mxu0 0.0
    %2620 = vmatprep.subr.mxu0 0.0
    %2621 = vmatpush1.xpose.msra.mxu0 0.0
    %2622 = vmatprep.subr.mxu0 0.0
    %2623 = vmatpush1.xpose.msra.mxu0 0.0
    %2624 = vmatprep.subr.mxu0 0.0
    %2625 = vmatpush1.xpose.msra.mxu0 0.0
    %2626 = vmatprep.subr.mxu0 0.0
    %2627 = vmatpush1.xpose.msra.mxu0 0.0
    %2628 = vmatprep.subr.mxu0 0.0
    %2629 = vmatpush1.xpose.msra.mxu0 0.0
    %2630 = vmatprep.subr.mxu0 0.0
    %2631 = vmatpush1.xpose.msra.mxu0 0.0
    %2632 = vmatprep.subr.mxu0 0.0
    %2633 = vmatpush1.xpose.msra.mxu0 0.0
    %2634 = vmatprep.subr.mxu0 0.0
    %2635 = vmatpush1.xpose.msra.mxu0 0.0
    %2636 = vmatprep.subr.mxu0 0.0
    %2637 = vmatpush1.xpose.msra.mxu0 0.0
    %2638 = vmatprep.subr.mxu0 0.0
    %2639 = vmatpush1.xpose.msra.mxu0 0.0
    %2640 = vmatprep.subr.mxu0 0.0
    %2641 = vmatpush1.xpose.msra.mxu0 0.0
    %2642 = vmatprep.subr.mxu0 0.0
    %2643 = vmatpush1.xpose.msra.mxu0 0.0
    %2644 = vmatprep.subr.mxu0 0.0
    %2645 = vmatpush1.xpose.msra.mxu0 0.0
    %2646 = vmatprep.subr.mxu0 0.0
    %2647 = vmatpush1.xpose.msra.mxu0 0.0
    %2648 = vmatprep.subr.mxu0 0.0
    %2649 = vmatpush1.xpose.msra.mxu0 0.0
    %2650 = vmatprep.subr.mxu0 0.0
    %2651 = vmatpush1.xpose.msra.mxu0 0.0
    %2652 = vmatprep.subr.mxu0 0.0
    %2653 = vmatpush1.xpose.msra.mxu0 0.0
    %2654 = vmatprep.subr.mxu0 0.0
    %2655 = vmatpush1.xpose.msra.mxu0 0.0
    %2656 = vmatprep.subr.mxu0 0.0
    %2657 = vmatpush1.xpose.msra.mxu0 0.0
    %2658 = vmatprep.subr.mxu0 0.0
    %2659 = vmatpush1.xpose.msra.mxu0 0.0
    %2660 = vmatprep.mubr.f32.mxu0 0.0
    %2661 = vmatmul.mubr.f32.gmra.mrb[0].mxu0 %v2591
    %v2662 = vpop.f32.mrb[0].mxu0
    %v2663 = vadd.f32 0.0, %v2662
    %v2664 = vpop.f32.mrb[0].mxu0
    %2665 = vdwg.mxu0
    %2667 = vrot.lane.b32.xlu0 %v2033, 32
    %v2668 = vpop.permute.xlu0 %2667
    %v2669 = vsel %vm2044, %v2668, 0
    %v2672 = vsel %vm2044, %v204, 0
    %2674 = vmatprep.subr.mxu0 0.0
    %2675 = vmatpush1.xpose.msra.mxu0 %v2672
    %2676 = vmatprep.subr.mxu0 0.0
    %2677 = vmatpush1.xpose.msra.mxu0 0.0
    %2678 = vmatprep.subr.mxu0 0.0
    %2679 = vmatpush1.xpose.msra.mxu0 0.0
    %2680 = vmatprep.subr.mxu0 0.0
    %2681 = vmatpush1.xpose.msra.mxu0 0.0
    %2682 = vmatprep.subr.mxu0 0.0
    %2683 = vmatpush1.xpose.msra.mxu0 0.0
    %2684 = vmatprep.subr.mxu0 0.0
    %2685 = vmatpush1.xpose.msra.mxu0 0.0
    %2686 = vmatprep.subr.mxu0 0.0
    %2687 = vmatpush1.xpose.msra.mxu0 0.0
    %2688 = vmatprep.subr.mxu0 0.0
    %2689 = vmatpush1.xpose.msra.mxu0 0.0
    %2690 = vmatprep.subr.mxu0 0.0
    %2691 = vmatpush1.xpose.msra.mxu0 0.0
    %2692 = vmatprep.subr.mxu0 0.0
    %2693 = vmatpush1.xpose.msra.mxu0 0.0
    %2694 = vmatprep.subr.mxu0 0.0
    %2695 = vmatpush1.xpose.msra.mxu0 0.0
    %2696 = vmatprep.subr.mxu0 0.0
    %2697 = vmatpush1.xpose.msra.mxu0 0.0
    %2698 = vmatprep.subr.mxu0 0.0
    %2699 = vmatpush1.xpose.msra.mxu0 0.0
    %2700 = vmatprep.subr.mxu0 0.0
    %2701 = vmatpush1.xpose.msra.mxu0 0.0
    %2702 = vmatprep.subr.mxu0 0.0
    %2703 = vmatpush1.xpose.msra.mxu0 0.0
    %2704 = vmatprep.subr.mxu0 0.0
    %2705 = vmatpush1.xpose.msra.mxu0 0.0
    %2706 = vmatprep.subr.mxu0 0.0
    %2707 = vmatpush1.xpose.msra.mxu0 0.0
    %2708 = vmatprep.subr.mxu0 0.0
    %2709 = vmatpush1.xpose.msra.mxu0 0.0
    %2710 = vmatprep.subr.mxu0 0.0
    %2711 = vmatpush1.xpose.msra.mxu0 0.0
    %2712 = vmatprep.subr.mxu0 0.0
    %2713 = vmatpush1.xpose.msra.mxu0 0.0
    %2714 = vmatprep.subr.mxu0 0.0
    %2715 = vmatpush1.xpose.msra.mxu0 0.0
    %2716 = vmatprep.subr.mxu0 0.0
    %2717 = vmatpush1.xpose.msra.mxu0 0.0
    %2718 = vmatprep.subr.mxu0 0.0
    %2719 = vmatpush1.xpose.msra.mxu0 0.0
    %2720 = vmatprep.subr.mxu0 0.0
    %2721 = vmatpush1.xpose.msra.mxu0 0.0
    %2722 = vmatprep.subr.mxu0 0.0
    %2723 = vmatpush1.xpose.msra.mxu0 0.0
    %2724 = vmatprep.subr.mxu0 0.0
    %2725 = vmatpush1.xpose.msra.mxu0 0.0
    %2726 = vmatprep.subr.mxu0 0.0
    %2727 = vmatpush1.xpose.msra.mxu0 0.0
    %2728 = vmatprep.subr.mxu0 0.0
    %2729 = vmatpush1.xpose.msra.mxu0 0.0
    %2730 = vmatprep.subr.mxu0 0.0
    %2731 = vmatpush1.xpose.msra.mxu0 0.0
    %2732 = vmatprep.subr.mxu0 0.0
    %2733 = vmatpush1.xpose.msra.mxu0 0.0
    %2734 = vmatprep.subr.mxu0 0.0
    %2735 = vmatpush1.xpose.msra.mxu0 0.0
    %2736 = vmatprep.subr.mxu0 0.0
    %2737 = vmatpush1.xpose.msra.mxu0 0.0
    %2738 = vmatprep.mubr.f32.mxu0 0.0
    %2739 = vmatmul.mubr.f32.gmra.mrb[0].mxu0 %v2669
    %v2740 = vpop.f32.mrb[0].mxu0
    %v2741 = vadd.f32 0.0, %v2740
    %v2742 = vpop.f32.mrb[0].mxu0
    %2743 = vdwg.mxu0
    %2745 = vrot.lane.b32.xlu0 %v2034, 32
    %v2746 = vpop.permute.xlu0 %2745
    %v2747 = vsel %vm2044, %v2746, 0
    %v2750 = vsel %vm2044, %v205, 0
    %2752 = vmatprep.subr.mxu0 0.0
    %2753 = vmatpush1.xpose.msra.mxu0 %v2750
    %2754 = vmatprep.subr.mxu0 0.0
    %2755 = vmatpush1.xpose.msra.mxu0 0.0
    %2756 = vmatprep.subr.mxu0 0.0
    %2757 = vmatpush1.xpose.msra.mxu0 0.0
    %2758 = vmatprep.subr.mxu0 0.0
    %2759 = vmatpush1.xpose.msra.mxu0 0.0
    %2760 = vmatprep.subr.mxu0 0.0
    %2761 = vmatpush1.xpose.msra.mxu0 0.0
    %2762 = vmatprep.subr.mxu0 0.0
    %2763 = vmatpush1.xpose.msra.mxu0 0.0
    %2764 = vmatprep.subr.mxu0 0.0
    %2765 = vmatpush1.xpose.msra.mxu0 0.0
    %2766 = vmatprep.subr.mxu0 0.0
    %2767 = vmatpush1.xpose.msra.mxu0 0.0
    %2768 = vmatprep.subr.mxu0 0.0
    %2769 = vmatpush1.xpose.msra.mxu0 0.0
    %2770 = vmatprep.subr.mxu0 0.0
    %2771 = vmatpush1.xpose.msra.mxu0 0.0
    %2772 = vmatprep.subr.mxu0 0.0
    %2773 = vmatpush1.xpose.msra.mxu0 0.0
    %2774 = vmatprep.subr.mxu0 0.0
    %2775 = vmatpush1.xpose.msra.mxu0 0.0
    %2776 = vmatprep.subr.mxu0 0.0
    %2777 = vmatpush1.xpose.msra.mxu0 0.0
    %2778 = vmatprep.subr.mxu0 0.0
    %2779 = vmatpush1.xpose.msra.mxu0 0.0
    %2780 = vmatprep.subr.mxu0 0.0
    %2781 = vmatpush1.xpose.msra.mxu0 0.0
    %2782 = vmatprep.subr.mxu0 0.0
    %2783 = vmatpush1.xpose.msra.mxu0 0.0
    %2784 = vmatprep.subr.mxu0 0.0
    %2785 = vmatpush1.xpose.msra.mxu0 0.0
    %2786 = vmatprep.subr.mxu0 0.0
    %2787 = vmatpush1.xpose.msra.mxu0 0.0
    %2788 = vmatprep.subr.mxu0 0.0
    %2789 = vmatpush1.xpose.msra.mxu0 0.0
    %2790 = vmatprep.subr.mxu0 0.0
    %2791 = vmatpush1.xpose.msra.mxu0 0.0
    %2792 = vmatprep.subr.mxu0 0.0
    %2793 = vmatpush1.xpose.msra.mxu0 0.0
    %2794 = vmatprep.subr.mxu0 0.0
    %2795 = vmatpush1.xpose.msra.mxu0 0.0
    %2796 = vmatprep.subr.mxu0 0.0
    %2797 = vmatpush1.xpose.msra.mxu0 0.0
    %2798 = vmatprep.subr.mxu0 0.0
    %2799 = vmatpush1.xpose.msra.mxu0 0.0
    %2800 = vmatprep.subr.mxu0 0.0
    %2801 = vmatpush1.xpose.msra.mxu0 0.0
    %2802 = vmatprep.subr.mxu0 0.0
    %2803 = vmatpush1.xpose.msra.mxu0 0.0
    %2804 = vmatprep.subr.mxu0 0.0
    %2805 = vmatpush1.xpose.msra.mxu0 0.0
    %2806 = vmatprep.subr.mxu0 0.0
    %2807 = vmatpush1.xpose.msra.mxu0 0.0
    %2808 = vmatprep.subr.mxu0 0.0
    %2809 = vmatpush1.xpose.msra.mxu0 0.0
    %2810 = vmatprep.subr.mxu0 0.0
    %2811 = vmatpush1.xpose.msra.mxu0 0.0
    %2812 = vmatprep.subr.mxu0 0.0
    %2813 = vmatpush1.xpose.msra.mxu0 0.0
    %2814 = vmatprep.subr.mxu0 0.0
    %2815 = vmatpush1.xpose.msra.mxu0 0.0
    %2816 = vmatprep.mubr.f32.mxu0 0.0
    %2817 = vmatmul.mubr.f32.gmra.mrb[0].mxu0 %v2747
    %v2818 = vpop.f32.mrb[0].mxu0
    %v2819 = vadd.f32 0.0, %v2818
    %v2820 = vpop.f32.mrb[0].mxu0
    %2821 = vdwg.mxu0
    %2823 = vrot.lane.b32.xlu0 %v2035, 32
    %v2824 = vpop.permute.xlu0 %2823
    %v2825 = vsel %vm2044, %v2824, 0
    %v2828 = vsel %vm2044, %v206, 0
    %2830 = vmatprep.subr.mxu0 0.0
    %2831 = vmatpush1.xpose.msra.mxu0 %v2828
    %2832 = vmatprep.subr.mxu0 0.0
    %2833 = vmatpush1.xpose.msra.mxu0 0.0
    %2834 = vmatprep.subr.mxu0 0.0
    %2835 = vmatpush1.xpose.msra.mxu0 0.0
    %2836 = vmatprep.subr.mxu0 0.0
    %2837 = vmatpush1.xpose.msra.mxu0 0.0
    %2838 = vmatprep.subr.mxu0 0.0
    %2839 = vmatpush1.xpose.msra.mxu0 0.0
    %2840 = vmatprep.subr.mxu0 0.0
    %2841 = vmatpush1.xpose.msra.mxu0 0.0
    %2842 = vmatprep.subr.mxu0 0.0
    %2843 = vmatpush1.xpose.msra.mxu0 0.0
    %2844 = vmatprep.subr.mxu0 0.0
    %2845 = vmatpush1.xpose.msra.mxu0 0.0
    %2846 = vmatprep.subr.mxu0 0.0
    %2847 = vmatpush1.xpose.msra.mxu0 0.0
    %2848 = vmatprep.subr.mxu0 0.0
    %2849 = vmatpush1.xpose.msra.mxu0 0.0
    %2850 = vmatprep.subr.mxu0 0.0
    %2851 = vmatpush1.xpose.msra.mxu0 0.0
    %2852 = vmatprep.subr.mxu0 0.0
    %2853 = vmatpush1.xpose.msra.mxu0 0.0
    %2854 = vmatprep.subr.mxu0 0.0
    %2855 = vmatpush1.xpose.msra.mxu0 0.0
    %2856 = vmatprep.subr.mxu0 0.0
    %2857 = vmatpush1.xpose.msra.mxu0 0.0
    %2858 = vmatprep.subr.mxu0 0.0
    %2859 = vmatpush1.xpose.msra.mxu0 0.0
    %2860 = vmatprep.subr.mxu0 0.0
    %2861 = vmatpush1.xpose.msra.mxu0 0.0
    %2862 = vmatprep.subr.mxu0 0.0
    %2863 = vmatpush1.xpose.msra.mxu0 0.0
    %2864 = vmatprep.subr.mxu0 0.0
    %2865 = vmatpush1.xpose.msra.mxu0 0.0
    %2866 = vmatprep.subr.mxu0 0.0
    %2867 = vmatpush1.xpose.msra.mxu0 0.0
    %2868 = vmatprep.subr.mxu0 0.0
    %2869 = vmatpush1.xpose.msra.mxu0 0.0
    %2870 = vmatprep.subr.mxu0 0.0
    %2871 = vmatpush1.xpose.msra.mxu0 0.0
    %2872 = vmatprep.subr.mxu0 0.0
    %2873 = vmatpush1.xpose.msra.mxu0 0.0
    %2874 = vmatprep.subr.mxu0 0.0
    %2875 = vmatpush1.xpose.msra.mxu0 0.0
    %2876 = vmatprep.subr.mxu0 0.0
    %2877 = vmatpush1.xpose.msra.mxu0 0.0
    %2878 = vmatprep.subr.mxu0 0.0
    %2879 = vmatpush1.xpose.msra.mxu0 0.0
    %2880 = vmatprep.subr.mxu0 0.0
    %2881 = vmatpush1.xpose.msra.mxu0 0.0
    %2882 = vmatprep.subr.mxu0 0.0
    %2883 = vmatpush1.xpose.msra.mxu0 0.0
    %2884 = vmatprep.subr.mxu0 0.0
    %2885 = vmatpush1.xpose.msra.mxu0 0.0
    %2886 = vmatprep.subr.mxu0 0.0
    %2887 = vmatpush1.xpose.msra.mxu0 0.0
    %2888 = vmatprep.subr.mxu0 0.0
    %2889 = vmatpush1.xpose.msra.mxu0 0.0
    %2890 = vmatprep.subr.mxu0 0.0
    %2891 = vmatpush1.xpose.msra.mxu0 0.0
    %2892 = vmatprep.subr.mxu0 0.0
    %2893 = vmatpush1.xpose.msra.mxu0 0.0
    %2894 = vmatprep.mubr.f32.mxu0 0.0
    %2895 = vmatmul.mubr.f32.gmra.mrb[0].mxu0 %v2825
    %v2896 = vpop.f32.mrb[0].mxu0
    %v2897 = vadd.f32 0.0, %v2896
    %v2898 = vpop.f32.mrb[0].mxu0
    %2899 = vdwg.mxu0
    %2901 = vrot.lane.b32.xlu0 %v2036, 32
    %v2902 = vpop.permute.xlu0 %2901
    %v2903 = vsel %vm2044, %v2902, 0
    %v2906 = vsel %vm2044, %v207, 0
    %2908 = vmatprep.subr.mxu0 0.0
    %2909 = vmatpush1.xpose.msra.mxu0 %v2906
    %2910 = vmatprep.subr.mxu0 0.0
    %2911 = vmatpush1.xpose.msra.mxu0 0.0
    %2912 = vmatprep.subr.mxu0 0.0
    %2913 = vmatpush1.xpose.msra.mxu0 0.0
    %2914 = vmatprep.subr.mxu0 0.0
    %2915 = vmatpush1.xpose.msra.mxu0 0.0
    %2916 = vmatprep.subr.mxu0 0.0
    %2917 = vmatpush1.xpose.msra.mxu0 0.0
    %2918 = vmatprep.subr.mxu0 0.0
    %2919 = vmatpush1.xpose.msra.mxu0 0.0
    %2920 = vmatprep.subr.mxu0 0.0
    %2921 = vmatpush1.xpose.msra.mxu0 0.0
    %2922 = vmatprep.subr.mxu0 0.0
    %2923 = vmatpush1.xpose.msra.mxu0 0.0
    %2924 = vmatprep.subr.mxu0 0.0
    %2925 = vmatpush1.xpose.msra.mxu0 0.0
    %2926 = vmatprep.subr.mxu0 0.0
    %2927 = vmatpush1.xpose.msra.mxu0 0.0
    %2928 = vmatprep.subr.mxu0 0.0
    %2929 = vmatpush1.xpose.msra.mxu0 0.0
    %2930 = vmatprep.subr.mxu0 0.0
    %2931 = vmatpush1.xpose.msra.mxu0 0.0
    %2932 = vmatprep.subr.mxu0 0.0
    %2933 = vmatpush1.xpose.msra.mxu0 0.0
    %2934 = vmatprep.subr.mxu0 0.0
    %2935 = vmatpush1.xpose.msra.mxu0 0.0
    %2936 = vmatprep.subr.mxu0 0.0
    %2937 = vmatpush1.xpose.msra.mxu0 0.0
    %2938 = vmatprep.subr.mxu0 0.0
    %2939 = vmatpush1.xpose.msra.mxu0 0.0
    %2940 = vmatprep.subr.mxu0 0.0
    %2941 = vmatpush1.xpose.msra.mxu0 0.0
    %2942 = vmatprep.subr.mxu0 0.0
    %2943 = vmatpush1.xpose.msra.mxu0 0.0
    %2944 = vmatprep.subr.mxu0 0.0
    %2945 = vmatpush1.xpose.msra.mxu0 0.0
    %2946 = vmatprep.subr.mxu0 0.0
    %2947 = vmatpush1.xpose.msra.mxu0 0.0
    %2948 = vmatprep.subr.mxu0 0.0
    %2949 = vmatpush1.xpose.msra.mxu0 0.0
    %2950 = vmatprep.subr.mxu0 0.0
    %2951 = vmatpush1.xpose.msra.mxu0 0.0
    %2952 = vmatprep.subr.mxu0 0.0
    %2953 = vmatpush1.xpose.msra.mxu0 0.0
    %2954 = vmatprep.subr.mxu0 0.0
    %2955 = vmatpush1.xpose.msra.mxu0 0.0
    %2956 = vmatprep.subr.mxu0 0.0
    %2957 = vmatpush1.xpose.msra.mxu0 0.0
    %2958 = vmatprep.subr.mxu0 0.0
    %2959 = vmatpush1.xpose.msra.mxu0 0.0
    %2960 = vmatprep.subr.mxu0 0.0
    %2961 = vmatpush1.xpose.msra.mxu0 0.0
    %2962 = vmatprep.subr.mxu0 0.0
    %2963 = vmatpush1.xpose.msra.mxu0 0.0
    %2964 = vmatprep.subr.mxu0 0.0
    %2965 = vmatpush1.xpose.msra.mxu0 0.0
    %2966 = vmatprep.subr.mxu0 0.0
    %2967 = vmatpush1.xpose.msra.mxu0 0.0
    %2968 = vmatprep.subr.mxu0 0.0
    %2969 = vmatpush1.xpose.msra.mxu0 0.0
    %2970 = vmatprep.subr.mxu0 0.0
    %2971 = vmatpush1.xpose.msra.mxu0 0.0
    %2972 = vmatprep.mubr.f32.mxu0 0.0
    %2973 = vmatmul.mubr.f32.gmra.mrb[0].mxu0 %v2903
    %v2974 = vpop.f32.mrb[0].mxu0
    %v2975 = vadd.f32 0.0, %v2974
    %v2976 = vpop.f32.mrb[0].mxu0
    %2977 = vdwg.mxu0
    %2979 = vrot.lane.b32.xlu0 %v2037, 32
    %v2980 = vpop.permute.xlu0 %2979
    %v2981 = vsel %vm2044, %v2980, 0
    %v2984 = vsel %vm2044, %v208, 0
    %2986 = vmatprep.subr.mxu0 0.0
    %2987 = vmatpush1.xpose.msra.mxu0 %v2984
    %2988 = vmatprep.subr.mxu0 0.0
    %2989 = vmatpush1.xpose.msra.mxu0 0.0
    %2990 = vmatprep.subr.mxu0 0.0
    %2991 = vmatpush1.xpose.msra.mxu0 0.0
    %2992 = vmatprep.subr.mxu0 0.0
    %2993 = vmatpush1.xpose.msra.mxu0 0.0
    %2994 = vmatprep.subr.mxu0 0.0
    %2995 = vmatpush1.xpose.msra.mxu0 0.0
    %2996 = vmatprep.subr.mxu0 0.0
    %2997 = vmatpush1.xpose.msra.mxu0 0.0
    %2998 = vmatprep.subr.mxu0 0.0
    %2999 = vmatpush1.xpose.msra.mxu0 0.0
    %3000 = vmatprep.subr.mxu0 0.0
    %3001 = vmatpush1.xpose.msra.mxu0 0.0
    %3002 = vmatprep.subr.mxu0 0.0
    %3003 = vmatpush1.xpose.msra.mxu0 0.0
    %3004 = vmatprep.subr.mxu0 0.0
    %3005 = vmatpush1.xpose.msra.mxu0 0.0
    %3006 = vmatprep.subr.mxu0 0.0
    %3007 = vmatpush1.xpose.msra.mxu0 0.0
    %3008 = vmatprep.subr.mxu0 0.0
    %3009 = vmatpush1.xpose.msra.mxu0 0.0
    %3010 = vmatprep.subr.mxu0 0.0
    %3011 = vmatpush1.xpose.msra.mxu0 0.0
    %3012 = vmatprep.subr.mxu0 0.0
    %3013 = vmatpush1.xpose.msra.mxu0 0.0
    %3014 = vmatprep.subr.mxu0 0.0
    %3015 = vmatpush1.xpose.msra.mxu0 0.0
    %3016 = vmatprep.subr.mxu0 0.0
    %3017 = vmatpush1.xpose.msra.mxu0 0.0
    %3018 = vmatprep.subr.mxu0 0.0
    %3019 = vmatpush1.xpose.msra.mxu0 0.0
    %3020 = vmatprep.subr.mxu0 0.0
    %3021 = vmatpush1.xpose.msra.mxu0 0.0
    %3022 = vmatprep.subr.mxu0 0.0
    %3023 = vmatpush1.xpose.msra.mxu0 0.0
    %3024 = vmatprep.subr.mxu0 0.0
    %3025 = vmatpush1.xpose.msra.mxu0 0.0
    %3026 = vmatprep.subr.mxu0 0.0
    %3027 = vmatpush1.xpose.msra.mxu0 0.0
    %3028 = vmatprep.subr.mxu0 0.0
    %3029 = vmatpush1.xpose.msra.mxu0 0.0
    %3030 = vmatprep.subr.mxu0 0.0
    %3031 = vmatpush1.xpose.msra.mxu0 0.0
    %3032 = vmatprep.subr.mxu0 0.0
    %3033 = vmatpush1.xpose.msra.mxu0 0.0
    %3034 = vmatprep.subr.mxu0 0.0
    %3035 = vmatpush1.xpose.msra.mxu0 0.0
    %3036 = vmatprep.subr.mxu0 0.0
    %3037 = vmatpush1.xpose.msra.mxu0 0.0
    %3038 = vmatprep.subr.mxu0 0.0
    %3039 = vmatpush1.xpose.msra.mxu0 0.0
    %3040 = vmatprep.subr.mxu0 0.0
    %3041 = vmatpush1.xpose.msra.mxu0 0.0
    %3042 = vmatprep.subr.mxu0 0.0
    %3043 = vmatpush1.xpose.msra.mxu0 0.0
    %3044 = vmatprep.subr.mxu0 0.0
    %3045 = vmatpush1.xpose.msra.mxu0 0.0
    %3046 = vmatprep.subr.mxu0 0.0
    %3047 = vmatpush1.xpose.msra.mxu0 0.0
    %3048 = vmatprep.subr.mxu0 0.0
    %3049 = vmatpush1.xpose.msra.mxu0 0.0
    %3050 = vmatprep.mubr.f32.mxu0 0.0
    %3051 = vmatmul.mubr.f32.gmra.mrb[0].mxu0 %v2981
    %v3052 = vpop.f32.mrb[0].mxu0
    %v3053 = vadd.f32 0.0, %v3052
    %v3054 = vpop.f32.mrb[0].mxu0
    %3055 = vdwg.mxu0
    %3057 = vrot.lane.b32.xlu0 %v2038, 32
    %v3058 = vpop.permute.xlu0 %3057
    %v3059 = vsel %vm2044, %v3058, 0
    %v3062 = vsel %vm2044, %v209, 0
    %3064 = vmatprep.subr.mxu0 0.0
    %3065 = vmatpush1.xpose.msra.mxu0 %v3062
    %3066 = vmatprep.subr.mxu0 0.0
    %3067 = vmatpush1.xpose.msra.mxu0 0.0
    %3068 = vmatprep.subr.mxu0 0.0
    %3069 = vmatpush1.xpose.msra.mxu0 0.0
    %3070 = vmatprep.subr.mxu0 0.0
    %3071 = vmatpush1.xpose.msra.mxu0 0.0
    %3072 = vmatprep.subr.mxu0 0.0
    %3073 = vmatpush1.xpose.msra.mxu0 0.0
    %3074 = vmatprep.subr.mxu0 0.0
    %3075 = vmatpush1.xpose.msra.mxu0 0.0
    %3076 = vmatprep.subr.mxu0 0.0
    %3077 = vmatpush1.xpose.msra.mxu0 0.0
    %3078 = vmatprep.subr.mxu0 0.0
    %3079 = vmatpush1.xpose.msra.mxu0 0.0
    %3080 = vmatprep.subr.mxu0 0.0
    %3081 = vmatpush1.xpose.msra.mxu0 0.0
    %3082 = vmatprep.subr.mxu0 0.0
    %3083 = vmatpush1.xpose.msra.mxu0 0.0
    %3084 = vmatprep.subr.mxu0 0.0
    %3085 = vmatpush1.xpose.msra.mxu0 0.0
    %3086 = vmatprep.subr.mxu0 0.0
    %3087 = vmatpush1.xpose.msra.mxu0 0.0
    %3088 = vmatprep.subr.mxu0 0.0
    %3089 = vmatpush1.xpose.msra.mxu0 0.0
    %3090 = vmatprep.subr.mxu0 0.0
    %3091 = vmatpush1.xpose.msra.mxu0 0.0
    %3092 = vmatprep.subr.mxu0 0.0
    %3093 = vmatpush1.xpose.msra.mxu0 0.0
    %3094 = vmatprep.subr.mxu0 0.0
    %3095 = vmatpush1.xpose.msra.mxu0 0.0
    %3096 = vmatprep.subr.mxu0 0.0
    %3097 = vmatpush1.xpose.msra.mxu0 0.0
    %3098 = vmatprep.subr.mxu0 0.0
    %3099 = vmatpush1.xpose.msra.mxu0 0.0
    %3100 = vmatprep.subr.mxu0 0.0
    %3101 = vmatpush1.xpose.msra.mxu0 0.0
    %3102 = vmatprep.subr.mxu0 0.0
    %3103 = vmatpush1.xpose.msra.mxu0 0.0
    %3104 = vmatprep.subr.mxu0 0.0
    %3105 = vmatpush1.xpose.msra.mxu0 0.0
    %3106 = vmatprep.subr.mxu0 0.0
    %3107 = vmatpush1.xpose.msra.mxu0 0.0
    %3108 = vmatprep.subr.mxu0 0.0
    %3109 = vmatpush1.xpose.msra.mxu0 0.0
    %3110 = vmatprep.subr.mxu0 0.0
    %3111 = vmatpush1.xpose.msra.mxu0 0.0
    %3112 = vmatprep.subr.mxu0 0.0
    %3113 = vmatpush1.xpose.msra.mxu0 0.0
    %3114 = vmatprep.subr.mxu0 0.0
    %3115 = vmatpush1.xpose.msra.mxu0 0.0
    %3116 = vmatprep.subr.mxu0 0.0
    %3117 = vmatpush1.xpose.msra.mxu0 0.0
    %3118 = vmatprep.subr.mxu0 0.0
    %3119 = vmatpush1.xpose.msra.mxu0 0.0
    %3120 = vmatprep.subr.mxu0 0.0
    %3121 = vmatpush1.xpose.msra.mxu0 0.0
    %3122 = vmatprep.subr.mxu0 0.0
    %3123 = vmatpush1.xpose.msra.mxu0 0.0
    %3124 = vmatprep.subr.mxu0 0.0
    %3125 = vmatpush1.xpose.msra.mxu0 0.0
    %3126 = vmatprep.subr.mxu0 0.0
    %3127 = vmatpush1.xpose.msra.mxu0 0.0
    %3128 = vmatprep.mubr.f32.mxu0 0.0
    %3129 = vmatmul.mubr.f32.gmra.mrb[0].mxu0 %v3059
    %v3130 = vpop.f32.mrb[0].mxu0
    %v3131 = vadd.f32 0.0, %v3130
    %v3132 = vpop.f32.mrb[0].mxu0
    %3133 = vdwg.mxu0
    %3135 = vrot.lane.b32.xlu0 %v2039, 32
    %v3136 = vpop.permute.xlu0 %3135
    %v3137 = vsel %vm2044, %v3136, 0
    %v3140 = vsel %vm2044, %v210, 0
    %3142 = vmatprep.subr.mxu0 0.0
    %3143 = vmatpush1.xpose.msra.mxu0 %v3140
    %3144 = vmatprep.subr.mxu0 0.0
    %3145 = vmatpush1.xpose.msra.mxu0 0.0
    %3146 = vmatprep.subr.mxu0 0.0
    %3147 = vmatpush1.xpose.msra.mxu0 0.0
    %3148 = vmatprep.subr.mxu0 0.0
    %3149 = vmatpush1.xpose.msra.mxu0 0.0
    %3150 = vmatprep.subr.mxu0 0.0
    %3151 = vmatpush1.xpose.msra.mxu0 0.0
    %3152 = vmatprep.subr.mxu0 0.0
    %3153 = vmatpush1.xpose.msra.mxu0 0.0
    %3154 = vmatprep.subr.mxu0 0.0
    %3155 = vmatpush1.xpose.msra.mxu0 0.0
    %3156 = vmatprep.subr.mxu0 0.0
    %3157 = vmatpush1.xpose.msra.mxu0 0.0
    %3158 = vmatprep.subr.mxu0 0.0
    %3159 = vmatpush1.xpose.msra.mxu0 0.0
    %3160 = vmatprep.subr.mxu0 0.0
    %3161 = vmatpush1.xpose.msra.mxu0 0.0
    %3162 = vmatprep.subr.mxu0 0.0
    %3163 = vmatpush1.xpose.msra.mxu0 0.0
    %3164 = vmatprep.subr.mxu0 0.0
    %3165 = vmatpush1.xpose.msra.mxu0 0.0
    %3166 = vmatprep.subr.mxu0 0.0
    %3167 = vmatpush1.xpose.msra.mxu0 0.0
    %3168 = vmatprep.subr.mxu0 0.0
    %3169 = vmatpush1.xpose.msra.mxu0 0.0
    %3170 = vmatprep.subr.mxu0 0.0
    %3171 = vmatpush1.xpose.msra.mxu0 0.0
    %3172 = vmatprep.subr.mxu0 0.0
    %3173 = vmatpush1.xpose.msra.mxu0 0.0
    %3174 = vmatprep.subr.mxu0 0.0
    %3175 = vmatpush1.xpose.msra.mxu0 0.0
    %3176 = vmatprep.subr.mxu0 0.0
    %3177 = vmatpush1.xpose.msra.mxu0 0.0
    %3178 = vmatprep.subr.mxu0 0.0
    %3179 = vmatpush1.xpose.msra.mxu0 0.0
    %3180 = vmatprep.subr.mxu0 0.0
    %3181 = vmatpush1.xpose.msra.mxu0 0.0
    %3182 = vmatprep.subr.mxu0 0.0
    %3183 = vmatpush1.xpose.msra.mxu0 0.0
    %3184 = vmatprep.subr.mxu0 0.0
    %3185 = vmatpush1.xpose.msra.mxu0 0.0
    %3186 = vmatprep.subr.mxu0 0.0
    %3187 = vmatpush1.xpose.msra.mxu0 0.0
    %3188 = vmatprep.subr.mxu0 0.0
    %3189 = vmatpush1.xpose.msra.mxu0 0.0
    %3190 = vmatprep.subr.mxu0 0.0
    %3191 = vmatpush1.xpose.msra.mxu0 0.0
    %3192 = vmatprep.subr.mxu0 0.0
    %3193 = vmatpush1.xpose.msra.mxu0 0.0
    %3194 = vmatprep.subr.mxu0 0.0
    %3195 = vmatpush1.xpose.msra.mxu0 0.0
    %3196 = vmatprep.subr.mxu0 0.0
    %3197 = vmatpush1.xpose.msra.mxu0 0.0
    %3198 = vmatprep.subr.mxu0 0.0
    %3199 = vmatpush1.xpose.msra.mxu0 0.0
    %3200 = vmatprep.subr.mxu0 0.0
    %3201 = vmatpush1.xpose.msra.mxu0 0.0
    %3202 = vmatprep.subr.mxu0 0.0
    %3203 = vmatpush1.xpose.msra.mxu0 0.0
    %3204 = vmatprep.subr.mxu0 0.0
    %3205 = vmatpush1.xpose.msra.mxu0 0.0
    %3206 = vmatprep.mubr.f32.mxu0 0.0
    %3207 = vmatmul.mubr.f32.gmra.mrb[0].mxu0 %v3137
    %v3208 = vpop.f32.mrb[0].mxu0
    %v3209 = vadd.f32 0.0, %v3208
    %v3210 = vpop.f32.mrb[0].mxu0
    %3211 = vdwg.mxu0
    %3213 = vrot.lane.b32.xlu0 %v2040, 32
    %v3214 = vpop.permute.xlu0 %3213
    %v3215 = vsel %vm2044, %v3214, 0
    %v3218 = vsel %vm2044, %v211, 0
    %3220 = vmatprep.subr.mxu0 0.0
    %3221 = vmatpush1.xpose.msra.mxu0 %v3218
    %3222 = vmatprep.subr.mxu0 0.0
    %3223 = vmatpush1.xpose.msra.mxu0 0.0
    %3224 = vmatprep.subr.mxu0 0.0
    %3225 = vmatpush1.xpose.msra.mxu0 0.0
    %3226 = vmatprep.subr.mxu0 0.0
    %3227 = vmatpush1.xpose.msra.mxu0 0.0
    %3228 = vmatprep.subr.mxu0 0.0
    %3229 = vmatpush1.xpose.msra.mxu0 0.0
    %3230 = vmatprep.subr.mxu0 0.0
    %3231 = vmatpush1.xpose.msra.mxu0 0.0
    %3232 = vmatprep.subr.mxu0 0.0
    %3233 = vmatpush1.xpose.msra.mxu0 0.0
    %3234 = vmatprep.subr.mxu0 0.0
    %3235 = vmatpush1.xpose.msra.mxu0 0.0
    %3236 = vmatprep.subr.mxu0 0.0
    %3237 = vmatpush1.xpose.msra.mxu0 0.0
    %3238 = vmatprep.subr.mxu0 0.0
    %3239 = vmatpush1.xpose.msra.mxu0 0.0
    %3240 = vmatprep.subr.mxu0 0.0
    %3241 = vmatpush1.xpose.msra.mxu0 0.0
    %3242 = vmatprep.subr.mxu0 0.0
    %3243 = vmatpush1.xpose.msra.mxu0 0.0
    %3244 = vmatprep.subr.mxu0 0.0
    %3245 = vmatpush1.xpose.msra.mxu0 0.0
    %3246 = vmatprep.subr.mxu0 0.0
    %3247 = vmatpush1.xpose.msra.mxu0 0.0
    %3248 = vmatprep.subr.mxu0 0.0
    %3249 = vmatpush1.xpose.msra.mxu0 0.0
    %3250 = vmatprep.subr.mxu0 0.0
    %3251 = vmatpush1.xpose.msra.mxu0 0.0
    %3252 = vmatprep.subr.mxu0 0.0
    %3253 = vmatpush1.xpose.msra.mxu0 0.0
    %3254 = vmatprep.subr.mxu0 0.0
    %3255 = vmatpush1.xpose.msra.mxu0 0.0
    %3256 = vmatprep.subr.mxu0 0.0
    %3257 = vmatpush1.xpose.msra.mxu0 0.0
    %3258 = vmatprep.subr.mxu0 0.0
    %3259 = vmatpush1.xpose.msra.mxu0 0.0
    %3260 = vmatprep.subr.mxu0 0.0
    %3261 = vmatpush1.xpose.msra.mxu0 0.0
    %3262 = vmatprep.subr.mxu0 0.0
    %3263 = vmatpush1.xpose.msra.mxu0 0.0
    %3264 = vmatprep.subr.mxu0 0.0
    %3265 = vmatpush1.xpose.msra.mxu0 0.0
    %3266 = vmatprep.subr.mxu0 0.0
    %3267 = vmatpush1.xpose.msra.mxu0 0.0
    %3268 = vmatprep.subr.mxu0 0.0
    %3269 = vmatpush1.xpose.msra.mxu0 0.0
    %3270 = vmatprep.subr.mxu0 0.0
    %3271 = vmatpush1.xpose.msra.mxu0 0.0
    %3272 = vmatprep.subr.mxu0 0.0
    %3273 = vmatpush1.xpose.msra.mxu0 0.0
    %3274 = vmatprep.subr.mxu0 0.0
    %3275 = vmatpush1.xpose.msra.mxu0 0.0
    %3276 = vmatprep.subr.mxu0 0.0
    %3277 = vmatpush1.xpose.msra.mxu0 0.0
    %3278 = vmatprep.subr.mxu0 0.0
    %3279 = vmatpush1.xpose.msra.mxu0 0.0
    %3280 = vmatprep.subr.mxu0 0.0
    %3281 = vmatpush1.xpose.msra.mxu0 0.0
    %3282 = vmatprep.subr.mxu0 0.0
    %3283 = vmatpush1.xpose.msra.mxu0 0.0
    %3284 = vmatprep.mubr.f32.mxu0 0.0
    %3285 = vmatmul.mubr.f32.gmra.mrb[0].mxu0 %v3215
    %v3286 = vpop.f32.mrb[0].mxu0
    %v3287 = vadd.f32 0.0, %v3286
    %v3288 = vpop.f32.mrb[0].mxu0
    %3289 = vdwg.mxu0
    %v3290 = vadd.f32 %v1655, %v2117
    %v3291 = vadd.f32 %v1656, %v2195
    %v3292 = vadd.f32 %v1657, %v2273
    %v3293 = vadd.f32 %v1658, %v2351
    %v3294 = vadd.f32 %v1659, %v2429
    %v3295 = vadd.f32 %v1660, %v2507
    %v3296 = vadd.f32 %v1661, %v2585
    %v3297 = vadd.f32 %v1662, %v2663
    %v3298 = vadd.f32 %v1663, %v2741
    %v3299 = vadd.f32 %v1664, %v2819
    %v3300 = vadd.f32 %v1665, %v2897
    %v3301 = vadd.f32 %v1666, %v2975
    %v3302 = vadd.f32 %v1667, %v3053
    %v3303 = vadd.f32 %v1668, %v3131
    %v3304 = vadd.f32 %v1669, %v3209
    %v3305 = vadd.f32 %v1670, %v3287
    %v3308 = vcombine.high %v214, %v214
    %v3310 = vunpack.c.l.s4 1966171168
    %v3311 = vunpack.c.0.s8 %v3310
    %v3312 = vlaneseq
    %v3313 = vshrl.u32 %v3312, 7
    %v3314 = vsub.s32 %v3311, %v3313
    %v3315 = vrot.slane %v214, %v3314
    %v3317 = vunpack.c.l.s4 1966171168
    %v3318 = vunpack.c.0.s8 %v3317
    %v3319 = vlaneseq
    %v3320 = vshrl.u32 %v3319, 7
    %v3321 = vsub.s32 %v3318, %v3320
    %v3322 = vrot.slane %v3308, %v3321
    %v3323 = vcombine.high %v3315, %v3315
    %v3324 = vcombine.high %v3322, %v3322
    %v3326 = vunpack.c.l.s4 1966171168
    %v3327 = vunpack.c.0.s8 %v3326
    %v3328 = vlaneseq
    %v3329 = vshrl.u32 %v3328, 7
    %v3330 = vsub.s32 %v3327, %v3329
    %v3331 = vrot.slane %v3315, %v3330
    %v3333 = vunpack.c.l.s4 1966171168
    %v3334 = vunpack.c.0.s8 %v3333
    %v3335 = vlaneseq
    %v3336 = vshrl.u32 %v3335, 7
    %v3337 = vsub.s32 %v3334, %v3336
    %v3338 = vrot.slane %v3322, %v3337
    %v3340 = vunpack.c.l.s4 1966171168
    %v3341 = vunpack.c.0.s8 %v3340
    %v3342 = vlaneseq
    %v3343 = vshrl.u32 %v3342, 7
    %v3344 = vsub.s32 %v3341, %v3343
    %v3345 = vrot.slane %v3323, %v3344
    %v3347 = vunpack.c.l.s4 1966171168
    %v3348 = vunpack.c.0.s8 %v3347
    %v3349 = vlaneseq
    %v3350 = vshrl.u32 %v3349, 7
    %v3351 = vsub.s32 %v3348, %v3350
    %v3352 = vrot.slane %v3324, %v3351
    %v3353 = vcombine.high %v3331, %v3331
    %v3354 = vcombine.high %v3338, %v3338
    %v3355 = vcombine.high %v3345, %v3345
    %v3356 = vcombine.high %v3352, %v3352
    %v3357 = vcombine.high %v215, %v215
    %v3359 = vunpack.c.l.s4 1966171168
    %v3360 = vunpack.c.0.s8 %v3359
    %v3361 = vlaneseq
    %v3362 = vshrl.u32 %v3361, 7
    %v3363 = vsub.s32 %v3360, %v3362
    %v3364 = vrot.slane %v215, %v3363
    %v3366 = vunpack.c.l.s4 1966171168
    %v3367 = vunpack.c.0.s8 %v3366
    %v3368 = vlaneseq
    %v3369 = vshrl.u32 %v3368, 7
    %v3370 = vsub.s32 %v3367, %v3369
    %v3371 = vrot.slane %v3357, %v3370
    %v3372 = vcombine.high %v3364, %v3364
    %v3373 = vcombine.high %v3371, %v3371
    %v3375 = vunpack.c.l.s4 1966171168
    %v3376 = vunpack.c.0.s8 %v3375
    %v3377 = vlaneseq
    %v3378 = vshrl.u32 %v3377, 7
    %v3379 = vsub.s32 %v3376, %v3378
    %v3380 = vrot.slane %v3364, %v3379
    %v3382 = vunpack.c.l.s4 1966171168
    %v3383 = vunpack.c.0.s8 %v3382
    %v3384 = vlaneseq
    %v3385 = vshrl.u32 %v3384, 7
    %v3386 = vsub.s32 %v3383, %v3385
    %v3387 = vrot.slane %v3371, %v3386
    %v3389 = vunpack.c.l.s4 1966171168
    %v3390 = vunpack.c.0.s8 %v3389
    %v3391 = vlaneseq
    %v3392 = vshrl.u32 %v3391, 7
    %v3393 = vsub.s32 %v3390, %v3392
    %v3394 = vrot.slane %v3372, %v3393
    %v3396 = vunpack.c.l.s4 1966171168
    %v3397 = vunpack.c.0.s8 %v3396
    %v3398 = vlaneseq
    %v3399 = vshrl.u32 %v3398, 7
    %v3400 = vsub.s32 %v3397, %v3399
    %v3401 = vrot.slane %v3373, %v3400
    %v3402 = vcombine.high %v3380, %v3380
    %v3403 = vcombine.high %v3387, %v3387
    %v3404 = vcombine.high %v3394, %v3394
    %v3405 = vcombine.high %v3401, %v3401
    %v3406 = vlaneseq
    %v3407 = vshrl.u32 %v3406, 7
    %v3408 = vsub.s32 0, %v3407
    %v3409 = vrot.slane %v3331, %v3408
    %v3410 = vlaneseq
    %v3411 = vshrl.u32 %v3410, 7
    %v3412 = vsub.s32 0, %v3411
    %v3413 = vrot.slane %v3345, %v3412
    %v3414 = vlaneseq
    %v3415 = vshrl.u32 %v3414, 7
    %v3416 = vsub.s32 0, %v3415
    %v3417 = vrot.slane %v3353, %v3416
    %v3418 = vlaneseq
    %v3419 = vshrl.u32 %v3418, 7
    %v3420 = vsub.s32 0, %v3419
    %v3421 = vrot.slane %v3355, %v3420
    %v3422 = vlaneseq
    %v3423 = vshrl.u32 %v3422, 7
    %v3424 = vsub.s32 0, %v3423
    %v3425 = vrot.slane %v3338, %v3424
    %v3426 = vlaneseq
    %v3427 = vshrl.u32 %v3426, 7
    %v3428 = vsub.s32 0, %v3427
    %v3429 = vrot.slane %v3352, %v3428
    %v3430 = vlaneseq
    %v3431 = vshrl.u32 %v3430, 7
    %v3432 = vsub.s32 0, %v3431
    %v3433 = vrot.slane %v3354, %v3432
    %v3434 = vlaneseq
    %v3435 = vshrl.u32 %v3434, 7
    %v3436 = vsub.s32 0, %v3435
    %v3437 = vrot.slane %v3356, %v3436
    %v3438 = vlaneseq
    %v3439 = vshrl.u32 %v3438, 7
    %v3440 = vsub.s32 0, %v3439
    %v3441 = vrot.slane %v3380, %v3440
    %v3442 = vlaneseq
    %v3443 = vshrl.u32 %v3442, 7
    %v3444 = vsub.s32 0, %v3443
    %v3445 = vrot.slane %v3394, %v3444
    %v3446 = vlaneseq
    %v3447 = vshrl.u32 %v3446, 7
    %v3448 = vsub.s32 0, %v3447
    %v3449 = vrot.slane %v3402, %v3448
    %v3450 = vlaneseq
    %v3451 = vshrl.u32 %v3450, 7
    %v3452 = vsub.s32 0, %v3451
    %v3453 = vrot.slane %v3404, %v3452
    %v3454 = vlaneseq
    %v3455 = vshrl.u32 %v3454, 7
    %v3456 = vsub.s32 0, %v3455
    %v3457 = vrot.slane %v3387, %v3456
    %v3458 = vlaneseq
    %v3459 = vshrl.u32 %v3458, 7
    %v3460 = vsub.s32 0, %v3459
    %v3461 = vrot.slane %v3401, %v3460
    %v3462 = vlaneseq
    %v3463 = vshrl.u32 %v3462, 7
    %v3464 = vsub.s32 0, %v3463
    %v3465 = vrot.slane %v3403, %v3464
    %v3466 = vlaneseq
    %v3467 = vshrl.u32 %v3466, 7
    %v3468 = vsub.s32 0, %v3467
    %v3469 = vrot.slane %v3405, %v3468
    %3470 = vrot.lane.b32.xlu0 %v3409, 120
    %v3471 = vpop.permute.xlu0 %3470
    %3472 = vrot.lane.b32.xlu0 %v3413, 120
    %v3473 = vpop.permute.xlu0 %3472
    %3474 = vrot.lane.b32.xlu0 %v3417, 120
    %v3475 = vpop.permute.xlu0 %3474
    %3476 = vrot.lane.b32.xlu0 %v3421, 120
    %v3477 = vpop.permute.xlu0 %3476
    %3478 = vrot.lane.b32.xlu0 %v3425, 120
    %v3479 = vpop.permute.xlu0 %3478
    %3480 = vrot.lane.b32.xlu0 %v3429, 120
    %v3481 = vpop.permute.xlu0 %3480
    %3482 = vrot.lane.b32.xlu0 %v3433, 120
    %v3483 = vpop.permute.xlu0 %3482
    %3484 = vrot.lane.b32.xlu0 %v3437, 120
    %v3485 = vpop.permute.xlu0 %3484
    %3486 = vrot.lane.b32.xlu0 %v3441, 120
    %v3487 = vpop.permute.xlu0 %3486
    %3488 = vrot.lane.b32.xlu0 %v3445, 120
    %v3489 = vpop.permute.xlu0 %3488
    %3490 = vrot.lane.b32.xlu0 %v3449, 120
    %v3491 = vpop.permute.xlu0 %3490
    %3492 = vrot.lane.b32.xlu0 %v3453, 120
    %v3493 = vpop.permute.xlu0 %3492
    %3494 = vrot.lane.b32.xlu0 %v3457, 120
    %v3495 = vpop.permute.xlu0 %3494
    %3496 = vrot.lane.b32.xlu0 %v3461, 120
    %v3497 = vpop.permute.xlu0 %3496
    %3498 = vrot.lane.b32.xlu0 %v3465, 120
    %v3499 = vpop.permute.xlu0 %3498
    %3500 = vrot.lane.b32.xlu0 %v3469, 120
    %v3501 = vpop.permute.xlu0 %3500
    %v3518 = vadd.f32 %v3290, %v3471
    %v3519 = vadd.f32 %v3291, %v3473
    %v3520 = vadd.f32 %v3292, %v3475
    %v3521 = vadd.f32 %v3293, %v3477
    %v3522 = vadd.f32 %v3294, %v3479
    %v3523 = vadd.f32 %v3295, %v3481
    %v3524 = vadd.f32 %v3296, %v3483
    %v3525 = vadd.f32 %v3297, %v3485
    %v3526 = vadd.f32 %v3298, %v3487
    %v3527 = vadd.f32 %v3299, %v3489
    %v3528 = vadd.f32 %v3300, %v3491
    %v3529 = vadd.f32 %v3301, %v3493
    %v3530 = vadd.f32 %v3302, %v3495
    %v3531 = vadd.f32 %v3303, %v3497
    %v3532 = vadd.f32 %v3304, %v3499
    %v3533 = vadd.f32 %v3305, %v3501
    %vm3534 = vcmask 60416
    %v3535 = vsel %vm3534, %v3518, -inf
    %3536 = vmax.xlane.f32.xlu0 %v3535
    %v3537 = vpop.xlane.xlu0 %3536
    %v3538 = vsel %vm3534, %v3519, -inf
    %3539 = vmax.xlane.f32.xlu0 %v3538
    %v3540 = vpop.xlane.xlu0 %3539
    %v3541 = vsel %vm3534, %v3520, -inf
    %3542 = vmax.xlane.f32.xlu0 %v3541
    %v3543 = vpop.xlane.xlu0 %3542
    %v3544 = vsel %vm3534, %v3521, -inf
    %3545 = vmax.xlane.f32.xlu0 %v3544
    %v3546 = vpop.xlane.xlu0 %3545
    %v3547 = vsel %vm3534, %v3522, -inf
    %3548 = vmax.xlane.f32.xlu0 %v3547
    %v3549 = vpop.xlane.xlu0 %3548
    %v3550 = vsel %vm3534, %v3523, -inf
    %3551 = vmax.xlane.f32.xlu0 %v3550
    %v3552 = vpop.xlane.xlu0 %3551
    %v3553 = vsel %vm3534, %v3524, -inf
    %3554 = vmax.xlane.f32.xlu0 %v3553
    %v3555 = vpop.xlane.xlu0 %3554
    %v3556 = vsel %vm3534, %v3525, -inf
    %3557 = vmax.xlane.f32.xlu0 %v3556
    %v3558 = vpop.xlane.xlu0 %3557
    %v3559 = vsel %vm3534, %v3526, -inf
    %3560 = vmax.xlane.f32.xlu0 %v3559
    %v3561 = vpop.xlane.xlu0 %3560
    %v3562 = vsel %vm3534, %v3527, -inf
    %3563 = vmax.xlane.f32.xlu0 %v3562
    %v3564 = vpop.xlane.xlu0 %3563
    %v3565 = vsel %vm3534, %v3528, -inf
    %3566 = vmax.xlane.f32.xlu0 %v3565
    %v3567 = vpop.xlane.xlu0 %3566
    %v3568 = vsel %vm3534, %v3529, -inf
    %3569 = vmax.xlane.f32.xlu0 %v3568
    %v3570 = vpop.xlane.xlu0 %3569
    %v3571 = vsel %vm3534, %v3530, -inf
    %3572 = vmax.xlane.f32.xlu0 %v3571
    %v3573 = vpop.xlane.xlu0 %3572
    %v3574 = vsel %vm3534, %v3531, -inf
    %3575 = vmax.xlane.f32.xlu0 %v3574
    %v3576 = vpop.xlane.xlu0 %3575
    %v3577 = vsel %vm3534, %v3532, -inf
    %3578 = vmax.xlane.f32.xlu0 %v3577
    %v3579 = vpop.xlane.xlu0 %3578
    %v3580 = vsel %vm3534, %v3533, -inf
    %3581 = vmax.xlane.f32.xlu0 %v3580
    %v3582 = vpop.xlane.xlu0 %3581
    %v3583 = vsub.f32 %v3518, %v3537
    %v3584 = vsub.f32 %v3519, %v3540
    %v3585 = vsub.f32 %v3520, %v3543
    %v3586 = vsub.f32 %v3521, %v3546
    %v3587 = vsub.f32 %v3522, %v3549
    %v3588 = vsub.f32 %v3523, %v3552
    %v3589 = vsub.f32 %v3524, %v3555
    %v3590 = vsub.f32 %v3525, %v3558
    %v3591 = vsub.f32 %v3526, %v3561
    %v3592 = vsub.f32 %v3527, %v3564
    %v3593 = vsub.f32 %v3528, %v3567
    %v3594 = vsub.f32 %v3529, %v3570
    %v3595 = vsub.f32 %v3530, %v3573
    %v3596 = vsub.f32 %v3531, %v3576
    %v3597 = vsub.f32 %v3532, %v3579
    %v3598 = vsub.f32 %v3533, %v3582
    %v3599 = vmul.f32 %v3583, 1.442695
    %v3600 = vpow.pop %v3599
    %v3601 = vmul.f32 %v3584, 1.442695
    %v3602 = vpow.pop %v3601
    %v3603 = vmul.f32 %v3585, 1.442695
    %v3604 = vpow.pop %v3603
    %v3605 = vmul.f32 %v3586, 1.442695
    %v3606 = vpow.pop %v3605
    %v3607 = vmul.f32 %v3587, 1.442695
    %v3608 = vpow.pop %v3607
    %v3609 = vmul.f32 %v3588, 1.442695
    %v3610 = vpow.pop %v3609
    %v3611 = vmul.f32 %v3589, 1.442695
    %v3612 = vpow.pop %v3611
    %v3613 = vmul.f32 %v3590, 1.442695
    %v3614 = vpow.pop %v3613
    %v3615 = vmul.f32 %v3591, 1.442695
    %v3616 = vpow.pop %v3615
    %v3617 = vmul.f32 %v3592, 1.442695
    %v3618 = vpow.pop %v3617
    %v3619 = vmul.f32 %v3593, 1.442695
    %v3620 = vpow.pop %v3619
    %v3621 = vmul.f32 %v3594, 1.442695
    %v3622 = vpow.pop %v3621
    %v3623 = vmul.f32 %v3595, 1.442695
    %v3624 = vpow.pop %v3623
    %v3625 = vmul.f32 %v3596, 1.442695
    %v3626 = vpow.pop %v3625
    %v3627 = vmul.f32 %v3597, 1.442695
    %v3628 = vpow.pop %v3627
    %v3629 = vmul.f32 %v3598, 1.442695
    %v3630 = vpow.pop %v3629
    %v3631 = vsel %vm3534, %v3600, 0.0
    %3632 = vadd.xlane.f32.xlu0 %v3631
    %v3633 = vpop.xlane.xlu0 %3632
    %v3634 = vsel %vm3534, %v3602, 0.0
    %3635 = vadd.xlane.f32.xlu0 %v3634
    %v3636 = vpop.xlane.xlu0 %3635
    %v3637 = vsel %vm3534, %v3604, 0.0
    %3638 = vadd.xlane.f32.xlu0 %v3637
    %v3639 = vpop.xlane.xlu0 %3638
    %v3640 = vsel %vm3534, %v3606, 0.0
    %3641 = vadd.xlane.f32.xlu0 %v3640
    %v3642 = vpop.xlane.xlu0 %3641
    %v3643 = vsel %vm3534, %v3608, 0.0
    %3644 = vadd.xlane.f32.xlu0 %v3643
    %v3645 = vpop.xlane.xlu0 %3644
    %v3646 = vsel %vm3534, %v3610, 0.0
    %3647 = vadd.xlane.f32.xlu0 %v3646
    %v3648 = vpop.xlane.xlu0 %3647
    %v3649 = vsel %vm3534, %v3612, 0.0
    %3650 = vadd.xlane.f32.xlu0 %v3649
    %v3651 = vpop.xlane.xlu0 %3650
    %v3652 = vsel %vm3534, %v3614, 0.0
    %3653 = vadd.xlane.f32.xlu0 %v3652
    %v3654 = vpop.xlane.xlu0 %3653
    %v3655 = vsel %vm3534, %v3616, 0.0
    %3656 = vadd.xlane.f32.xlu0 %v3655
    %v3657 = vpop.xlane.xlu0 %3656
    %v3658 = vsel %vm3534, %v3618, 0.0
    %3659 = vadd.xlane.f32.xlu0 %v3658
    %v3660 = vpop.xlane.xlu0 %3659
    %v3661 = vsel %vm3534, %v3620, 0.0
    %3662 = vadd.xlane.f32.xlu0 %v3661
    %v3663 = vpop.xlane.xlu0 %3662
    %v3664 = vsel %vm3534, %v3622, 0.0
    %3665 = vadd.xlane.f32.xlu0 %v3664
    %v3666 = vpop.xlane.xlu0 %3665
    %v3667 = vsel %vm3534, %v3624, 0.0
    %3668 = vadd.xlane.f32.xlu0 %v3667
    %v3669 = vpop.xlane.xlu0 %3668
    %v3670 = vsel %vm3534, %v3626, 0.0
    %3671 = vadd.xlane.f32.xlu0 %v3670
    %v3672 = vpop.xlane.xlu0 %3671
    %v3673 = vsel %vm3534, %v3628, 0.0
    %3674 = vadd.xlane.f32.xlu0 %v3673
    %v3675 = vpop.xlane.xlu0 %3674
    %v3676 = vsel %vm3534, %v3630, 0.0
    %3677 = vadd.xlane.f32.xlu0 %v3676
    %v3678 = vpop.xlane.xlu0 %3677
    %v3679 = vrcp.pop %v3633
    %v3680 = vrcp.pop %v3636
    %v3681 = vrcp.pop %v3639
    %v3682 = vrcp.pop %v3642
    %v3683 = vrcp.pop %v3645
    %v3684 = vrcp.pop %v3648
    %v3685 = vrcp.pop %v3651
    %v3686 = vrcp.pop %v3654
    %v3687 = vrcp.pop %v3657
    %v3688 = vrcp.pop %v3660
    %v3689 = vrcp.pop %v3663
    %v3690 = vrcp.pop %v3666
    %v3691 = vrcp.pop %v3669
    %v3692 = vrcp.pop %v3672
    %v3693 = vrcp.pop %v3675
    %v3694 = vrcp.pop %v3678
    %v3695 = vmul.f32 %v3600, %v3679
    %v3696 = vmul.f32 %v3602, %v3680
    %v3697 = vmul.f32 %v3604, %v3681
    %v3698 = vmul.f32 %v3606, %v3682
    %v3699 = vmul.f32 %v3608, %v3683
    %v3700 = vmul.f32 %v3610, %v3684
    %v3701 = vmul.f32 %v3612, %v3685
    %v3702 = vmul.f32 %v3614, %v3686
    %v3703 = vmul.f32 %v3616, %v3687
    %v3704 = vmul.f32 %v3618, %v3688
    %v3705 = vmul.f32 %v3620, %v3689
    %v3706 = vmul.f32 %v3622, %v3690
    %v3707 = vmul.f32 %v3624, %v3691
    %v3708 = vmul.f32 %v3626, %v3692
    %v3709 = vmul.f32 %v3628, %v3693
    %v3710 = vmul.f32 %v3630, %v3694
    %v3719 = vrot.slane %v3696, 7
    %vm3720 = vcmask 1041409
    %v3721 = vsel %vm3720, %v3719, %v3695
    %v3722 = vrot.slane %v3697, 6
    %vm3723 = vcmask 1042434
    %v3724 = vsel %vm3723, %v3722, %v3721
    %v3725 = vrot.slane %v3698, 5
    %vm3726 = vcmask 1043459
    %v3727 = vsel %vm3726, %v3725, %v3724
    %v3728 = vrot.slane %v3699, 4
    %vm3729 = vcmask 1044484
    %v3730 = vsel %vm3729, %v3728, %v3727
    %v3731 = vrot.slane %v3700, 3
    %vm3732 = vcmask 1045509
    %v3733 = vsel %vm3732, %v3731, %v3730
    %v3734 = vrot.slane %v3701, 2
    %vm3735 = vcmask 1046534
    %v3736 = vsel %vm3735, %v3734, %v3733
    %v3737 = vrot.slane %v3702, 1
    %vm3738 = vcmask 1047559
    %v3739 = vsel %vm3738, %v3737, %v3736
    %3740 = vrot.lane.b32.xlu0 %v333, 64
    %v3741 = vpop.permute.xlu0 %3740
    %v3743 = vsel %vm344, %v3739, 0
    %3745 = vmatprep.subr.mxu0 0.0
    %3746 = vmatpush1.msra.mxu0 %v3741
    %3747 = vmatprep.subr.mxu0 0.0
    %3748 = vmatpush1.msra.mxu0 0.0
    %3749 = vmatprep.subr.mxu0 0.0
    %3750 = vmatpush1.msra.mxu0 0.0
    %3751 = vmatprep.subr.mxu0 0.0
    %3752 = vmatpush1.msra.mxu0 0.0
    %3753 = vmatprep.subr.mxu0 0.0
    %3754 = vmatpush1.msra.mxu0 0.0
    %3755 = vmatprep.subr.mxu0 0.0
    %3756 = vmatpush1.msra.mxu0 0.0
    %3757 = vmatprep.subr.mxu0 0.0
    %3758 = vmatpush1.msra.mxu0 0.0
    %3759 = vmatprep.subr.mxu0 0.0
    %3760 = vmatpush1.msra.mxu0 0.0
    %3761 = vmatprep.subr.mxu0 0.0
    %3762 = vmatpush1.msra.mxu0 0.0
    %3763 = vmatprep.subr.mxu0 0.0
    %3764 = vmatpush1.msra.mxu0 0.0
    %3765 = vmatprep.subr.mxu0 0.0
    %3766 = vmatpush1.msra.mxu0 0.0
    %3767 = vmatprep.subr.mxu0 0.0
    %3768 = vmatpush1.msra.mxu0 0.0
    %3769 = vmatprep.subr.mxu0 0.0
    %3770 = vmatpush1.msra.mxu0 0.0
    %3771 = vmatprep.subr.mxu0 0.0
    %3772 = vmatpush1.msra.mxu0 0.0
    %3773 = vmatprep.subr.mxu0 0.0
    %3774 = vmatpush1.msra.mxu0 0.0
    %3775 = vmatprep.subr.mxu0 0.0
    %3776 = vmatpush1.msra.mxu0 0.0
    %3777 = vmatprep.subr.mxu0 0.0
    %3778 = vmatpush1.msra.mxu0 0.0
    %3779 = vmatprep.subr.mxu0 0.0
    %3780 = vmatpush1.msra.mxu0 0.0
    %3781 = vmatprep.subr.mxu0 0.0
    %3782 = vmatpush1.msra.mxu0 0.0
    %3783 = vmatprep.subr.mxu0 0.0
    %3784 = vmatpush1.msra.mxu0 0.0
    %3785 = vmatprep.subr.mxu0 0.0
    %3786 = vmatpush1.msra.mxu0 0.0
    %3787 = vmatprep.subr.mxu0 0.0
    %3788 = vmatpush1.msra.mxu0 0.0
    %3789 = vmatprep.subr.mxu0 0.0
    %3790 = vmatpush1.msra.mxu0 0.0
    %3791 = vmatprep.subr.mxu0 0.0
    %3792 = vmatpush1.msra.mxu0 0.0
    %3793 = vmatprep.subr.mxu0 0.0
    %3794 = vmatpush1.msra.mxu0 0.0
    %3795 = vmatprep.subr.mxu0 0.0
    %3796 = vmatpush1.msra.mxu0 0.0
    %3797 = vmatprep.subr.mxu0 0.0
    %3798 = vmatpush1.msra.mxu0 0.0
    %3799 = vmatprep.subr.mxu0 0.0
    %3800 = vmatpush1.msra.mxu0 0.0
    %3801 = vmatprep.subr.mxu0 0.0
    %3802 = vmatpush1.msra.mxu0 0.0
    %3803 = vmatprep.subr.mxu0 0.0
    %3804 = vmatpush1.msra.mxu0 0.0
    %3805 = vmatprep.subr.mxu0 0.0
    %3806 = vmatpush1.msra.mxu0 0.0
    %3807 = vmatprep.subr.mxu0 0.0
    %3808 = vmatpush1.msra.mxu0 0.0
    %3809 = vmatprep.mubr.f32.mxu0 0.0
    %3810 = vmatmul.mubr.f32.gmra.mrb[0].mxu0 %v3743
    %v3811 = vpop.f32.mrb[0].mxu0
    %v3812 = vadd.f32 0.0, %v3811
    %v3813 = vpop.f32.mrb[0].mxu0
    %3814 = vdwg.mxu0
    %v3823 = vrot.slane %v3704, 7
    %v3824 = vsel %vm3720, %v3823, %v3703
    %v3825 = vrot.slane %v3705, 6
    %v3826 = vsel %vm3723, %v3825, %v3824
    %v3827 = vrot.slane %v3706, 5
    %v3828 = vsel %vm3726, %v3827, %v3826
    %v3829 = vrot.slane %v3707, 4
    %v3830 = vsel %vm3729, %v3829, %v3828
    %v3831 = vrot.slane %v3708, 3
    %v3832 = vsel %vm3732, %v3831, %v3830
    %v3833 = vrot.slane %v3709, 2
    %v3834 = vsel %vm3735, %v3833, %v3832
    %v3835 = vrot.slane %v3710, 1
    %v3836 = vsel %vm3738, %v3835, %v3834
    %3837 = vrot.lane.b32.xlu0 %v338, 64
    %v3838 = vpop.permute.xlu0 %3837
    %v3840 = vsel %vm344, %v3836, 0
    %3842 = vmatprep.subr.mxu0 0.0
    %3843 = vmatpush1.msra.mxu0 %v3838
    %3844 = vmatprep.subr.mxu0 0.0
    %3845 = vmatpush1.msra.mxu0 0.0
    %3846 = vmatprep.subr.mxu0 0.0
    %3847 = vmatpush1.msra.mxu0 0.0
    %3848 = vmatprep.subr.mxu0 0.0
    %3849 = vmatpush1.msra.mxu0 0.0
    %3850 = vmatprep.subr.mxu0 0.0
    %3851 = vmatpush1.msra.mxu0 0.0
    %3852 = vmatprep.subr.mxu0 0.0
    %3853 = vmatpush1.msra.mxu0 0.0
    %3854 = vmatprep.subr.mxu0 0.0
    %3855 = vmatpush1.msra.mxu0 0.0
    %3856 = vmatprep.subr.mxu0 0.0
    %3857 = vmatpush1.msra.mxu0 0.0
    %3858 = vmatprep.subr.mxu0 0.0
    %3859 = vmatpush1.msra.mxu0 0.0
    %3860 = vmatprep.subr.mxu0 0.0
    %3861 = vmatpush1.msra.mxu0 0.0
    %3862 = vmatprep.subr.mxu0 0.0
    %3863 = vmatpush1.msra.mxu0 0.0
    %3864 = vmatprep.subr.mxu0 0.0
    %3865 = vmatpush1.msra.mxu0 0.0
    %3866 = vmatprep.subr.mxu0 0.0
    %3867 = vmatpush1.msra.mxu0 0.0
    %3868 = vmatprep.subr.mxu0 0.0
    %3869 = vmatpush1.msra.mxu0 0.0
    %3870 = vmatprep.subr.mxu0 0.0
    %3871 = vmatpush1.msra.mxu0 0.0
    %3872 = vmatprep.subr.mxu0 0.0
    %3873 = vmatpush1.msra.mxu0 0.0
    %3874 = vmatprep.subr.mxu0 0.0
    %3875 = vmatpush1.msra.mxu0 0.0
    %3876 = vmatprep.subr.mxu0 0.0
    %3877 = vmatpush1.msra.mxu0 0.0
    %3878 = vmatprep.subr.mxu0 0.0
    %3879 = vmatpush1.msra.mxu0 0.0
    %3880 = vmatprep.subr.mxu0 0.0
    %3881 = vmatpush1.msra.mxu0 0.0
    %3882 = vmatprep.subr.mxu0 0.0
    %3883 = vmatpush1.msra.mxu0 0.0
    %3884 = vmatprep.subr.mxu0 0.0
    %3885 = vmatpush1.msra.mxu0 0.0
    %3886 = vmatprep.subr.mxu0 0.0
    %3887 = vmatpush1.msra.mxu0 0.0
    %3888 = vmatprep.subr.mxu0 0.0
    %3889 = vmatpush1.msra.mxu0 0.0
    %3890 = vmatprep.subr.mxu0 0.0
    %3891 = vmatpush1.msra.mxu0 0.0
    %3892 = vmatprep.subr.mxu0 0.0
    %3893 = vmatpush1.msra.mxu0 0.0
    %3894 = vmatprep.subr.mxu0 0.0
    %3895 = vmatpush1.msra.mxu0 0.0
    %3896 = vmatprep.subr.mxu0 0.0
    %3897 = vmatpush1.msra.mxu0 0.0
    %3898 = vmatprep.subr.mxu0 0.0
    %3899 = vmatpush1.msra.mxu0 0.0
    %3900 = vmatprep.subr.mxu0 0.0
    %3901 = vmatpush1.msra.mxu0 0.0
    %3902 = vmatprep.subr.mxu0 0.0
    %3903 = vmatpush1.msra.mxu0 0.0
    %3904 = vmatprep.subr.mxu0 0.0
    %3905 = vmatpush1.msra.mxu0 0.0
    %3906 = vmatprep.mubr.f32.mxu0 0.0
    %3907 = vmatmul.mubr.f32.gmra.mrb[0].mxu0 %v3840
    %v3908 = vpop.f32.mrb[0].mxu0
    %v3909 = vadd.f32 0.0, %v3908
    %v3910 = vpop.f32.mrb[0].mxu0
    %3911 = vdwg.mxu0
    %v3912 = vrot.slane %v3695, 1
    %v3913 = vsel %vm3720, %v3696, %v3912
    %v3914 = vrot.slane %v3697, 7
    %v3915 = vsel %vm3723, %v3914, %v3913
    %v3916 = vrot.slane %v3698, 6
    %v3917 = vsel %vm3726, %v3916, %v3915
    %v3918 = vrot.slane %v3699, 5
    %v3919 = vsel %vm3729, %v3918, %v3917
    %v3920 = vrot.slane %v3700, 4
    %v3921 = vsel %vm3732, %v3920, %v3919
    %v3922 = vrot.slane %v3701, 3
    %v3923 = vsel %vm3735, %v3922, %v3921
    %v3924 = vrot.slane %v3702, 2
    %v3925 = vsel %vm3738, %v3924, %v3923
    %3926 = vrot.lane.b32.xlu0 %v333, 56
    %v3927 = vpop.permute.xlu0 %3926
    %v3929 = vsel %vm344, %v3925, 0
    %3931 = vmatprep.subr.mxu0 0.0
    %3932 = vmatpush1.msra.mxu0 %v3927
    %3933 = vmatprep.subr.mxu0 0.0
    %3934 = vmatpush1.msra.mxu0 0.0
    %3935 = vmatprep.subr.mxu0 0.0
    %3936 = vmatpush1.msra.mxu0 0.0
    %3937 = vmatprep.subr.mxu0 0.0
    %3938 = vmatpush1.msra.mxu0 0.0
    %3939 = vmatprep.subr.mxu0 0.0
    %3940 = vmatpush1.msra.mxu0 0.0
    %3941 = vmatprep.subr.mxu0 0.0
    %3942 = vmatpush1.msra.mxu0 0.0
    %3943 = vmatprep.subr.mxu0 0.0
    %3944 = vmatpush1.msra.mxu0 0.0
    %3945 = vmatprep.subr.mxu0 0.0
    %3946 = vmatpush1.msra.mxu0 0.0
    %3947 = vmatprep.subr.mxu0 0.0
    %3948 = vmatpush1.msra.mxu0 0.0
    %3949 = vmatprep.subr.mxu0 0.0
    %3950 = vmatpush1.msra.mxu0 0.0
    %3951 = vmatprep.subr.mxu0 0.0
    %3952 = vmatpush1.msra.mxu0 0.0
    %3953 = vmatprep.subr.mxu0 0.0
    %3954 = vmatpush1.msra.mxu0 0.0
    %3955 = vmatprep.subr.mxu0 0.0
    %3956 = vmatpush1.msra.mxu0 0.0
    %3957 = vmatprep.subr.mxu0 0.0
    %3958 = vmatpush1.msra.mxu0 0.0
    %3959 = vmatprep.subr.mxu0 0.0
    %3960 = vmatpush1.msra.mxu0 0.0
    %3961 = vmatprep.subr.mxu0 0.0
    %3962 = vmatpush1.msra.mxu0 0.0
    %3963 = vmatprep.subr.mxu0 0.0
    %3964 = vmatpush1.msra.mxu0 0.0
    %3965 = vmatprep.subr.mxu0 0.0
    %3966 = vmatpush1.msra.mxu0 0.0
    %3967 = vmatprep.subr.mxu0 0.0
    %3968 = vmatpush1.msra.mxu0 0.0
    %3969 = vmatprep.subr.mxu0 0.0
    %3970 = vmatpush1.msra.mxu0 0.0
    %3971 = vmatprep.subr.mxu0 0.0
    %3972 = vmatpush1.msra.mxu0 0.0
    %3973 = vmatprep.subr.mxu0 0.0
    %3974 = vmatpush1.msra.mxu0 0.0
    %3975 = vmatprep.subr.mxu0 0.0
    %3976 = vmatpush1.msra.mxu0 0.0
    %3977 = vmatprep.subr.mxu0 0.0
    %3978 = vmatpush1.msra.mxu0 0.0
    %3979 = vmatprep.subr.mxu0 0.0
    %3980 = vmatpush1.msra.mxu0 0.0
    %3981 = vmatprep.subr.mxu0 0.0
    %3982 = vmatpush1.msra.mxu0 0.0
    %3983 = vmatprep.subr.mxu0 0.0
    %3984 = vmatpush1.msra.mxu0 0.0
    %3985 = vmatprep.subr.mxu0 0.0
    %3986 = vmatpush1.msra.mxu0 0.0
    %3987 = vmatprep.subr.mxu0 0.0
    %3988 = vmatpush1.msra.mxu0 0.0
    %3989 = vmatprep.subr.mxu0 0.0
    %3990 = vmatpush1.msra.mxu0 0.0
    %3991 = vmatprep.subr.mxu0 0.0
    %3992 = vmatpush1.msra.mxu0 0.0
    %3993 = vmatprep.subr.mxu0 0.0
    %3994 = vmatpush1.msra.mxu0 0.0
    %3995 = vmatprep.mubr.f32.mxu0 0.0
    %3996 = vmatmul.mubr.f32.gmra.mrb[0].mxu0 %v3929
    %v3997 = vpop.f32.mrb[0].mxu0
    %v3998 = vadd.f32 0.0, %v3997
    %v3999 = vpop.f32.mrb[0].mxu0
    %4000 = vdwg.mxu0
    %v4001 = vrot.slane %v3703, 1
    %v4002 = vsel %vm3720, %v3704, %v4001
    %v4003 = vrot.slane %v3705, 7
    %v4004 = vsel %vm3723, %v4003, %v4002
    %v4005 = vrot.slane %v3706, 6
    %v4006 = vsel %vm3726, %v4005, %v4004
    %v4007 = vrot.slane %v3707, 5
    %v4008 = vsel %vm3729, %v4007, %v4006
    %v4009 = vrot.slane %v3708, 4
    %v4010 = vsel %vm3732, %v4009, %v4008
    %v4011 = vrot.slane %v3709, 3
    %v4012 = vsel %vm3735, %v4011, %v4010
    %v4013 = vrot.slane %v3710, 2
    %v4014 = vsel %vm3738, %v4013, %v4012
    %4015 = vrot.lane.b32.xlu0 %v338, 56
    %v4016 = vpop.permute.xlu0 %4015
    %v4018 = vsel %vm344, %v4014, 0
    %4020 = vmatprep.subr.mxu0 0.0
    %4021 = vmatpush1.msra.mxu0 %v4016
    %4022 = vmatprep.subr.mxu0 0.0
    %4023 = vmatpush1.msra.mxu0 0.0
    %4024 = vmatprep.subr.mxu0 0.0
    %4025 = vmatpush1.msra.mxu0 0.0
    %4026 = vmatprep.subr.mxu0 0.0
    %4027 = vmatpush1.msra.mxu0 0.0
    %4028 = vmatprep.subr.mxu0 0.0
    %4029 = vmatpush1.msra.mxu0 0.0
    %4030 = vmatprep.subr.mxu0 0.0
    %4031 = vmatpush1.msra.mxu0 0.0
    %4032 = vmatprep.subr.mxu0 0.0
    %4033 = vmatpush1.msra.mxu0 0.0
    %4034 = vmatprep.subr.mxu0 0.0
    %4035 = vmatpush1.msra.mxu0 0.0
    %4036 = vmatprep.subr.mxu0 0.0
    %4037 = vmatpush1.msra.mxu0 0.0
    %4038 = vmatprep.subr.mxu0 0.0
    %4039 = vmatpush1.msra.mxu0 0.0
    %4040 = vmatprep.subr.mxu0 0.0
    %4041 = vmatpush1.msra.mxu0 0.0
    %4042 = vmatprep.subr.mxu0 0.0
    %4043 = vmatpush1.msra.mxu0 0.0
    %4044 = vmatprep.subr.mxu0 0.0
    %4045 = vmatpush1.msra.mxu0 0.0
    %4046 = vmatprep.subr.mxu0 0.0
    %4047 = vmatpush1.msra.mxu0 0.0
    %4048 = vmatprep.subr.mxu0 0.0
    %4049 = vmatpush1.msra.mxu0 0.0
    %4050 = vmatprep.subr.mxu0 0.0
    %4051 = vmatpush1.msra.mxu0 0.0
    %4052 = vmatprep.subr.mxu0 0.0
    %4053 = vmatpush1.msra.mxu0 0.0
    %4054 = vmatprep.subr.mxu0 0.0
    %4055 = vmatpush1.msra.mxu0 0.0
    %4056 = vmatprep.subr.mxu0 0.0
    %4057 = vmatpush1.msra.mxu0 0.0
    %4058 = vmatprep.subr.mxu0 0.0
    %4059 = vmatpush1.msra.mxu0 0.0
    %4060 = vmatprep.subr.mxu0 0.0
    %4061 = vmatpush1.msra.mxu0 0.0
    %4062 = vmatprep.subr.mxu0 0.0
    %4063 = vmatpush1.msra.mxu0 0.0
    %4064 = vmatprep.subr.mxu0 0.0
    %4065 = vmatpush1.msra.mxu0 0.0
    %4066 = vmatprep.subr.mxu0 0.0
    %4067 = vmatpush1.msra.mxu0 0.0
    %4068 = vmatprep.subr.mxu0 0.0
    %4069 = vmatpush1.msra.mxu0 0.0
    %4070 = vmatprep.subr.mxu0 0.0
    %4071 = vmatpush1.msra.mxu0 0.0
    %4072 = vmatprep.subr.mxu0 0.0
    %4073 = vmatpush1.msra.mxu0 0.0
    %4074 = vmatprep.subr.mxu0 0.0
    %4075 = vmatpush1.msra.mxu0 0.0
    %4076 = vmatprep.subr.mxu0 0.0
    %4077 = vmatpush1.msra.mxu0 0.0
    %4078 = vmatprep.subr.mxu0 0.0
    %4079 = vmatpush1.msra.mxu0 0.0
    %4080 = vmatprep.subr.mxu0 0.0
    %4081 = vmatpush1.msra.mxu0 0.0
    %4082 = vmatprep.subr.mxu0 0.0
    %4083 = vmatpush1.msra.mxu0 0.0
    %4084 = vmatprep.mubr.f32.mxu0 0.0
    %4085 = vmatmul.mubr.f32.gmra.mrb[0].mxu0 %v4018
    %v4086 = vpop.f32.mrb[0].mxu0
    %v4087 = vadd.f32 0.0, %v4086
    %v4088 = vpop.f32.mrb[0].mxu0
    %4089 = vdwg.mxu0
    %v4090 = vrot.slane %v3695, 2
    %v4091 = vrot.slane %v3696, 1
    %v4092 = vsel %vm3720, %v4091, %v4090
    %v4093 = vsel %vm3723, %v3697, %v4092
    %v4094 = vrot.slane %v3698, 7
    %v4095 = vsel %vm3726, %v4094, %v4093
    %v4096 = vrot.slane %v3699, 6
    %v4097 = vsel %vm3729, %v4096, %v4095
    %v4098 = vrot.slane %v3700, 5
    %v4099 = vsel %vm3732, %v4098, %v4097
    %v4100 = vrot.slane %v3701, 4
    %v4101 = vsel %vm3735, %v4100, %v4099
    %v4102 = vrot.slane %v3702, 3
    %v4103 = vsel %vm3738, %v4102, %v4101
    %4104 = vrot.lane.b32.xlu0 %v333, 48
    %v4105 = vpop.permute.xlu0 %4104
    %v4107 = vsel %vm344, %v4103, 0
    %4109 = vmatprep.subr.mxu0 0.0
    %4110 = vmatpush1.msra.mxu0 %v4105
    %4111 = vmatprep.subr.mxu0 0.0
    %4112 = vmatpush1.msra.mxu0 0.0
    %4113 = vmatprep.subr.mxu0 0.0
    %4114 = vmatpush1.msra.mxu0 0.0
    %4115 = vmatprep.subr.mxu0 0.0
    %4116 = vmatpush1.msra.mxu0 0.0
    %4117 = vmatprep.subr.mxu0 0.0
    %4118 = vmatpush1.msra.mxu0 0.0
    %4119 = vmatprep.subr.mxu0 0.0
    %4120 = vmatpush1.msra.mxu0 0.0
    %4121 = vmatprep.subr.mxu0 0.0
    %4122 = vmatpush1.msra.mxu0 0.0
    %4123 = vmatprep.subr.mxu0 0.0
    %4124 = vmatpush1.msra.mxu0 0.0
    %4125 = vmatprep.subr.mxu0 0.0
    %4126 = vmatpush1.msra.mxu0 0.0
    %4127 = vmatprep.subr.mxu0 0.0
    %4128 = vmatpush1.msra.mxu0 0.0
    %4129 = vmatprep.subr.mxu0 0.0
    %4130 = vmatpush1.msra.mxu0 0.0
    %4131 = vmatprep.subr.mxu0 0.0
    %4132 = vmatpush1.msra.mxu0 0.0
    %4133 = vmatprep.subr.mxu0 0.0
    %4134 = vmatpush1.msra.mxu0 0.0
    %4135 = vmatprep.subr.mxu0 0.0
    %4136 = vmatpush1.msra.mxu0 0.0
    %4137 = vmatprep.subr.mxu0 0.0
    %4138 = vmatpush1.msra.mxu0 0.0
    %4139 = vmatprep.subr.mxu0 0.0
    %4140 = vmatpush1.msra.mxu0 0.0
    %4141 = vmatprep.subr.mxu0 0.0
    %4142 = vmatpush1.msra.mxu0 0.0
    %4143 = vmatprep.subr.mxu0 0.0
    %4144 = vmatpush1.msra.mxu0 0.0
    %4145 = vmatprep.subr.mxu0 0.0
    %4146 = vmatpush1.msra.mxu0 0.0
    %4147 = vmatprep.subr.mxu0 0.0
    %4148 = vmatpush1.msra.mxu0 0.0
    %4149 = vmatprep.subr.mxu0 0.0
    %4150 = vmatpush1.msra.mxu0 0.0
    %4151 = vmatprep.subr.mxu0 0.0
    %4152 = vmatpush1.msra.mxu0 0.0
    %4153 = vmatprep.subr.mxu0 0.0
    %4154 = vmatpush1.msra.mxu0 0.0
    %4155 = vmatprep.subr.mxu0 0.0
    %4156 = vmatpush1.msra.mxu0 0.0
    %4157 = vmatprep.subr.mxu0 0.0
    %4158 = vmatpush1.msra.mxu0 0.0
    %4159 = vmatprep.subr.mxu0 0.0
    %4160 = vmatpush1.msra.mxu0 0.0
    %4161 = vmatprep.subr.mxu0 0.0
    %4162 = vmatpush1.msra.mxu0 0.0
    %4163 = vmatprep.subr.mxu0 0.0
    %4164 = vmatpush1.msra.mxu0 0.0
    %4165 = vmatprep.subr.mxu0 0.0
    %4166 = vmatpush1.msra.mxu0 0.0
    %4167 = vmatprep.subr.mxu0 0.0
    %4168 = vmatpush1.msra.mxu0 0.0
    %4169 = vmatprep.subr.mxu0 0.0
    %4170 = vmatpush1.msra.mxu0 0.0
    %4171 = vmatprep.subr.mxu0 0.0
    %4172 = vmatpush1.msra.mxu0 0.0
    %4173 = vmatprep.mubr.f32.mxu0 0.0
    %4174 = vmatmul.mubr.f32.gmra.mrb[0].mxu0 %v4107
    %v4175 = vpop.f32.mrb[0].mxu0
    %v4176 = vadd.f32 0.0, %v4175
    %v4177 = vpop.f32.mrb[0].mxu0
    %4178 = vdwg.mxu0
    %v4179 = vrot.slane %v3703, 2
    %v4180 = vrot.slane %v3704, 1
    %v4181 = vsel %vm3720, %v4180, %v4179
    %v4182 = vsel %vm3723, %v3705, %v4181
    %v4183 = vrot.slane %v3706, 7
    %v4184 = vsel %vm3726, %v4183, %v4182
    %v4185 = vrot.slane %v3707, 6
    %v4186 = vsel %vm3729, %v4185, %v4184
    %v4187 = vrot.slane %v3708, 5
    %v4188 = vsel %vm3732, %v4187, %v4186
    %v4189 = vrot.slane %v3709, 4
    %v4190 = vsel %vm3735, %v4189, %v4188
    %v4191 = vrot.slane %v3710, 3
    %v4192 = vsel %vm3738, %v4191, %v4190
    %4193 = vrot.lane.b32.xlu0 %v338, 48
    %v4194 = vpop.permute.xlu0 %4193
    %v4196 = vsel %vm344, %v4192, 0
    %4198 = vmatprep.subr.mxu0 0.0
    %4199 = vmatpush1.msra.mxu0 %v4194
    %4200 = vmatprep.subr.mxu0 0.0
    %4201 = vmatpush1.msra.mxu0 0.0
    %4202 = vmatprep.subr.mxu0 0.0
    %4203 = vmatpush1.msra.mxu0 0.0
    %4204 = vmatprep.subr.mxu0 0.0
    %4205 = vmatpush1.msra.mxu0 0.0
    %4206 = vmatprep.subr.mxu0 0.0
    %4207 = vmatpush1.msra.mxu0 0.0
    %4208 = vmatprep.subr.mxu0 0.0
    %4209 = vmatpush1.msra.mxu0 0.0
    %4210 = vmatprep.subr.mxu0 0.0
    %4211 = vmatpush1.msra.mxu0 0.0
    %4212 = vmatprep.subr.mxu0 0.0
    %4213 = vmatpush1.msra.mxu0 0.0
    %4214 = vmatprep.subr.mxu0 0.0
    %4215 = vmatpush1.msra.mxu0 0.0
    %4216 = vmatprep.subr.mxu0 0.0
    %4217 = vmatpush1.msra.mxu0 0.0
    %4218 = vmatprep.subr.mxu0 0.0
    %4219 = vmatpush1.msra.mxu0 0.0
    %4220 = vmatprep.subr.mxu0 0.0
    %4221 = vmatpush1.msra.mxu0 0.0
    %4222 = vmatprep.subr.mxu0 0.0
    %4223 = vmatpush1.msra.mxu0 0.0
    %4224 = vmatprep.subr.mxu0 0.0
    %4225 = vmatpush1.msra.mxu0 0.0
    %4226 = vmatprep.subr.mxu0 0.0
    %4227 = vmatpush1.msra.mxu0 0.0
    %4228 = vmatprep.subr.mxu0 0.0
    %4229 = vmatpush1.msra.mxu0 0.0
    %4230 = vmatprep.subr.mxu0 0.0
    %4231 = vmatpush1.msra.mxu0 0.0
    %4232 = vmatprep.subr.mxu0 0.0
    %4233 = vmatpush1.msra.mxu0 0.0
    %4234 = vmatprep.subr.mxu0 0.0
    %4235 = vmatpush1.msra.mxu0 0.0
    %4236 = vmatprep.subr.mxu0 0.0
    %4237 = vmatpush1.msra.mxu0 0.0
    %4238 = vmatprep.subr.mxu0 0.0
    %4239 = vmatpush1.msra.mxu0 0.0
    %4240 = vmatprep.subr.mxu0 0.0
    %4241 = vmatpush1.msra.mxu0 0.0
    %4242 = vmatprep.subr.mxu0 0.0
    %4243 = vmatpush1.msra.mxu0 0.0
    %4244 = vmatprep.subr.mxu0 0.0
    %4245 = vmatpush1.msra.mxu0 0.0
    %4246 = vmatprep.subr.mxu0 0.0
    %4247 = vmatpush1.msra.mxu0 0.0
    %4248 = vmatprep.subr.mxu0 0.0
    %4249 = vmatpush1.msra.mxu0 0.0
    %4250 = vmatprep.subr.mxu0 0.0
    %4251 = vmatpush1.msra.mxu0 0.0
    %4252 = vmatprep.subr.mxu0 0.0
    %4253 = vmatpush1.msra.mxu0 0.0
    %4254 = vmatprep.subr.mxu0 0.0
    %4255 = vmatpush1.msra.mxu0 0.0
    %4256 = vmatprep.subr.mxu0 0.0
    %4257 = vmatpush1.msra.mxu0 0.0
    %4258 = vmatprep.subr.mxu0 0.0
    %4259 = vmatpush1.msra.mxu0 0.0
    %4260 = vmatprep.subr.mxu0 0.0
    %4261 = vmatpush1.msra.mxu0 0.0
    %4262 = vmatprep.mubr.f32.mxu0 0.0
    %4263 = vmatmul.mubr.f32.gmra.mrb[0].mxu0 %v4196
    %v4264 = vpop.f32.mrb[0].mxu0
    %v4265 = vadd.f32 0.0, %v4264
    %v4266 = vpop.f32.mrb[0].mxu0
    %4267 = vdwg.mxu0
    %v4268 = vrot.slane %v3695, 3
    %v4269 = vrot.slane %v3696, 2
    %v4270 = vsel %vm3720, %v4269, %v4268
    %v4271 = vrot.slane %v3697, 1
    %v4272 = vsel %vm3723, %v4271, %v4270
    %v4273 = vsel %vm3726, %v3698, %v4272
    %v4274 = vrot.slane %v3699, 7
    %v4275 = vsel %vm3729, %v4274, %v4273
    %v4276 = vrot.slane %v3700, 6
    %v4277 = vsel %vm3732, %v4276, %v4275
    %v4278 = vrot.slane %v3701, 5
    %v4279 = vsel %vm3735, %v4278, %v4277
    %v4280 = vrot.slane %v3702, 4
    %v4281 = vsel %vm3738, %v4280, %v4279
    %4282 = vrot.lane.b32.xlu0 %v333, 40
    %v4283 = vpop.permute.xlu0 %4282
    %v4285 = vsel %vm344, %v4281, 0
    %4287 = vmatprep.subr.mxu0 0.0
    %4288 = vmatpush1.msra.mxu0 %v4283
    %4289 = vmatprep.subr.mxu0 0.0
    %4290 = vmatpush1.msra.mxu0 0.0
    %4291 = vmatprep.subr.mxu0 0.0
    %4292 = vmatpush1.msra.mxu0 0.0
    %4293 = vmatprep.subr.mxu0 0.0
    %4294 = vmatpush1.msra.mxu0 0.0
    %4295 = vmatprep.subr.mxu0 0.0
    %4296 = vmatpush1.msra.mxu0 0.0
    %4297 = vmatprep.subr.mxu0 0.0
    %4298 = vmatpush1.msra.mxu0 0.0
    %4299 = vmatprep.subr.mxu0 0.0
    %4300 = vmatpush1.msra.mxu0 0.0
    %4301 = vmatprep.subr.mxu0 0.0
    %4302 = vmatpush1.msra.mxu0 0.0
    %4303 = vmatprep.subr.mxu0 0.0
    %4304 = vmatpush1.msra.mxu0 0.0
    %4305 = vmatprep.subr.mxu0 0.0
    %4306 = vmatpush1.msra.mxu0 0.0
    %4307 = vmatprep.subr.mxu0 0.0
    %4308 = vmatpush1.msra.mxu0 0.0
    %4309 = vmatprep.subr.mxu0 0.0
    %4310 = vmatpush1.msra.mxu0 0.0
    %4311 = vmatprep.subr.mxu0 0.0
    %4312 = vmatpush1.msra.mxu0 0.0
    %4313 = vmatprep.subr.mxu0 0.0
    %4314 = vmatpush1.msra.mxu0 0.0
    %4315 = vmatprep.subr.mxu0 0.0
    %4316 = vmatpush1.msra.mxu0 0.0
    %4317 = vmatprep.subr.mxu0 0.0
    %4318 = vmatpush1.msra.mxu0 0.0
    %4319 = vmatprep.subr.mxu0 0.0
    %4320 = vmatpush1.msra.mxu0 0.0
    %4321 = vmatprep.subr.mxu0 0.0
    %4322 = vmatpush1.msra.mxu0 0.0
    %4323 = vmatprep.subr.mxu0 0.0
    %4324 = vmatpush1.msra.mxu0 0.0
    %4325 = vmatprep.subr.mxu0 0.0
    %4326 = vmatpush1.msra.mxu0 0.0
    %4327 = vmatprep.subr.mxu0 0.0
    %4328 = vmatpush1.msra.mxu0 0.0
    %4329 = vmatprep.subr.mxu0 0.0
    %4330 = vmatpush1.msra.mxu0 0.0
    %4331 = vmatprep.subr.mxu0 0.0
    %4332 = vmatpush1.msra.mxu0 0.0
    %4333 = vmatprep.subr.mxu0 0.0
    %4334 = vmatpush1.msra.mxu0 0.0
    %4335 = vmatprep.subr.mxu0 0.0
    %4336 = vmatpush1.msra.mxu0 0.0
    %4337 = vmatprep.subr.mxu0 0.0
    %4338 = vmatpush1.msra.mxu0 0.0
    %4339 = vmatprep.subr.mxu0 0.0
    %4340 = vmatpush1.msra.mxu0 0.0
    %4341 = vmatprep.subr.mxu0 0.0
    %4342 = vmatpush1.msra.mxu0 0.0
    %4343 = vmatprep.subr.mxu0 0.0
    %4344 = vmatpush1.msra.mxu0 0.0
    %4345 = vmatprep.subr.mxu0 0.0
    %4346 = vmatpush1.msra.mxu0 0.0
    %4347 = vmatprep.subr.mxu0 0.0
    %4348 = vmatpush1.msra.mxu0 0.0
    %4349 = vmatprep.subr.mxu0 0.0
    %4350 = vmatpush1.msra.mxu0 0.0
    %4351 = vmatprep.mubr.f32.mxu0 0.0
    %4352 = vmatmul.mubr.f32.gmra.mrb[0].mxu0 %v4285
    %v4353 = vpop.f32.mrb[0].mxu0
    %v4354 = vadd.f32 0.0, %v4353
    %v4355 = vpop.f32.mrb[0].mxu0
    %4356 = vdwg.mxu0
    %v4357 = vrot.slane %v3703, 3
    %v4358 = vrot.slane %v3704, 2
    %v4359 = vsel %vm3720, %v4358, %v4357
    %v4360 = vrot.slane %v3705, 1
    %v4361 = vsel %vm3723, %v4360, %v4359
    %v4362 = vsel %vm3726, %v3706, %v4361
    %v4363 = vrot.slane %v3707, 7
    %v4364 = vsel %vm3729, %v4363, %v4362
    %v4365 = vrot.slane %v3708, 6
    %v4366 = vsel %vm3732, %v4365, %v4364
    %v4367 = vrot.slane %v3709, 5
    %v4368 = vsel %vm3735, %v4367, %v4366
    %v4369 = vrot.slane %v3710, 4
    %v4370 = vsel %vm3738, %v4369, %v4368
    %4371 = vrot.lane.b32.xlu0 %v338, 40
    %v4372 = vpop.permute.xlu0 %4371
    %v4374 = vsel %vm344, %v4370, 0
    %4376 = vmatprep.subr.mxu0 0.0
    %4377 = vmatpush1.msra.mxu0 %v4372
    %4378 = vmatprep.subr.mxu0 0.0
    %4379 = vmatpush1.msra.mxu0 0.0
    %4380 = vmatprep.subr.mxu0 0.0
    %4381 = vmatpush1.msra.mxu0 0.0
    %4382 = vmatprep.subr.mxu0 0.0
    %4383 = vmatpush1.msra.mxu0 0.0
    %4384 = vmatprep.subr.mxu0 0.0
    %4385 = vmatpush1.msra.mxu0 0.0
    %4386 = vmatprep.subr.mxu0 0.0
    %4387 = vmatpush1.msra.mxu0 0.0
    %4388 = vmatprep.subr.mxu0 0.0
    %4389 = vmatpush1.msra.mxu0 0.0
    %4390 = vmatprep.subr.mxu0 0.0
    %4391 = vmatpush1.msra.mxu0 0.0
    %4392 = vmatprep.subr.mxu0 0.0
    %4393 = vmatpush1.msra.mxu0 0.0
    %4394 = vmatprep.subr.mxu0 0.0
    %4395 = vmatpush1.msra.mxu0 0.0
    %4396 = vmatprep.subr.mxu0 0.0
    %4397 = vmatpush1.msra.mxu0 0.0
    %4398 = vmatprep.subr.mxu0 0.0
    %4399 = vmatpush1.msra.mxu0 0.0
    %4400 = vmatprep.subr.mxu0 0.0
    %4401 = vmatpush1.msra.mxu0 0.0
    %4402 = vmatprep.subr.mxu0 0.0
    %4403 = vmatpush1.msra.mxu0 0.0
    %4404 = vmatprep.subr.mxu0 0.0
    %4405 = vmatpush1.msra.mxu0 0.0
    %4406 = vmatprep.subr.mxu0 0.0
    %4407 = vmatpush1.msra.mxu0 0.0
    %4408 = vmatprep.subr.mxu0 0.0
    %4409 = vmatpush1.msra.mxu0 0.0
    %4410 = vmatprep.subr.mxu0 0.0
    %4411 = vmatpush1.msra.mxu0 0.0
    %4412 = vmatprep.subr.mxu0 0.0
    %4413 = vmatpush1.msra.mxu0 0.0
    %4414 = vmatprep.subr.mxu0 0.0
    %4415 = vmatpush1.msra.mxu0 0.0
    %4416 = vmatprep.subr.mxu0 0.0
    %4417 = vmatpush1.msra.mxu0 0.0
    %4418 = vmatprep.subr.mxu0 0.0
    %4419 = vmatpush1.msra.mxu0 0.0
    %4420 = vmatprep.subr.mxu0 0.0
    %4421 = vmatpush1.msra.mxu0 0.0
    %4422 = vmatprep.subr.mxu0 0.0
    %4423 = vmatpush1.msra.mxu0 0.0
    %4424 = vmatprep.subr.mxu0 0.0
    %4425 = vmatpush1.msra.mxu0 0.0
    %4426 = vmatprep.subr.mxu0 0.0
    %4427 = vmatpush1.msra.mxu0 0.0
    %4428 = vmatprep.subr.mxu0 0.0
    %4429 = vmatpush1.msra.mxu0 0.0
    %4430 = vmatprep.subr.mxu0 0.0
    %4431 = vmatpush1.msra.mxu0 0.0
    %4432 = vmatprep.subr.mxu0 0.0
    %4433 = vmatpush1.msra.mxu0 0.0
    %4434 = vmatprep.subr.mxu0 0.0
    %4435 = vmatpush1.msra.mxu0 0.0
    %4436 = vmatprep.subr.mxu0 0.0
    %4437 = vmatpush1.msra.mxu0 0.0
    %4438 = vmatprep.subr.mxu0 0.0
    %4439 = vmatpush1.msra.mxu0 0.0
    %4440 = vmatprep.mubr.f32.mxu0 0.0
    %4441 = vmatmul.mubr.f32.gmra.mrb[0].mxu0 %v4374
    %v4442 = vpop.f32.mrb[0].mxu0
    %v4443 = vadd.f32 0.0, %v4442
    %v4444 = vpop.f32.mrb[0].mxu0
    %4445 = vdwg.mxu0
    %4448 = vrot.lane.b32.xlu0 %v3998, 8
    %v4449 = vpop.permute.xlu0 %4448
    %4450 = vrot.lane.b32.xlu0 %v4087, 8
    %v4451 = vpop.permute.xlu0 %4450
    %4456 = vrot.lane.b32.xlu0 %v4176, 16
    %v4457 = vpop.permute.xlu0 %4456
    %4458 = vrot.lane.b32.xlu0 %v4265, 16
    %v4459 = vpop.permute.xlu0 %4458
    %4464 = vrot.lane.b32.xlu0 %v4354, 24
    %v4465 = vpop.permute.xlu0 %4464
    %4466 = vrot.lane.b32.xlu0 %v4443, 24
    %v4467 = vpop.permute.xlu0 %4466
    %v4470 = vsel %vm344, %v3812, %v4449
    %v4471 = vsel %vm344, %v3909, %v4451
    %vm4472 = vcmask 130048
    %v4473 = vsel %vm4472, %v4470, %v4457
    %v4474 = vsel %vm4472, %v4471, %v4459
    %vm4475 = vcmask 195584
    %v4476 = vsel %vm4475, %v4473, %v4465
    %v4477 = vsel %vm4475, %v4474, %v4467
    %v4478 = vsel %vm344, %v3695, 0
    %4480 = vmatprep.subr.mxu0 0.0
    %4481 = vmatpush1.msra.mxu0 %v196
    %4482 = vmatprep.subr.mxu0 0.0
    %4483 = vmatpush1.msra.mxu0 0.0
    %4484 = vmatprep.subr.mxu0 0.0
    %4485 = vmatpush1.msra.mxu0 0.0
    %4486 = vmatprep.subr.mxu0 0.0
    %4487 = vmatpush1.msra.mxu0 0.0
    %4488 = vmatprep.subr.mxu0 0.0
    %4489 = vmatpush1.msra.mxu0 0.0
    %4490 = vmatprep.subr.mxu0 0.0
    %4491 = vmatpush1.msra.mxu0 0.0
    %4492 = vmatprep.subr.mxu0 0.0
    %4493 = vmatpush1.msra.mxu0 0.0
    %4494 = vmatprep.subr.mxu0 0.0
    %4495 = vmatpush1.msra.mxu0 0.0
    %4496 = vmatprep.subr.mxu0 0.0
    %4497 = vmatpush1.msra.mxu0 0.0
    %4498 = vmatprep.subr.mxu0 0.0
    %4499 = vmatpush1.msra.mxu0 0.0
    %4500 = vmatprep.subr.mxu0 0.0
    %4501 = vmatpush1.msra.mxu0 0.0
    %4502 = vmatprep.subr.mxu0 0.0
    %4503 = vmatpush1.msra.mxu0 0.0
    %4504 = vmatprep.subr.mxu0 0.0
    %4505 = vmatpush1.msra.mxu0 0.0
    %4506 = vmatprep.subr.mxu0 0.0
    %4507 = vmatpush1.msra.mxu0 0.0
    %4508 = vmatprep.subr.mxu0 0.0
    %4509 = vmatpush1.msra.mxu0 0.0
    %4510 = vmatprep.subr.mxu0 0.0
    %4511 = vmatpush1.msra.mxu0 0.0
    %4512 = vmatprep.subr.mxu0 0.0
    %4513 = vmatpush1.msra.mxu0 0.0
    %4514 = vmatprep.subr.mxu0 0.0
    %4515 = vmatpush1.msra.mxu0 0.0
    %4516 = vmatprep.subr.mxu0 0.0
    %4517 = vmatpush1.msra.mxu0 0.0
    %4518 = vmatprep.subr.mxu0 0.0
    %4519 = vmatpush1.msra.mxu0 0.0
    %4520 = vmatprep.subr.mxu0 0.0
    %4521 = vmatpush1.msra.mxu0 0.0
    %4522 = vmatprep.subr.mxu0 0.0
    %4523 = vmatpush1.msra.mxu0 0.0
    %4524 = vmatprep.subr.mxu0 0.0
    %4525 = vmatpush1.msra.mxu0 0.0
    %4526 = vmatprep.subr.mxu0 0.0
    %4527 = vmatpush1.msra.mxu0 0.0
    %4528 = vmatprep.subr.mxu0 0.0
    %4529 = vmatpush1.msra.mxu0 0.0
    %4530 = vmatprep.subr.mxu0 0.0
    %4531 = vmatpush1.msra.mxu0 0.0
    %4532 = vmatprep.subr.mxu0 0.0
    %4533 = vmatpush1.msra.mxu0 0.0
    %4534 = vmatprep.subr.mxu0 0.0
    %4535 = vmatpush1.msra.mxu0 0.0
    %4536 = vmatprep.subr.mxu0 0.0
    %4537 = vmatpush1.msra.mxu0 0.0
    %4538 = vmatprep.subr.mxu0 0.0
    %4539 = vmatpush1.msra.mxu0 0.0
    %4540 = vmatprep.subr.mxu0 0.0
    %4541 = vmatpush1.msra.mxu0 0.0
    %4542 = vmatprep.subr.mxu0 0.0
    %4543 = vmatpush1.msra.mxu0 0.0
    %4544 = vmatprep.mubr.f32.mxu0 0.0
    %4545 = vmatmul.mubr.f32.gmra.mrb[0].mxu0 %v4478
    %v4546 = vpop.f32.mrb[0].mxu0
    %v4547 = vadd.f32 0.0, %v4546
    %v4548 = vpop.f32.mrb[0].mxu0
    %4549 = vdwg.mxu0
    %v4550 = vsel %vm344, %v3696, 0
    %4552 = vmatprep.subr.mxu0 0.0
    %4553 = vmatpush1.msra.mxu0 %v197
    %4554 = vmatprep.subr.mxu0 0.0
    %4555 = vmatpush1.msra.mxu0 0.0
    %4556 = vmatprep.subr.mxu0 0.0
    %4557 = vmatpush1.msra.mxu0 0.0
    %4558 = vmatprep.subr.mxu0 0.0
    %4559 = vmatpush1.msra.mxu0 0.0
    %4560 = vmatprep.subr.mxu0 0.0
    %4561 = vmatpush1.msra.mxu0 0.0
    %4562 = vmatprep.subr.mxu0 0.0
    %4563 = vmatpush1.msra.mxu0 0.0
    %4564 = vmatprep.subr.mxu0 0.0
    %4565 = vmatpush1.msra.mxu0 0.0
    %4566 = vmatprep.subr.mxu0 0.0
    %4567 = vmatpush1.msra.mxu0 0.0
    %4568 = vmatprep.subr.mxu0 0.0
    %4569 = vmatpush1.msra.mxu0 0.0
    %4570 = vmatprep.subr.mxu0 0.0
    %4571 = vmatpush1.msra.mxu0 0.0
    %4572 = vmatprep.subr.mxu0 0.0
    %4573 = vmatpush1.msra.mxu0 0.0
    %4574 = vmatprep.subr.mxu0 0.0
    %4575 = vmatpush1.msra.mxu0 0.0
    %4576 = vmatprep.subr.mxu0 0.0
    %4577 = vmatpush1.msra.mxu0 0.0
    %4578 = vmatprep.subr.mxu0 0.0
    %4579 = vmatpush1.msra.mxu0 0.0
    %4580 = vmatprep.subr.mxu0 0.0
    %4581 = vmatpush1.msra.mxu0 0.0
    %4582 = vmatprep.subr.mxu0 0.0
    %4583 = vmatpush1.msra.mxu0 0.0
    %4584 = vmatprep.subr.mxu0 0.0
    %4585 = vmatpush1.msra.mxu0 0.0
    %4586 = vmatprep.subr.mxu0 0.0
    %4587 = vmatpush1.msra.mxu0 0.0
    %4588 = vmatprep.subr.mxu0 0.0
    %4589 = vmatpush1.msra.mxu0 0.0
    %4590 = vmatprep.subr.mxu0 0.0
    %4591 = vmatpush1.msra.mxu0 0.0
    %4592 = vmatprep.subr.mxu0 0.0
    %4593 = vmatpush1.msra.mxu0 0.0
    %4594 = vmatprep.subr.mxu0 0.0
    %4595 = vmatpush1.msra.mxu0 0.0
    %4596 = vmatprep.subr.mxu0 0.0
    %4597 = vmatpush1.msra.mxu0 0.0
    %4598 = vmatprep.subr.mxu0 0.0
    %4599 = vmatpush1.msra.mxu0 0.0
    %4600 = vmatprep.subr.mxu0 0.0
    %4601 = vmatpush1.msra.mxu0 0.0
    %4602 = vmatprep.subr.mxu0 0.0
    %4603 = vmatpush1.msra.mxu0 0.0
    %4604 = vmatprep.subr.mxu0 0.0
    %4605 = vmatpush1.msra.mxu0 0.0
    %4606 = vmatprep.subr.mxu0 0.0
    %4607 = vmatpush1.msra.mxu0 0.0
    %4608 = vmatprep.subr.mxu0 0.0
    %4609 = vmatpush1.msra.mxu0 0.0
    %4610 = vmatprep.subr.mxu0 0.0
    %4611 = vmatpush1.msra.mxu0 0.0
    %4612 = vmatprep.subr.mxu0 0.0
    %4613 = vmatpush1.msra.mxu0 0.0
    %4614 = vmatprep.subr.mxu0 0.0
    %4615 = vmatpush1.msra.mxu0 0.0
    %4616 = vmatprep.mubr.f32.mxu0 0.0
    %4617 = vmatmul.mubr.f32.gmra.mrb[0].mxu0 %v4550
    %v4618 = vpop.f32.mrb[0].mxu0
    %v4619 = vadd.f32 0.0, %v4618
    %v4620 = vpop.f32.mrb[0].mxu0
    %4621 = vdwg.mxu0
    %v4622 = vsel %vm344, %v3697, 0
    %4624 = vmatprep.subr.mxu0 0.0
    %4625 = vmatpush1.msra.mxu0 %v198
    %4626 = vmatprep.subr.mxu0 0.0
    %4627 = vmatpush1.msra.mxu0 0.0
    %4628 = vmatprep.subr.mxu0 0.0
    %4629 = vmatpush1.msra.mxu0 0.0
    %4630 = vmatprep.subr.mxu0 0.0
    %4631 = vmatpush1.msra.mxu0 0.0
    %4632 = vmatprep.subr.mxu0 0.0
    %4633 = vmatpush1.msra.mxu0 0.0
    %4634 = vmatprep.subr.mxu0 0.0
    %4635 = vmatpush1.msra.mxu0 0.0
    %4636 = vmatprep.subr.mxu0 0.0
    %4637 = vmatpush1.msra.mxu0 0.0
    %4638 = vmatprep.subr.mxu0 0.0
    %4639 = vmatpush1.msra.mxu0 0.0
    %4640 = vmatprep.subr.mxu0 0.0
    %4641 = vmatpush1.msra.mxu0 0.0
    %4642 = vmatprep.subr.mxu0 0.0
    %4643 = vmatpush1.msra.mxu0 0.0
    %4644 = vmatprep.subr.mxu0 0.0
    %4645 = vmatpush1.msra.mxu0 0.0
    %4646 = vmatprep.subr.mxu0 0.0
    %4647 = vmatpush1.msra.mxu0 0.0
    %4648 = vmatprep.subr.mxu0 0.0
    %4649 = vmatpush1.msra.mxu0 0.0
    %4650 = vmatprep.subr.mxu0 0.0
    %4651 = vmatpush1.msra.mxu0 0.0
    %4652 = vmatprep.subr.mxu0 0.0
    %4653 = vmatpush1.msra.mxu0 0.0
    %4654 = vmatprep.subr.mxu0 0.0
    %4655 = vmatpush1.msra.mxu0 0.0
    %4656 = vmatprep.subr.mxu0 0.0
    %4657 = vmatpush1.msra.mxu0 0.0
    %4658 = vmatprep.subr.mxu0 0.0
    %4659 = vmatpush1.msra.mxu0 0.0
    %4660 = vmatprep.subr.mxu0 0.0
    %4661 = vmatpush1.msra.mxu0 0.0
    %4662 = vmatprep.subr.mxu0 0.0
    %4663 = vmatpush1.msra.mxu0 0.0
    %4664 = vmatprep.subr.mxu0 0.0
    %4665 = vmatpush1.msra.mxu0 0.0
    %4666 = vmatprep.subr.mxu0 0.0
    %4667 = vmatpush1.msra.mxu0 0.0
    %4668 = vmatprep.subr.mxu0 0.0
    %4669 = vmatpush1.msra.mxu0 0.0
    %4670 = vmatprep.subr.mxu0 0.0
    %4671 = vmatpush1.msra.mxu0 0.0
    %4672 = vmatprep.subr.mxu0 0.0
    %4673 = vmatpush1.msra.mxu0 0.0
    %4674 = vmatprep.subr.mxu0 0.0
    %4675 = vmatpush1.msra.mxu0 0.0
    %4676 = vmatprep.subr.mxu0 0.0
    %4677 = vmatpush1.msra.mxu0 0.0
    %4678 = vmatprep.subr.mxu0 0.0
    %4679 = vmatpush1.msra.mxu0 0.0
    %4680 = vmatprep.subr.mxu0 0.0
    %4681 = vmatpush1.msra.mxu0 0.0
    %4682 = vmatprep.subr.mxu0 0.0
    %4683 = vmatpush1.msra.mxu0 0.0
    %4684 = vmatprep.subr.mxu0 0.0
    %4685 = vmatpush1.msra.mxu0 0.0
    %4686 = vmatprep.subr.mxu0 0.0
    %4687 = vmatpush1.msra.mxu0 0.0
    %4688 = vmatprep.mubr.f32.mxu0 0.0
    %4689 = vmatmul.mubr.f32.gmra.mrb[0].mxu0 %v4622
    %v4690 = vpop.f32.mrb[0].mxu0
    %v4691 = vadd.f32 0.0, %v4690
    %v4692 = vpop.f32.mrb[0].mxu0
    %4693 = vdwg.mxu0
    %v4694 = vsel %vm344, %v3698, 0
    %4696 = vmatprep.subr.mxu0 0.0
    %4697 = vmatpush1.msra.mxu0 %v199
    %4698 = vmatprep.subr.mxu0 0.0
    %4699 = vmatpush1.msra.mxu0 0.0
    %4700 = vmatprep.subr.mxu0 0.0
    %4701 = vmatpush1.msra.mxu0 0.0
    %4702 = vmatprep.subr.mxu0 0.0
    %4703 = vmatpush1.msra.mxu0 0.0
    %4704 = vmatprep.subr.mxu0 0.0
    %4705 = vmatpush1.msra.mxu0 0.0
    %4706 = vmatprep.subr.mxu0 0.0
    %4707 = vmatpush1.msra.mxu0 0.0
    %4708 = vmatprep.subr.mxu0 0.0
    %4709 = vmatpush1.msra.mxu0 0.0
    %4710 = vmatprep.subr.mxu0 0.0
    %4711 = vmatpush1.msra.mxu0 0.0
    %4712 = vmatprep.subr.mxu0 0.0
    %4713 = vmatpush1.msra.mxu0 0.0
    %4714 = vmatprep.subr.mxu0 0.0
    %4715 = vmatpush1.msra.mxu0 0.0
    %4716 = vmatprep.subr.mxu0 0.0
    %4717 = vmatpush1.msra.mxu0 0.0
    %4718 = vmatprep.subr.mxu0 0.0
    %4719 = vmatpush1.msra.mxu0 0.0
    %4720 = vmatprep.subr.mxu0 0.0
    %4721 = vmatpush1.msra.mxu0 0.0
    %4722 = vmatprep.subr.mxu0 0.0
    %4723 = vmatpush1.msra.mxu0 0.0
    %4724 = vmatprep.subr.mxu0 0.0
    %4725 = vmatpush1.msra.mxu0 0.0
    %4726 = vmatprep.subr.mxu0 0.0
    %4727 = vmatpush1.msra.mxu0 0.0
    %4728 = vmatprep.subr.mxu0 0.0
    %4729 = vmatpush1.msra.mxu0 0.0
    %4730 = vmatprep.subr.mxu0 0.0
    %4731 = vmatpush1.msra.mxu0 0.0
    %4732 = vmatprep.subr.mxu0 0.0
    %4733 = vmatpush1.msra.mxu0 0.0
    %4734 = vmatprep.subr.mxu0 0.0
    %4735 = vmatpush1.msra.mxu0 0.0
    %4736 = vmatprep.subr.mxu0 0.0
    %4737 = vmatpush1.msra.mxu0 0.0
    %4738 = vmatprep.subr.mxu0 0.0
    %4739 = vmatpush1.msra.mxu0 0.0
    %4740 = vmatprep.subr.mxu0 0.0
    %4741 = vmatpush1.msra.mxu0 0.0
    %4742 = vmatprep.subr.mxu0 0.0
    %4743 = vmatpush1.msra.mxu0 0.0
    %4744 = vmatprep.subr.mxu0 0.0
    %4745 = vmatpush1.msra.mxu0 0.0
    %4746 = vmatprep.subr.mxu0 0.0
    %4747 = vmatpush1.msra.mxu0 0.0
    %4748 = vmatprep.subr.mxu0 0.0
    %4749 = vmatpush1.msra.mxu0 0.0
    %4750 = vmatprep.subr.mxu0 0.0
    %4751 = vmatpush1.msra.mxu0 0.0
    %4752 = vmatprep.subr.mxu0 0.0
    %4753 = vmatpush1.msra.mxu0 0.0
    %4754 = vmatprep.subr.mxu0 0.0
    %4755 = vmatpush1.msra.mxu0 0.0
    %4756 = vmatprep.subr.mxu0 0.0
    %4757 = vmatpush1.msra.mxu0 0.0
    %4758 = vmatprep.subr.mxu0 0.0
    %4759 = vmatpush1.msra.mxu0 0.0
    %4760 = vmatprep.mubr.f32.mxu0 0.0
    %4761 = vmatmul.mubr.f32.gmra.mrb[0].mxu0 %v4694
    %v4762 = vpop.f32.mrb[0].mxu0
    %v4763 = vadd.f32 0.0, %v4762
    %v4764 = vpop.f32.mrb[0].mxu0
    %4765 = vdwg.mxu0
    %v4766 = vsel %vm344, %v3699, 0
    %4768 = vmatprep.subr.mxu0 0.0
    %4769 = vmatpush1.msra.mxu0 %v200
    %4770 = vmatprep.subr.mxu0 0.0
    %4771 = vmatpush1.msra.mxu0 0.0
    %4772 = vmatprep.subr.mxu0 0.0
    %4773 = vmatpush1.msra.mxu0 0.0
    %4774 = vmatprep.subr.mxu0 0.0
    %4775 = vmatpush1.msra.mxu0 0.0
    %4776 = vmatprep.subr.mxu0 0.0
    %4777 = vmatpush1.msra.mxu0 0.0
    %4778 = vmatprep.subr.mxu0 0.0
    %4779 = vmatpush1.msra.mxu0 0.0
    %4780 = vmatprep.subr.mxu0 0.0
    %4781 = vmatpush1.msra.mxu0 0.0
    %4782 = vmatprep.subr.mxu0 0.0
    %4783 = vmatpush1.msra.mxu0 0.0
    %4784 = vmatprep.subr.mxu0 0.0
    %4785 = vmatpush1.msra.mxu0 0.0
    %4786 = vmatprep.subr.mxu0 0.0
    %4787 = vmatpush1.msra.mxu0 0.0
    %4788 = vmatprep.subr.mxu0 0.0
    %4789 = vmatpush1.msra.mxu0 0.0
    %4790 = vmatprep.subr.mxu0 0.0
    %4791 = vmatpush1.msra.mxu0 0.0
    %4792 = vmatprep.subr.mxu0 0.0
    %4793 = vmatpush1.msra.mxu0 0.0
    %4794 = vmatprep.subr.mxu0 0.0
    %4795 = vmatpush1.msra.mxu0 0.0
    %4796 = vmatprep.subr.mxu0 0.0
    %4797 = vmatpush1.msra.mxu0 0.0
    %4798 = vmatprep.subr.mxu0 0.0
    %4799 = vmatpush1.msra.mxu0 0.0
    %4800 = vmatprep.subr.mxu0 0.0
    %4801 = vmatpush1.msra.mxu0 0.0
    %4802 = vmatprep.subr.mxu0 0.0
    %4803 = vmatpush1.msra.mxu0 0.0
    %4804 = vmatprep.subr.mxu0 0.0
    %4805 = vmatpush1.msra.mxu0 0.0
    %4806 = vmatprep.subr.mxu0 0.0
    %4807 = vmatpush1.msra.mxu0 0.0
    %4808 = vmatprep.subr.mxu0 0.0
    %4809 = vmatpush1.msra.mxu0 0.0
    %4810 = vmatprep.subr.mxu0 0.0
    %4811 = vmatpush1.msra.mxu0 0.0
    %4812 = vmatprep.subr.mxu0 0.0
    %4813 = vmatpush1.msra.mxu0 0.0
    %4814 = vmatprep.subr.mxu0 0.0
    %4815 = vmatpush1.msra.mxu0 0.0
    %4816 = vmatprep.subr.mxu0 0.0
    %4817 = vmatpush1.msra.mxu0 0.0
    %4818 = vmatprep.subr.mxu0 0.0
    %4819 = vmatpush1.msra.mxu0 0.0
    %4820 = vmatprep.subr.mxu0 0.0
    %4821 = vmatpush1.msra.mxu0 0.0
    %4822 = vmatprep.subr.mxu0 0.0
    %4823 = vmatpush1.msra.mxu0 0.0
    %4824 = vmatprep.subr.mxu0 0.0
    %4825 = vmatpush1.msra.mxu0 0.0
    %4826 = vmatprep.subr.mxu0 0.0
    %4827 = vmatpush1.msra.mxu0 0.0
    %4828 = vmatprep.subr.mxu0 0.0
    %4829 = vmatpush1.msra.mxu0 0.0
    %4830 = vmatprep.subr.mxu0 0.0
    %4831 = vmatpush1.msra.mxu0 0.0
    %4832 = vmatprep.mubr.f32.mxu0 0.0
    %4833 = vmatmul.mubr.f32.gmra.mrb[0].mxu0 %v4766
    %v4834 = vpop.f32.mrb[0].mxu0
    %v4835 = vadd.f32 0.0, %v4834
    %v4836 = vpop.f32.mrb[0].mxu0
    %4837 = vdwg.mxu0
    %v4838 = vsel %vm344, %v3700, 0
    %4840 = vmatprep.subr.mxu0 0.0
    %4841 = vmatpush1.msra.mxu0 %v201
    %4842 = vmatprep.subr.mxu0 0.0
    %4843 = vmatpush1.msra.mxu0 0.0
    %4844 = vmatprep.subr.mxu0 0.0
    %4845 = vmatpush1.msra.mxu0 0.0
    %4846 = vmatprep.subr.mxu0 0.0
    %4847 = vmatpush1.msra.mxu0 0.0
    %4848 = vmatprep.subr.mxu0 0.0
    %4849 = vmatpush1.msra.mxu0 0.0
    %4850 = vmatprep.subr.mxu0 0.0
    %4851 = vmatpush1.msra.mxu0 0.0
    %4852 = vmatprep.subr.mxu0 0.0
    %4853 = vmatpush1.msra.mxu0 0.0
    %4854 = vmatprep.subr.mxu0 0.0
    %4855 = vmatpush1.msra.mxu0 0.0
    %4856 = vmatprep.subr.mxu0 0.0
    %4857 = vmatpush1.msra.mxu0 0.0
    %4858 = vmatprep.subr.mxu0 0.0
    %4859 = vmatpush1.msra.mxu0 0.0
    %4860 = vmatprep.subr.mxu0 0.0
    %4861 = vmatpush1.msra.mxu0 0.0
    %4862 = vmatprep.subr.mxu0 0.0
    %4863 = vmatpush1.msra.mxu0 0.0
    %4864 = vmatprep.subr.mxu0 0.0
    %4865 = vmatpush1.msra.mxu0 0.0
    %4866 = vmatprep.subr.mxu0 0.0
    %4867 = vmatpush1.msra.mxu0 0.0
    %4868 = vmatprep.subr.mxu0 0.0
    %4869 = vmatpush1.msra.mxu0 0.0
    %4870 = vmatprep.subr.mxu0 0.0
    %4871 = vmatpush1.msra.mxu0 0.0
    %4872 = vmatprep.subr.mxu0 0.0
    %4873 = vmatpush1.msra.mxu0 0.0
    %4874 = vmatprep.subr.mxu0 0.0
    %4875 = vmatpush1.msra.mxu0 0.0
    %4876 = vmatprep.subr.mxu0 0.0
    %4877 = vmatpush1.msra.mxu0 0.0
    %4878 = vmatprep.subr.mxu0 0.0
    %4879 = vmatpush1.msra.mxu0 0.0
    %4880 = vmatprep.subr.mxu0 0.0
    %4881 = vmatpush1.msra.mxu0 0.0
    %4882 = vmatprep.subr.mxu0 0.0
    %4883 = vmatpush1.msra.mxu0 0.0
    %4884 = vmatprep.subr.mxu0 0.0
    %4885 = vmatpush1.msra.mxu0 0.0
    %4886 = vmatprep.subr.mxu0 0.0
    %4887 = vmatpush1.msra.mxu0 0.0
    %4888 = vmatprep.subr.mxu0 0.0
    %4889 = vmatpush1.msra.mxu0 0.0
    %4890 = vmatprep.subr.mxu0 0.0
    %4891 = vmatpush1.msra.mxu0 0.0
    %4892 = vmatprep.subr.mxu0 0.0
    %4893 = vmatpush1.msra.mxu0 0.0
    %4894 = vmatprep.subr.mxu0 0.0
    %4895 = vmatpush1.msra.mxu0 0.0
    %4896 = vmatprep.subr.mxu0 0.0
    %4897 = vmatpush1.msra.mxu0 0.0
    %4898 = vmatprep.subr.mxu0 0.0
    %4899 = vmatpush1.msra.mxu0 0.0
    %4900 = vmatprep.subr.mxu0 0.0
    %4901 = vmatpush1.msra.mxu0 0.0
    %4902 = vmatprep.subr.mxu0 0.0
    %4903 = vmatpush1.msra.mxu0 0.0
    %4904 = vmatprep.mubr.f32.mxu0 0.0
    %4905 = vmatmul.mubr.f32.gmra.mrb[0].mxu0 %v4838
    %v4906 = vpop.f32.mrb[0].mxu0
    %v4907 = vadd.f32 0.0, %v4906
    %v4908 = vpop.f32.mrb[0].mxu0
    %4909 = vdwg.mxu0
    %v4910 = vsel %vm344, %v3701, 0
    %4912 = vmatprep.subr.mxu0 0.0
    %4913 = vmatpush1.msra.mxu0 %v202
    %4914 = vmatprep.subr.mxu0 0.0
    %4915 = vmatpush1.msra.mxu0 0.0
    %4916 = vmatprep.subr.mxu0 0.0
    %4917 = vmatpush1.msra.mxu0 0.0
    %4918 = vmatprep.subr.mxu0 0.0
    %4919 = vmatpush1.msra.mxu0 0.0
    %4920 = vmatprep.subr.mxu0 0.0
    %4921 = vmatpush1.msra.mxu0 0.0
    %4922 = vmatprep.subr.mxu0 0.0
    %4923 = vmatpush1.msra.mxu0 0.0
    %4924 = vmatprep.subr.mxu0 0.0
    %4925 = vmatpush1.msra.mxu0 0.0
    %4926 = vmatprep.subr.mxu0 0.0
    %4927 = vmatpush1.msra.mxu0 0.0
    %4928 = vmatprep.subr.mxu0 0.0
    %4929 = vmatpush1.msra.mxu0 0.0
    %4930 = vmatprep.subr.mxu0 0.0
    %4931 = vmatpush1.msra.mxu0 0.0
    %4932 = vmatprep.subr.mxu0 0.0
    %4933 = vmatpush1.msra.mxu0 0.0
    %4934 = vmatprep.subr.mxu0 0.0
    %4935 = vmatpush1.msra.mxu0 0.0
    %4936 = vmatprep.subr.mxu0 0.0
    %4937 = vmatpush1.msra.mxu0 0.0
    %4938 = vmatprep.subr.mxu0 0.0
    %4939 = vmatpush1.msra.mxu0 0.0
    %4940 = vmatprep.subr.mxu0 0.0
    %4941 = vmatpush1.msra.mxu0 0.0
    %4942 = vmatprep.subr.mxu0 0.0
    %4943 = vmatpush1.msra.mxu0 0.0
    %4944 = vmatprep.subr.mxu0 0.0
    %4945 = vmatpush1.msra.mxu0 0.0
    %4946 = vmatprep.subr.mxu0 0.0
    %4947 = vmatpush1.msra.mxu0 0.0
    %4948 = vmatprep.subr.mxu0 0.0
    %4949 = vmatpush1.msra.mxu0 0.0
    %4950 = vmatprep.subr.mxu0 0.0
    %4951 = vmatpush1.msra.mxu0 0.0
    %4952 = vmatprep.subr.mxu0 0.0
    %4953 = vmatpush1.msra.mxu0 0.0
    %4954 = vmatprep.subr.mxu0 0.0
    %4955 = vmatpush1.msra.mxu0 0.0
    %4956 = vmatprep.subr.mxu0 0.0
    %4957 = vmatpush1.msra.mxu0 0.0
    %4958 = vmatprep.subr.mxu0 0.0
    %4959 = vmatpush1.msra.mxu0 0.0
    %4960 = vmatprep.subr.mxu0 0.0
    %4961 = vmatpush1.msra.mxu0 0.0
    %4962 = vmatprep.subr.mxu0 0.0
    %4963 = vmatpush1.msra.mxu0 0.0
    %4964 = vmatprep.subr.mxu0 0.0
    %4965 = vmatpush1.msra.mxu0 0.0
    %4966 = vmatprep.subr.mxu0 0.0
    %4967 = vmatpush1.msra.mxu0 0.0
    %4968 = vmatprep.subr.mxu0 0.0
    %4969 = vmatpush1.msra.mxu0 0.0
    %4970 = vmatprep.subr.mxu0 0.0
    %4971 = vmatpush1.msra.mxu0 0.0
    %4972 = vmatprep.subr.mxu0 0.0
    %4973 = vmatpush1.msra.mxu0 0.0
    %4974 = vmatprep.subr.mxu0 0.0
    %4975 = vmatpush1.msra.mxu0 0.0
    %4976 = vmatprep.mubr.f32.mxu0 0.0
    %4977 = vmatmul.mubr.f32.gmra.mrb[0].mxu0 %v4910
    %v4978 = vpop.f32.mrb[0].mxu0
    %v4979 = vadd.f32 0.0, %v4978
    %v4980 = vpop.f32.mrb[0].mxu0
    %4981 = vdwg.mxu0
    %v4982 = vsel %vm344, %v3702, 0
    %4984 = vmatprep.subr.mxu0 0.0
    %4985 = vmatpush1.msra.mxu0 %v203
    %4986 = vmatprep.subr.mxu0 0.0
    %4987 = vmatpush1.msra.mxu0 0.0
    %4988 = vmatprep.subr.mxu0 0.0
    %4989 = vmatpush1.msra.mxu0 0.0
    %4990 = vmatprep.subr.mxu0 0.0
    %4991 = vmatpush1.msra.mxu0 0.0
    %4992 = vmatprep.subr.mxu0 0.0
    %4993 = vmatpush1.msra.mxu0 0.0
    %4994 = vmatprep.subr.mxu0 0.0
    %4995 = vmatpush1.msra.mxu0 0.0
    %4996 = vmatprep.subr.mxu0 0.0
    %4997 = vmatpush1.msra.mxu0 0.0
    %4998 = vmatprep.subr.mxu0 0.0
    %4999 = vmatpush1.msra.mxu0 0.0
    %5000 = vmatprep.subr.mxu0 0.0
    %5001 = vmatpush1.msra.mxu0 0.0
    %5002 = vmatprep.subr.mxu0 0.0
    %5003 = vmatpush1.msra.mxu0 0.0
    %5004 = vmatprep.subr.mxu0 0.0
    %5005 = vmatpush1.msra.mxu0 0.0
    %5006 = vmatprep.subr.mxu0 0.0
    %5007 = vmatpush1.msra.mxu0 0.0
    %5008 = vmatprep.subr.mxu0 0.0
    %5009 = vmatpush1.msra.mxu0 0.0
    %5010 = vmatprep.subr.mxu0 0.0
    %5011 = vmatpush1.msra.mxu0 0.0
    %5012 = vmatprep.subr.mxu0 0.0
    %5013 = vmatpush1.msra.mxu0 0.0
    %5014 = vmatprep.subr.mxu0 0.0
    %5015 = vmatpush1.msra.mxu0 0.0
    %5016 = vmatprep.subr.mxu0 0.0
    %5017 = vmatpush1.msra.mxu0 0.0
    %5018 = vmatprep.subr.mxu0 0.0
    %5019 = vmatpush1.msra.mxu0 0.0
    %5020 = vmatprep.subr.mxu0 0.0
    %5021 = vmatpush1.msra.mxu0 0.0
    %5022 = vmatprep.subr.mxu0 0.0
    %5023 = vmatpush1.msra.mxu0 0.0
    %5024 = vmatprep.subr.mxu0 0.0
    %5025 = vmatpush1.msra.mxu0 0.0
    %5026 = vmatprep.subr.mxu0 0.0
    %5027 = vmatpush1.msra.mxu0 0.0
    %5028 = vmatprep.subr.mxu0 0.0
    %5029 = vmatpush1.msra.mxu0 0.0
    %5030 = vmatprep.subr.mxu0 0.0
    %5031 = vmatpush1.msra.mxu0 0.0
    %5032 = vmatprep.subr.mxu0 0.0
    %5033 = vmatpush1.msra.mxu0 0.0
    %5034 = vmatprep.subr.mxu0 0.0
    %5035 = vmatpush1.msra.mxu0 0.0
    %5036 = vmatprep.subr.mxu0 0.0
    %5037 = vmatpush1.msra.mxu0 0.0
    %5038 = vmatprep.subr.mxu0 0.0
    %5039 = vmatpush1.msra.mxu0 0.0
    %5040 = vmatprep.subr.mxu0 0.0
    %5041 = vmatpush1.msra.mxu0 0.0
    %5042 = vmatprep.subr.mxu0 0.0
    %5043 = vmatpush1.msra.mxu0 0.0
    %5044 = vmatprep.subr.mxu0 0.0
    %5045 = vmatpush1.msra.mxu0 0.0
    %5046 = vmatprep.subr.mxu0 0.0
    %5047 = vmatpush1.msra.mxu0 0.0
    %5048 = vmatprep.mubr.f32.mxu0 0.0
    %5049 = vmatmul.mubr.f32.gmra.mrb[0].mxu0 %v4982
    %v5050 = vpop.f32.mrb[0].mxu0
    %v5051 = vadd.f32 0.0, %v5050
    %v5052 = vpop.f32.mrb[0].mxu0
    %5053 = vdwg.mxu0
    %v5054 = vsel %vm344, %v3703, 0
    %5056 = vmatprep.subr.mxu0 0.0
    %5057 = vmatpush1.msra.mxu0 %v204
    %5058 = vmatprep.subr.mxu0 0.0
    %5059 = vmatpush1.msra.mxu0 0.0
    %5060 = vmatprep.subr.mxu0 0.0
    %5061 = vmatpush1.msra.mxu0 0.0
    %5062 = vmatprep.subr.mxu0 0.0
    %5063 = vmatpush1.msra.mxu0 0.0
    %5064 = vmatprep.subr.mxu0 0.0
    %5065 = vmatpush1.msra.mxu0 0.0
    %5066 = vmatprep.subr.mxu0 0.0
    %5067 = vmatpush1.msra.mxu0 0.0
    %5068 = vmatprep.subr.mxu0 0.0
    %5069 = vmatpush1.msra.mxu0 0.0
    %5070 = vmatprep.subr.mxu0 0.0
    %5071 = vmatpush1.msra.mxu0 0.0
    %5072 = vmatprep.subr.mxu0 0.0
    %5073 = vmatpush1.msra.mxu0 0.0
    %5074 = vmatprep.subr.mxu0 0.0
    %5075 = vmatpush1.msra.mxu0 0.0
    %5076 = vmatprep.subr.mxu0 0.0
    %5077 = vmatpush1.msra.mxu0 0.0
    %5078 = vmatprep.subr.mxu0 0.0
    %5079 = vmatpush1.msra.mxu0 0.0
    %5080 = vmatprep.subr.mxu0 0.0
    %5081 = vmatpush1.msra.mxu0 0.0
    %5082 = vmatprep.subr.mxu0 0.0
    %5083 = vmatpush1.msra.mxu0 0.0
    %5084 = vmatprep.subr.mxu0 0.0
    %5085 = vmatpush1.msra.mxu0 0.0
    %5086 = vmatprep.subr.mxu0 0.0
    %5087 = vmatpush1.msra.mxu0 0.0
    %5088 = vmatprep.subr.mxu0 0.0
    %5089 = vmatpush1.msra.mxu0 0.0
    %5090 = vmatprep.subr.mxu0 0.0
    %5091 = vmatpush1.msra.mxu0 0.0
    %5092 = vmatprep.subr.mxu0 0.0
    %5093 = vmatpush1.msra.mxu0 0.0
    %5094 = vmatprep.subr.mxu0 0.0
    %5095 = vmatpush1.msra.mxu0 0.0
    %5096 = vmatprep.subr.mxu0 0.0
    %5097 = vmatpush1.msra.mxu0 0.0
    %5098 = vmatprep.subr.mxu0 0.0
    %5099 = vmatpush1.msra.mxu0 0.0
    %5100 = vmatprep.subr.mxu0 0.0
    %5101 = vmatpush1.msra.mxu0 0.0
    %5102 = vmatprep.subr.mxu0 0.0
    %5103 = vmatpush1.msra.mxu0 0.0
    %5104 = vmatprep.subr.mxu0 0.0
    %5105 = vmatpush1.msra.mxu0 0.0
    %5106 = vmatprep.subr.mxu0 0.0
    %5107 = vmatpush1.msra.mxu0 0.0
    %5108 = vmatprep.subr.mxu0 0.0
    %5109 = vmatpush1.msra.mxu0 0.0
    %5110 = vmatprep.subr.mxu0 0.0
    %5111 = vmatpush1.msra.mxu0 0.0
    %5112 = vmatprep.subr.mxu0 0.0
    %5113 = vmatpush1.msra.mxu0 0.0
    %5114 = vmatprep.subr.mxu0 0.0
    %5115 = vmatpush1.msra.mxu0 0.0
    %5116 = vmatprep.subr.mxu0 0.0
    %5117 = vmatpush1.msra.mxu0 0.0
    %5118 = vmatprep.subr.mxu0 0.0
    %5119 = vmatpush1.msra.mxu0 0.0
    %5120 = vmatprep.mubr.f32.mxu0 0.0
    %5121 = vmatmul.mubr.f32.gmra.mrb[0].mxu0 %v5054
    %v5122 = vpop.f32.mrb[0].mxu0
    %v5123 = vadd.f32 0.0, %v5122
    %v5124 = vpop.f32.mrb[0].mxu0
    %5125 = vdwg.mxu0
    %v5126 = vsel %vm344, %v3704, 0
    %5128 = vmatprep.subr.mxu0 0.0
    %5129 = vmatpush1.msra.mxu0 %v205
    %5130 = vmatprep.subr.mxu0 0.0
    %5131 = vmatpush1.msra.mxu0 0.0
    %5132 = vmatprep.subr.mxu0 0.0
    %5133 = vmatpush1.msra.mxu0 0.0
    %5134 = vmatprep.subr.mxu0 0.0
    %5135 = vmatpush1.msra.mxu0 0.0
    %5136 = vmatprep.subr.mxu0 0.0
    %5137 = vmatpush1.msra.mxu0 0.0
    %5138 = vmatprep.subr.mxu0 0.0
    %5139 = vmatpush1.msra.mxu0 0.0
    %5140 = vmatprep.subr.mxu0 0.0
    %5141 = vmatpush1.msra.mxu0 0.0
    %5142 = vmatprep.subr.mxu0 0.0
    %5143 = vmatpush1.msra.mxu0 0.0
    %5144 = vmatprep.subr.mxu0 0.0
    %5145 = vmatpush1.msra.mxu0 0.0
    %5146 = vmatprep.subr.mxu0 0.0
    %5147 = vmatpush1.msra.mxu0 0.0
    %5148 = vmatprep.subr.mxu0 0.0
    %5149 = vmatpush1.msra.mxu0 0.0
    %5150 = vmatprep.subr.mxu0 0.0
    %5151 = vmatpush1.msra.mxu0 0.0
    %5152 = vmatprep.subr.mxu0 0.0
    %5153 = vmatpush1.msra.mxu0 0.0
    %5154 = vmatprep.subr.mxu0 0.0
    %5155 = vmatpush1.msra.mxu0 0.0
    %5156 = vmatprep.subr.mxu0 0.0
    %5157 = vmatpush1.msra.mxu0 0.0
    %5158 = vmatprep.subr.mxu0 0.0
    %5159 = vmatpush1.msra.mxu0 0.0
    %5160 = vmatprep.subr.mxu0 0.0
    %5161 = vmatpush1.msra.mxu0 0.0
    %5162 = vmatprep.subr.mxu0 0.0
    %5163 = vmatpush1.msra.mxu0 0.0
    %5164 = vmatprep.subr.mxu0 0.0
    %5165 = vmatpush1.msra.mxu0 0.0
    %5166 = vmatprep.subr.mxu0 0.0
    %5167 = vmatpush1.msra.mxu0 0.0
    %5168 = vmatprep.subr.mxu0 0.0
    %5169 = vmatpush1.msra.mxu0 0.0
    %5170 = vmatprep.subr.mxu0 0.0
    %5171 = vmatpush1.msra.mxu0 0.0
    %5172 = vmatprep.subr.mxu0 0.0
    %5173 = vmatpush1.msra.mxu0 0.0
    %5174 = vmatprep.subr.mxu0 0.0
    %5175 = vmatpush1.msra.mxu0 0.0
    %5176 = vmatprep.subr.mxu0 0.0
    %5177 = vmatpush1.msra.mxu0 0.0
    %5178 = vmatprep.subr.mxu0 0.0
    %5179 = vmatpush1.msra.mxu0 0.0
    %5180 = vmatprep.subr.mxu0 0.0
    %5181 = vmatpush1.msra.mxu0 0.0
    %5182 = vmatprep.subr.mxu0 0.0
    %5183 = vmatpush1.msra.mxu0 0.0
    %5184 = vmatprep.subr.mxu0 0.0
    %5185 = vmatpush1.msra.mxu0 0.0
    %5186 = vmatprep.subr.mxu0 0.0
    %5187 = vmatpush1.msra.mxu0 0.0
    %5188 = vmatprep.subr.mxu0 0.0
    %5189 = vmatpush1.msra.mxu0 0.0
    %5190 = vmatprep.subr.mxu0 0.0
    %5191 = vmatpush1.msra.mxu0 0.0
    %5192 = vmatprep.mubr.f32.mxu0 0.0
    %5193 = vmatmul.mubr.f32.gmra.mrb[0].mxu0 %v5126
    %v5194 = vpop.f32.mrb[0].mxu0
    %v5195 = vadd.f32 0.0, %v5194
    %v5196 = vpop.f32.mrb[0].mxu0
    %5197 = vdwg.mxu0
    %v5198 = vsel %vm344, %v3705, 0
    %5200 = vmatprep.subr.mxu0 0.0
    %5201 = vmatpush1.msra.mxu0 %v206
    %5202 = vmatprep.subr.mxu0 0.0
    %5203 = vmatpush1.msra.mxu0 0.0
    %5204 = vmatprep.subr.mxu0 0.0
    %5205 = vmatpush1.msra.mxu0 0.0
    %5206 = vmatprep.subr.mxu0 0.0
    %5207 = vmatpush1.msra.mxu0 0.0
    %5208 = vmatprep.subr.mxu0 0.0
    %5209 = vmatpush1.msra.mxu0 0.0
    %5210 = vmatprep.subr.mxu0 0.0
    %5211 = vmatpush1.msra.mxu0 0.0
    %5212 = vmatprep.subr.mxu0 0.0
    %5213 = vmatpush1.msra.mxu0 0.0
    %5214 = vmatprep.subr.mxu0 0.0
    %5215 = vmatpush1.msra.mxu0 0.0
    %5216 = vmatprep.subr.mxu0 0.0
    %5217 = vmatpush1.msra.mxu0 0.0
    %5218 = vmatprep.subr.mxu0 0.0
    %5219 = vmatpush1.msra.mxu0 0.0
    %5220 = vmatprep.subr.mxu0 0.0
    %5221 = vmatpush1.msra.mxu0 0.0
    %5222 = vmatprep.subr.mxu0 0.0
    %5223 = vmatpush1.msra.mxu0 0.0
    %5224 = vmatprep.subr.mxu0 0.0
    %5225 = vmatpush1.msra.mxu0 0.0
    %5226 = vmatprep.subr.mxu0 0.0
    %5227 = vmatpush1.msra.mxu0 0.0
    %5228 = vmatprep.subr.mxu0 0.0
    %5229 = vmatpush1.msra.mxu0 0.0
    %5230 = vmatprep.subr.mxu0 0.0
    %5231 = vmatpush1.msra.mxu0 0.0
    %5232 = vmatprep.subr.mxu0 0.0
    %5233 = vmatpush1.msra.mxu0 0.0
    %5234 = vmatprep.subr.mxu0 0.0
    %5235 = vmatpush1.msra.mxu0 0.0
    %5236 = vmatprep.subr.mxu0 0.0
    %5237 = vmatpush1.msra.mxu0 0.0
    %5238 = vmatprep.subr.mxu0 0.0
    %5239 = vmatpush1.msra.mxu0 0.0
    %5240 = vmatprep.subr.mxu0 0.0
    %5241 = vmatpush1.msra.mxu0 0.0
    %5242 = vmatprep.subr.mxu0 0.0
    %5243 = vmatpush1.msra.mxu0 0.0
    %5244 = vmatprep.subr.mxu0 0.0
    %5245 = vmatpush1.msra.mxu0 0.0
    %5246 = vmatprep.subr.mxu0 0.0
    %5247 = vmatpush1.msra.mxu0 0.0
    %5248 = vmatprep.subr.mxu0 0.0
    %5249 = vmatpush1.msra.mxu0 0.0
    %5250 = vmatprep.subr.mxu0 0.0
    %5251 = vmatpush1.msra.mxu0 0.0
    %5252 = vmatprep.subr.mxu0 0.0
    %5253 = vmatpush1.msra.mxu0 0.0
    %5254 = vmatprep.subr.mxu0 0.0
    %5255 = vmatpush1.msra.mxu0 0.0
    %5256 = vmatprep.subr.mxu0 0.0
    %5257 = vmatpush1.msra.mxu0 0.0
    %5258 = vmatprep.subr.mxu0 0.0
    %5259 = vmatpush1.msra.mxu0 0.0
    %5260 = vmatprep.subr.mxu0 0.0
    %5261 = vmatpush1.msra.mxu0 0.0
    %5262 = vmatprep.subr.mxu0 0.0
    %5263 = vmatpush1.msra.mxu0 0.0
    %5264 = vmatprep.mubr.f32.mxu0 0.0
    %5265 = vmatmul.mubr.f32.gmra.mrb[0].mxu0 %v5198
    %v5266 = vpop.f32.mrb[0].mxu0
    %v5267 = vadd.f32 0.0, %v5266
    %v5268 = vpop.f32.mrb[0].mxu0
    %5269 = vdwg.mxu0
    %v5270 = vsel %vm344, %v3706, 0
    %5272 = vmatprep.subr.mxu0 0.0
    %5273 = vmatpush1.msra.mxu0 %v207
    %5274 = vmatprep.subr.mxu0 0.0
    %5275 = vmatpush1.msra.mxu0 0.0
    %5276 = vmatprep.subr.mxu0 0.0
    %5277 = vmatpush1.msra.mxu0 0.0
    %5278 = vmatprep.subr.mxu0 0.0
    %5279 = vmatpush1.msra.mxu0 0.0
    %5280 = vmatprep.subr.mxu0 0.0
    %5281 = vmatpush1.msra.mxu0 0.0
    %5282 = vmatprep.subr.mxu0 0.0
    %5283 = vmatpush1.msra.mxu0 0.0
    %5284 = vmatprep.subr.mxu0 0.0
    %5285 = vmatpush1.msra.mxu0 0.0
    %5286 = vmatprep.subr.mxu0 0.0
    %5287 = vmatpush1.msra.mxu0 0.0
    %5288 = vmatprep.subr.mxu0 0.0
    %5289 = vmatpush1.msra.mxu0 0.0
    %5290 = vmatprep.subr.mxu0 0.0
    %5291 = vmatpush1.msra.mxu0 0.0
    %5292 = vmatprep.subr.mxu0 0.0
    %5293 = vmatpush1.msra.mxu0 0.0
    %5294 = vmatprep.subr.mxu0 0.0
    %5295 = vmatpush1.msra.mxu0 0.0
    %5296 = vmatprep.subr.mxu0 0.0
    %5297 = vmatpush1.msra.mxu0 0.0
    %5298 = vmatprep.subr.mxu0 0.0
    %5299 = vmatpush1.msra.mxu0 0.0
    %5300 = vmatprep.subr.mxu0 0.0
    %5301 = vmatpush1.msra.mxu0 0.0
    %5302 = vmatprep.subr.mxu0 0.0
    %5303 = vmatpush1.msra.mxu0 0.0
    %5304 = vmatprep.subr.mxu0 0.0
    %5305 = vmatpush1.msra.mxu0 0.0
    %5306 = vmatprep.subr.mxu0 0.0
    %5307 = vmatpush1.msra.mxu0 0.0
    %5308 = vmatprep.subr.mxu0 0.0
    %5309 = vmatpush1.msra.mxu0 0.0
    %5310 = vmatprep.subr.mxu0 0.0
    %5311 = vmatpush1.msra.mxu0 0.0
    %5312 = vmatprep.subr.mxu0 0.0
    %5313 = vmatpush1.msra.mxu0 0.0
    %5314 = vmatprep.subr.mxu0 0.0
    %5315 = vmatpush1.msra.mxu0 0.0
    %5316 = vmatprep.subr.mxu0 0.0
    %5317 = vmatpush1.msra.mxu0 0.0
    %5318 = vmatprep.subr.mxu0 0.0
    %5319 = vmatpush1.msra.mxu0 0.0
    %5320 = vmatprep.subr.mxu0 0.0
    %5321 = vmatpush1.msra.mxu0 0.0
    %5322 = vmatprep.subr.mxu0 0.0
    %5323 = vmatpush1.msra.mxu0 0.0
    %5324 = vmatprep.subr.mxu0 0.0
    %5325 = vmatpush1.msra.mxu0 0.0
    %5326 = vmatprep.subr.mxu0 0.0
    %5327 = vmatpush1.msra.mxu0 0.0
    %5328 = vmatprep.subr.mxu0 0.0
    %5329 = vmatpush1.msra.mxu0 0.0
    %5330 = vmatprep.subr.mxu0 0.0
    %5331 = vmatpush1.msra.mxu0 0.0
    %5332 = vmatprep.subr.mxu0 0.0
    %5333 = vmatpush1.msra.mxu0 0.0
    %5334 = vmatprep.subr.mxu0 0.0
    %5335 = vmatpush1.msra.mxu0 0.0
    %5336 = vmatprep.mubr.f32.mxu0 0.0
    %5337 = vmatmul.mubr.f32.gmra.mrb[0].mxu0 %v5270
    %v5338 = vpop.f32.mrb[0].mxu0
    %v5339 = vadd.f32 0.0, %v5338
    %v5340 = vpop.f32.mrb[0].mxu0
    %5341 = vdwg.mxu0
    %v5342 = vsel %vm344, %v3707, 0
    %5344 = vmatprep.subr.mxu0 0.0
    %5345 = vmatpush1.msra.mxu0 %v208
    %5346 = vmatprep.subr.mxu0 0.0
    %5347 = vmatpush1.msra.mxu0 0.0
    %5348 = vmatprep.subr.mxu0 0.0
    %5349 = vmatpush1.msra.mxu0 0.0
    %5350 = vmatprep.subr.mxu0 0.0
    %5351 = vmatpush1.msra.mxu0 0.0
    %5352 = vmatprep.subr.mxu0 0.0
    %5353 = vmatpush1.msra.mxu0 0.0
    %5354 = vmatprep.subr.mxu0 0.0
    %5355 = vmatpush1.msra.mxu0 0.0
    %5356 = vmatprep.subr.mxu0 0.0
    %5357 = vmatpush1.msra.mxu0 0.0
    %5358 = vmatprep.subr.mxu0 0.0
    %5359 = vmatpush1.msra.mxu0 0.0
    %5360 = vmatprep.subr.mxu0 0.0
    %5361 = vmatpush1.msra.mxu0 0.0
    %5362 = vmatprep.subr.mxu0 0.0
    %5363 = vmatpush1.msra.mxu0 0.0
    %5364 = vmatprep.subr.mxu0 0.0
    %5365 = vmatpush1.msra.mxu0 0.0
    %5366 = vmatprep.subr.mxu0 0.0
    %5367 = vmatpush1.msra.mxu0 0.0
    %5368 = vmatprep.subr.mxu0 0.0
    %5369 = vmatpush1.msra.mxu0 0.0
    %5370 = vmatprep.subr.mxu0 0.0
    %5371 = vmatpush1.msra.mxu0 0.0
    %5372 = vmatprep.subr.mxu0 0.0
    %5373 = vmatpush1.msra.mxu0 0.0
    %5374 = vmatprep.subr.mxu0 0.0
    %5375 = vmatpush1.msra.mxu0 0.0
    %5376 = vmatprep.subr.mxu0 0.0
    %5377 = vmatpush1.msra.mxu0 0.0
    %5378 = vmatprep.subr.mxu0 0.0
    %5379 = vmatpush1.msra.mxu0 0.0
    %5380 = vmatprep.subr.mxu0 0.0
    %5381 = vmatpush1.msra.mxu0 0.0
    %5382 = vmatprep.subr.mxu0 0.0
    %5383 = vmatpush1.msra.mxu0 0.0
    %5384 = vmatprep.subr.mxu0 0.0
    %5385 = vmatpush1.msra.mxu0 0.0
    %5386 = vmatprep.subr.mxu0 0.0
    %5387 = vmatpush1.msra.mxu0 0.0
    %5388 = vmatprep.subr.mxu0 0.0
    %5389 = vmatpush1.msra.mxu0 0.0
    %5390 = vmatprep.subr.mxu0 0.0
    %5391 = vmatpush1.msra.mxu0 0.0
    %5392 = vmatprep.subr.mxu0 0.0
    %5393 = vmatpush1.msra.mxu0 0.0
    %5394 = vmatprep.subr.mxu0 0.0
    %5395 = vmatpush1.msra.mxu0 0.0
    %5396 = vmatprep.subr.mxu0 0.0
    %5397 = vmatpush1.msra.mxu0 0.0
    %5398 = vmatprep.subr.mxu0 0.0
    %5399 = vmatpush1.msra.mxu0 0.0
    %5400 = vmatprep.subr.mxu0 0.0
    %5401 = vmatpush1.msra.mxu0 0.0
    %5402 = vmatprep.subr.mxu0 0.0
    %5403 = vmatpush1.msra.mxu0 0.0
    %5404 = vmatprep.subr.mxu0 0.0
    %5405 = vmatpush1.msra.mxu0 0.0
    %5406 = vmatprep.subr.mxu0 0.0
    %5407 = vmatpush1.msra.mxu0 0.0
    %5408 = vmatprep.mubr.f32.mxu0 0.0
    %5409 = vmatmul.mubr.f32.gmra.mrb[0].mxu0 %v5342
    %v5410 = vpop.f32.mrb[0].mxu0
    %v5411 = vadd.f32 0.0, %v5410
    %v5412 = vpop.f32.mrb[0].mxu0
    %5413 = vdwg.mxu0
    %v5414 = vsel %vm344, %v3708, 0
    %5416 = vmatprep.subr.mxu0 0.0
    %5417 = vmatpush1.msra.mxu0 %v209
    %5418 = vmatprep.subr.mxu0 0.0
    %5419 = vmatpush1.msra.mxu0 0.0
    %5420 = vmatprep.subr.mxu0 0.0
    %5421 = vmatpush1.msra.mxu0 0.0
    %5422 = vmatprep.subr.mxu0 0.0
    %5423 = vmatpush1.msra.mxu0 0.0
    %5424 = vmatprep.subr.mxu0 0.0
    %5425 = vmatpush1.msra.mxu0 0.0
    %5426 = vmatprep.subr.mxu0 0.0
    %5427 = vmatpush1.msra.mxu0 0.0
    %5428 = vmatprep.subr.mxu0 0.0
    %5429 = vmatpush1.msra.mxu0 0.0
    %5430 = vmatprep.subr.mxu0 0.0
    %5431 = vmatpush1.msra.mxu0 0.0
    %5432 = vmatprep.subr.mxu0 0.0
    %5433 = vmatpush1.msra.mxu0 0.0
    %5434 = vmatprep.subr.mxu0 0.0
    %5435 = vmatpush1.msra.mxu0 0.0
    %5436 = vmatprep.subr.mxu0 0.0
    %5437 = vmatpush1.msra.mxu0 0.0
    %5438 = vmatprep.subr.mxu0 0.0
    %5439 = vmatpush1.msra.mxu0 0.0
    %5440 = vmatprep.subr.mxu0 0.0
    %5441 = vmatpush1.msra.mxu0 0.0
    %5442 = vmatprep.subr.mxu0 0.0
    %5443 = vmatpush1.msra.mxu0 0.0
    %5444 = vmatprep.subr.mxu0 0.0
    %5445 = vmatpush1.msra.mxu0 0.0
    %5446 = vmatprep.subr.mxu0 0.0
    %5447 = vmatpush1.msra.mxu0 0.0
    %5448 = vmatprep.subr.mxu0 0.0
    %5449 = vmatpush1.msra.mxu0 0.0
    %5450 = vmatprep.subr.mxu0 0.0
    %5451 = vmatpush1.msra.mxu0 0.0
    %5452 = vmatprep.subr.mxu0 0.0
    %5453 = vmatpush1.msra.mxu0 0.0
    %5454 = vmatprep.subr.mxu0 0.0
    %5455 = vmatpush1.msra.mxu0 0.0
    %5456 = vmatprep.subr.mxu0 0.0
    %5457 = vmatpush1.msra.mxu0 0.0
    %5458 = vmatprep.subr.mxu0 0.0
    %5459 = vmatpush1.msra.mxu0 0.0
    %5460 = vmatprep.subr.mxu0 0.0
    %5461 = vmatpush1.msra.mxu0 0.0
    %5462 = vmatprep.subr.mxu0 0.0
    %5463 = vmatpush1.msra.mxu0 0.0
    %5464 = vmatprep.subr.mxu0 0.0
    %5465 = vmatpush1.msra.mxu0 0.0
    %5466 = vmatprep.subr.mxu0 0.0
    %5467 = vmatpush1.msra.mxu0 0.0
    %5468 = vmatprep.subr.mxu0 0.0
    %5469 = vmatpush1.msra.mxu0 0.0
    %5470 = vmatprep.subr.mxu0 0.0
    %5471 = vmatpush1.msra.mxu0 0.0
    %5472 = vmatprep.subr.mxu0 0.0
    %5473 = vmatpush1.msra.mxu0 0.0
    %5474 = vmatprep.subr.mxu0 0.0
    %5475 = vmatpush1.msra.mxu0 0.0
    %5476 = vmatprep.subr.mxu0 0.0
    %5477 = vmatpush1.msra.mxu0 0.0
    %5478 = vmatprep.subr.mxu0 0.0
    %5479 = vmatpush1.msra.mxu0 0.0
    %5480 = vmatprep.mubr.f32.mxu0 0.0
    %5481 = vmatmul.mubr.f32.gmra.mrb[0].mxu0 %v5414
    %v5482 = vpop.f32.mrb[0].mxu0
    %v5483 = vadd.f32 0.0, %v5482
    %v5484 = vpop.f32.mrb[0].mxu0
    %5485 = vdwg.mxu0
    %v5486 = vsel %vm344, %v3709, 0
    %5488 = vmatprep.subr.mxu0 0.0
    %5489 = vmatpush1.msra.mxu0 %v210
    %5490 = vmatprep.subr.mxu0 0.0
    %5491 = vmatpush1.msra.mxu0 0.0
    %5492 = vmatprep.subr.mxu0 0.0
    %5493 = vmatpush1.msra.mxu0 0.0
    %5494 = vmatprep.subr.mxu0 0.0
    %5495 = vmatpush1.msra.mxu0 0.0
    %5496 = vmatprep.subr.mxu0 0.0
    %5497 = vmatpush1.msra.mxu0 0.0
    %5498 = vmatprep.subr.mxu0 0.0
    %5499 = vmatpush1.msra.mxu0 0.0
    %5500 = vmatprep.subr.mxu0 0.0
    %5501 = vmatpush1.msra.mxu0 0.0
    %5502 = vmatprep.subr.mxu0 0.0
    %5503 = vmatpush1.msra.mxu0 0.0
    %5504 = vmatprep.subr.mxu0 0.0
    %5505 = vmatpush1.msra.mxu0 0.0
    %5506 = vmatprep.subr.mxu0 0.0
    %5507 = vmatpush1.msra.mxu0 0.0
    %5508 = vmatprep.subr.mxu0 0.0
    %5509 = vmatpush1.msra.mxu0 0.0
    %5510 = vmatprep.subr.mxu0 0.0
    %5511 = vmatpush1.msra.mxu0 0.0
    %5512 = vmatprep.subr.mxu0 0.0
    %5513 = vmatpush1.msra.mxu0 0.0
    %5514 = vmatprep.subr.mxu0 0.0
    %5515 = vmatpush1.msra.mxu0 0.0
    %5516 = vmatprep.subr.mxu0 0.0
    %5517 = vmatpush1.msra.mxu0 0.0
    %5518 = vmatprep.subr.mxu0 0.0
    %5519 = vmatpush1.msra.mxu0 0.0
    %5520 = vmatprep.subr.mxu0 0.0
    %5521 = vmatpush1.msra.mxu0 0.0
    %5522 = vmatprep.subr.mxu0 0.0
    %5523 = vmatpush1.msra.mxu0 0.0
    %5524 = vmatprep.subr.mxu0 0.0
    %5525 = vmatpush1.msra.mxu0 0.0
    %5526 = vmatprep.subr.mxu0 0.0
    %5527 = vmatpush1.msra.mxu0 0.0
    %5528 = vmatprep.subr.mxu0 0.0
    %5529 = vmatpush1.msra.mxu0 0.0
    %5530 = vmatprep.subr.mxu0 0.0
    %5531 = vmatpush1.msra.mxu0 0.0
    %5532 = vmatprep.subr.mxu0 0.0
    %5533 = vmatpush1.msra.mxu0 0.0
    %5534 = vmatprep.subr.mxu0 0.0
    %5535 = vmatpush1.msra.mxu0 0.0
    %5536 = vmatprep.subr.mxu0 0.0
    %5537 = vmatpush1.msra.mxu0 0.0
    %5538 = vmatprep.subr.mxu0 0.0
    %5539 = vmatpush1.msra.mxu0 0.0
    %5540 = vmatprep.subr.mxu0 0.0
    %5541 = vmatpush1.msra.mxu0 0.0
    %5542 = vmatprep.subr.mxu0 0.0
    %5543 = vmatpush1.msra.mxu0 0.0
    %5544 = vmatprep.subr.mxu0 0.0
    %5545 = vmatpush1.msra.mxu0 0.0
    %5546 = vmatprep.subr.mxu0 0.0
    %5547 = vmatpush1.msra.mxu0 0.0
    %5548 = vmatprep.subr.mxu0 0.0
    %5549 = vmatpush1.msra.mxu0 0.0
    %5550 = vmatprep.subr.mxu0 0.0
    %5551 = vmatpush1.msra.mxu0 0.0
    %5552 = vmatprep.mubr.f32.mxu0 0.0
    %5553 = vmatmul.mubr.f32.gmra.mrb[0].mxu0 %v5486
    %v5554 = vpop.f32.mrb[0].mxu0
    %v5555 = vadd.f32 0.0, %v5554
    %v5556 = vpop.f32.mrb[0].mxu0
    %5557 = vdwg.mxu0
    %v5558 = vsel %vm344, %v3710, 0
    %5560 = vmatprep.subr.mxu0 0.0
    %5561 = vmatpush1.msra.mxu0 %v211
    %5562 = vmatprep.subr.mxu0 0.0
    %5563 = vmatpush1.msra.mxu0 0.0
    %5564 = vmatprep.subr.mxu0 0.0
    %5565 = vmatpush1.msra.mxu0 0.0
    %5566 = vmatprep.subr.mxu0 0.0
    %5567 = vmatpush1.msra.mxu0 0.0
    %5568 = vmatprep.subr.mxu0 0.0
    %5569 = vmatpush1.msra.mxu0 0.0
    %5570 = vmatprep.subr.mxu0 0.0
    %5571 = vmatpush1.msra.mxu0 0.0
    %5572 = vmatprep.subr.mxu0 0.0
    %5573 = vmatpush1.msra.mxu0 0.0
    %5574 = vmatprep.subr.mxu0 0.0
    %5575 = vmatpush1.msra.mxu0 0.0
    %5576 = vmatprep.subr.mxu0 0.0
    %5577 = vmatpush1.msra.mxu0 0.0
    %5578 = vmatprep.subr.mxu0 0.0
    %5579 = vmatpush1.msra.mxu0 0.0
    %5580 = vmatprep.subr.mxu0 0.0
    %5581 = vmatpush1.msra.mxu0 0.0
    %5582 = vmatprep.subr.mxu0 0.0
    %5583 = vmatpush1.msra.mxu0 0.0
    %5584 = vmatprep.subr.mxu0 0.0
    %5585 = vmatpush1.msra.mxu0 0.0
    %5586 = vmatprep.subr.mxu0 0.0
    %5587 = vmatpush1.msra.mxu0 0.0
    %5588 = vmatprep.subr.mxu0 0.0
    %5589 = vmatpush1.msra.mxu0 0.0
    %5590 = vmatprep.subr.mxu0 0.0
    %5591 = vmatpush1.msra.mxu0 0.0
    %5592 = vmatprep.subr.mxu0 0.0
    %5593 = vmatpush1.msra.mxu0 0.0
    %5594 = vmatprep.subr.mxu0 0.0
    %5595 = vmatpush1.msra.mxu0 0.0
    %5596 = vmatprep.subr.mxu0 0.0
    %5597 = vmatpush1.msra.mxu0 0.0
    %5598 = vmatprep.subr.mxu0 0.0
    %5599 = vmatpush1.msra.mxu0 0.0
    %5600 = vmatprep.subr.mxu0 0.0
    %5601 = vmatpush1.msra.mxu0 0.0
    %5602 = vmatprep.subr.mxu0 0.0
    %5603 = vmatpush1.msra.mxu0 0.0
    %5604 = vmatprep.subr.mxu0 0.0
    %5605 = vmatpush1.msra.mxu0 0.0
    %5606 = vmatprep.subr.mxu0 0.0
    %5607 = vmatpush1.msra.mxu0 0.0
    %5608 = vmatprep.subr.mxu0 0.0
    %5609 = vmatpush1.msra.mxu0 0.0
    %5610 = vmatprep.subr.mxu0 0.0
    %5611 = vmatpush1.msra.mxu0 0.0
    %5612 = vmatprep.subr.mxu0 0.0
    %5613 = vmatpush1.msra.mxu0 0.0
    %5614 = vmatprep.subr.mxu0 0.0
    %5615 = vmatpush1.msra.mxu0 0.0
    %5616 = vmatprep.subr.mxu0 0.0
    %5617 = vmatpush1.msra.mxu0 0.0
    %5618 = vmatprep.subr.mxu0 0.0
    %5619 = vmatpush1.msra.mxu0 0.0
    %5620 = vmatprep.subr.mxu0 0.0
    %5621 = vmatpush1.msra.mxu0 0.0
    %5622 = vmatprep.subr.mxu0 0.0
    %5623 = vmatpush1.msra.mxu0 0.0
    %5624 = vmatprep.mubr.f32.mxu0 0.0
    %5625 = vmatmul.mubr.f32.gmra.mrb[0].mxu0 %v5558
    %v5626 = vpop.f32.mrb[0].mxu0
    %v5627 = vadd.f32 0.0, %v5626
    %v5628 = vpop.f32.mrb[0].mxu0
    %5629 = vdwg.mxu0
    %v5646 = vrot.slane %v4619, 7
    %v5647 = vsel %vm3720, %v5646, %v4547
    %v5648 = vrot.slane %v4691, 6
    %v5649 = vsel %vm3723, %v5648, %v5647
    %v5650 = vrot.slane %v4763, 5
    %v5651 = vsel %vm3726, %v5650, %v5649
    %v5652 = vrot.slane %v4835, 4
    %v5653 = vsel %vm3729, %v5652, %v5651
    %v5654 = vrot.slane %v4907, 3
    %v5655 = vsel %vm3732, %v5654, %v5653
    %v5656 = vrot.slane %v4979, 2
    %v5657 = vsel %vm3735, %v5656, %v5655
    %v5658 = vrot.slane %v5051, 1
    %v5659 = vsel %vm3738, %v5658, %v5657
    %v5660 = vrot.slane %v5195, 7
    %v5661 = vsel %vm3720, %v5660, %v5123
    %v5662 = vrot.slane %v5267, 6
    %v5663 = vsel %vm3723, %v5662, %v5661
    %v5664 = vrot.slane %v5339, 5
    %v5665 = vsel %vm3726, %v5664, %v5663
    %v5666 = vrot.slane %v5411, 4
    %v5667 = vsel %vm3729, %v5666, %v5665
    %v5668 = vrot.slane %v5483, 3
    %v5669 = vsel %vm3732, %v5668, %v5667
    %v5670 = vrot.slane %v5555, 2
    %v5671 = vsel %vm3735, %v5670, %v5669
    %v5672 = vrot.slane %v5627, 1
    %v5673 = vsel %vm3738, %v5672, %v5671
    %v5676 = vrot.slane %v4547, 1
    %v5677 = vsel %vm3720, %v4619, %v5676
    %v5678 = vrot.slane %v4691, 7
    %v5679 = vsel %vm3723, %v5678, %v5677
    %v5680 = vrot.slane %v4763, 6
    %v5681 = vsel %vm3726, %v5680, %v5679
    %v5682 = vrot.slane %v4835, 5
    %v5683 = vsel %vm3729, %v5682, %v5681
    %v5684 = vrot.slane %v4907, 4
    %v5685 = vsel %vm3732, %v5684, %v5683
    %v5686 = vrot.slane %v4979, 3
    %v5687 = vsel %vm3735, %v5686, %v5685
    %v5688 = vrot.slane %v5051, 2
    %v5689 = vsel %vm3738, %v5688, %v5687
    %v5690 = vrot.slane %v5123, 1
    %v5691 = vsel %vm3720, %v5195, %v5690
    %v5692 = vrot.slane %v5267, 7
    %v5693 = vsel %vm3723, %v5692, %v5691
    %v5694 = vrot.slane %v5339, 6
    %v5695 = vsel %vm3726, %v5694, %v5693
    %v5696 = vrot.slane %v5411, 5
    %v5697 = vsel %vm3729, %v5696, %v5695
    %v5698 = vrot.slane %v5483, 4
    %v5699 = vsel %vm3732, %v5698, %v5697
    %v5700 = vrot.slane %v5555, 3
    %v5701 = vsel %vm3735, %v5700, %v5699
    %v5702 = vrot.slane %v5627, 2
    %v5703 = vsel %vm3738, %v5702, %v5701
    %5704 = vrot.lane.b32.xlu0 %v5689, 7
    %v5705 = vpop.permute.xlu0 %5704
    %5706 = vrot.lane.b32.xlu0 %v5703, 7
    %v5707 = vpop.permute.xlu0 %5706
    %v5710 = vrot.slane %v4547, 2
    %v5711 = vrot.slane %v4619, 1
    %v5712 = vsel %vm3720, %v5711, %v5710
    %v5713 = vsel %vm3723, %v4691, %v5712
    %v5714 = vrot.slane %v4763, 7
    %v5715 = vsel %vm3726, %v5714, %v5713
    %v5716 = vrot.slane %v4835, 6
    %v5717 = vsel %vm3729, %v5716, %v5715
    %v5718 = vrot.slane %v4907, 5
    %v5719 = vsel %vm3732, %v5718, %v5717
    %v5720 = vrot.slane %v4979, 4
    %v5721 = vsel %vm3735, %v5720, %v5719
    %v5722 = vrot.slane %v5051, 3
    %v5723 = vsel %vm3738, %v5722, %v5721
    %v5724 = vrot.slane %v5123, 2
    %v5725 = vrot.slane %v5195, 1
    %v5726 = vsel %vm3720, %v5725, %v5724
    %v5727 = vsel %vm3723, %v5267, %v5726
    %v5728 = vrot.slane %v5339, 7
    %v5729 = vsel %vm3726, %v5728, %v5727
    %v5730 = vrot.slane %v5411, 6
    %v5731 = vsel %vm3729, %v5730, %v5729
    %v5732 = vrot.slane %v5483, 5
    %v5733 = vsel %vm3732, %v5732, %v5731
    %v5734 = vrot.slane %v5555, 4
    %v5735 = vsel %vm3735, %v5734, %v5733
    %v5736 = vrot.slane %v5627, 3
    %v5737 = vsel %vm3738, %v5736, %v5735
    %5738 = vrot.lane.b32.xlu0 %v5723, 14
    %v5739 = vpop.permute.xlu0 %5738
    %5740 = vrot.lane.b32.xlu0 %v5737, 14
    %v5741 = vpop.permute.xlu0 %5740
    %v5744 = vrot.slane %v4547, 3
    %v5745 = vrot.slane %v4619, 2
    %v5746 = vsel %vm3720, %v5745, %v5744
    %v5747 = vrot.slane %v4691, 1
    %v5748 = vsel %vm3723, %v5747, %v5746
    %v5749 = vsel %vm3726, %v4763, %v5748
    %v5750 = vrot.slane %v4835, 7
    %v5751 = vsel %vm3729, %v5750, %v5749
    %v5752 = vrot.slane %v4907, 6
    %v5753 = vsel %vm3732, %v5752, %v5751
    %v5754 = vrot.slane %v4979, 5
    %v5755 = vsel %vm3735, %v5754, %v5753
    %v5756 = vrot.slane %v5051, 4
    %v5757 = vsel %vm3738, %v5756, %v5755
    %v5758 = vrot.slane %v5123, 3
    %v5759 = vrot.slane %v5195, 2
    %v5760 = vsel %vm3720, %v5759, %v5758
    %v5761 = vrot.slane %v5267, 1
    %v5762 = vsel %vm3723, %v5761, %v5760
    %v5763 = vsel %vm3726, %v5339, %v5762
    %v5764 = vrot.slane %v5411, 7
    %v5765 = vsel %vm3729, %v5764, %v5763
    %v5766 = vrot.slane %v5483, 6
    %v5767 = vsel %vm3732, %v5766, %v5765
    %v5768 = vrot.slane %v5555, 5
    %v5769 = vsel %vm3735, %v5768, %v5767
    %v5770 = vrot.slane %v5627, 4
    %v5771 = vsel %vm3738, %v5770, %v5769
    %5772 = vrot.lane.b32.xlu0 %v5757, 21
    %v5773 = vpop.permute.xlu0 %5772
    %5774 = vrot.lane.b32.xlu0 %v5771, 21
    %v5775 = vpop.permute.xlu0 %5774
    %v5778 = vsel %vm2044, %v5659, %v5705
    %v5779 = vsel %vm2044, %v5673, %v5707
    %vm5780 = vcmask 113664
    %v5781 = vsel %vm5780, %v5778, %v5739
    %v5782 = vsel %vm5780, %v5779, %v5741
    %vm5783 = vcmask 171008
    %v5784 = vsel %vm5783, %v5781, %v5773
    %v5785 = vsel %vm5783, %v5782, %v5775
    %5788 = vrot.lane.b32.xlu0 %v5784, 32
    %v5789 = vpop.permute.xlu0 %5788
    %5790 = vrot.lane.b32.xlu0 %v5785, 32
    %v5791 = vpop.permute.xlu0 %5790
    %v5794 = vsel %vm216, %v4476, %v5789
    %v5795 = vsel %vm216, %v4477, %v5791
    %vm5796 = vcmask 490496
    %v5797 = vsel %vm5796, %v5794, 0.0
    %v5798 = vsel %vm5796, %v5795, 0.0
    %v5799 = vlaneseq
    %v5800 = vshrl.u32 %v5799, 7
    %v5801 = vsub.s32 3, %v5800
    %v5802 = vrot.slane %v23, %v5801
    %vm5803 = vcmask 523264
    %v5805 = vsel %vm5803, %v5797, 0
    %v5808 = vsel %vm5803, %v5798, 0
    %5810 = vmatprep.subr.mxu0 0.0
    %5811 = vmatpush1.msra.mxu0 %v32
    %5812 = vmatprep.subr.mxu0 0.0
    %5813 = vmatpush1.msra.mxu0 %v33
    %5814 = vmatprep.subr.mxu0 0.0
    %5815 = vmatpush1.msra.mxu0 %v34
    %5816 = vmatprep.subr.mxu0 0.0
    %5817 = vmatpush1.msra.mxu0 %v35
    %5818 = vmatprep.subr.mxu0 0.0
    %5819 = vmatpush1.msra.mxu0 %v36
    %5820 = vmatprep.subr.mxu0 0.0
    %5821 = vmatpush1.msra.mxu0 %v37
    %5822 = vmatprep.subr.mxu0 0.0
    %5823 = vmatpush1.msra.mxu0 %v38
    %5824 = vmatprep.subr.mxu0 0.0
    %5825 = vmatpush1.msra.mxu0 %v39
    %5826 = vmatprep.subr.mxu0 0.0
    %5827 = vmatpush1.msra.mxu0 0.0
    %5828 = vmatprep.subr.mxu0 0.0
    %5829 = vmatpush1.msra.mxu0 0.0
    %5830 = vmatprep.subr.mxu0 0.0
    %5831 = vmatpush1.msra.mxu0 0.0
    %5832 = vmatprep.subr.mxu0 0.0
    %5833 = vmatpush1.msra.mxu0 0.0
    %5834 = vmatprep.subr.mxu0 0.0
    %5835 = vmatpush1.msra.mxu0 0.0
    %5836 = vmatprep.subr.mxu0 0.0
    %5837 = vmatpush1.msra.mxu0 0.0
    %5838 = vmatprep.subr.mxu0 0.0
    %5839 = vmatpush1.msra.mxu0 0.0
    %5840 = vmatprep.subr.mxu0 0.0
    %5841 = vmatpush1.msra.mxu0 0.0
    %5842 = vmatprep.subr.mxu0 0.0
    %5843 = vmatpush1.msra.mxu0 0.0
    %5844 = vmatprep.subr.mxu0 0.0
    %5845 = vmatpush1.msra.mxu0 0.0
    %5846 = vmatprep.subr.mxu0 0.0
    %5847 = vmatpush1.msra.mxu0 0.0
    %5848 = vmatprep.subr.mxu0 0.0
    %5849 = vmatpush1.msra.mxu0 0.0
    %5850 = vmatprep.subr.mxu0 0.0
    %5851 = vmatpush1.msra.mxu0 0.0
    %5852 = vmatprep.subr.mxu0 0.0
    %5853 = vmatpush1.msra.mxu0 0.0
    %5854 = vmatprep.subr.mxu0 0.0
    %5855 = vmatpush1.msra.mxu0 0.0
    %5856 = vmatprep.subr.mxu0 0.0
    %5857 = vmatpush1.msra.mxu0 0.0
    %5858 = vmatprep.subr.mxu0 0.0
    %5859 = vmatpush1.msra.mxu0 0.0
    %5860 = vmatprep.subr.mxu0 0.0
    %5861 = vmatpush1.msra.mxu0 0.0
    %5862 = vmatprep.subr.mxu0 0.0
    %5863 = vmatpush1.msra.mxu0 0.0
    %5864 = vmatprep.subr.mxu0 0.0
    %5865 = vmatpush1.msra.mxu0 0.0
    %5866 = vmatprep.subr.mxu0 0.0
    %5867 = vmatpush1.msra.mxu0 0.0
    %5868 = vmatprep.subr.mxu0 0.0
    %5869 = vmatpush1.msra.mxu0 0.0
    %5870 = vmatprep.subr.mxu0 0.0
    %5871 = vmatpush1.msra.mxu0 0.0
    %5872 = vmatprep.subr.mxu0 0.0
    %5873 = vmatpush1.msra.mxu0 0.0
    %5874 = vmatprep.mubr.f32.mxu0 0.0
    %5875 = vmatmul.mubr.f32.gmra.mrb[0].mxu0 %v5805
    %v5876 = vpop.f32.mrb[0].mxu0
    %v5877 = vadd.f32 %v5802, %v5876
    %v5878 = vpop.f32.mrb[0].mxu0
    %5879 = vmatprep.mubr.f32.mxu0 0.0
    %5880 = vmatmul.mubr.f32.gmra.mrb[0].mxu0 %v5808
    %v5881 = vpop.f32.mrb[0].mxu0
    %v5882 = vadd.f32 %v5802, %v5881
    %v5883 = vpop.f32.mrb[0].mxu0
    %5884 = vdwg.mxu0
    %v5885 = vadd.f32 %v21, %v5877
    %v5886 = vadd.f32 %v22, %v5882
    %v5887 = vsel %vm216, %v5885, 0.0
    %5888 = vadd.xlane.f32.xlu0 %v5887
    %v5889 = vpop.xlane.xlu0 %5888
    %v5890 = vsel %vm216, %v5886, 0.0
    %5891 = vadd.xlane.f32.xlu0 %v5890
    %v5892 = vpop.xlane.xlu0 %5891
    %v5893 = vmul.f32 %v5889, %v223
    %v5894 = vmul.f32 %v5892, %v223
    %v5895 = vsub.f32 %v5885, %v5893
    %v5896 = vsub.f32 %v5886, %v5894
    %v5897 = vmul.f32 %v5895, %v5895
    %v5898 = vmul.f32 %v5896, %v5896
    %v5899 = vsel %vm216, %v5897, 0.0
    %5900 = vadd.xlane.f32.xlu0 %v5899
    %v5901 = vpop.xlane.xlu0 %5900
    %v5902 = vsel %vm216, %v5898, 0.0
    %5903 = vadd.xlane.f32.xlu0 %v5902
    %v5904 = vpop.xlane.xlu0 %5903
    %v5905 = vmul.f32 %v5901, %v223
    %v5906 = vmul.f32 %v5904, %v223
    %v5907 = vadd.f32 %v5905, 1e-05
    %v5908 = vadd.f32 %v5906, 1e-05
    %v5909 = vrsqrt.pop %v5907
    %v5910 = vrsqrt.pop %v5908
    %v5911 = vmul.f32 %v5895, %v5909
    %v5912 = vmul.f32 %v5896, %v5910
    %v5913 = vlaneseq
    %v5914 = vshrl.u32 %v5913, 7
    %v5915 = vsub.s32 4, %v5914
    %v5916 = vrot.slane %v23, %v5915
    %v5917 = vmul.f32 %v5911, %v5916
    %v5918 = vmul.f32 %v5912, %v5916
    %v5919 = vlaneseq
    %v5920 = vshrl.u32 %v5919, 7
    %v5921 = vsub.s32 5, %v5920
    %v5922 = vrot.slane %v23, %v5921
    %v5923 = vadd.f32 %v5917, %v5922
    %v5924 = vadd.f32 %v5918, %v5922
    %v5925 = vlaneseq
    %v5926 = vshrl.u32 %v5925, 7
    %v5927 = vsub.s32 6, %v5926
    %v5928 = vrot.slane %v23, %v5927
    %v5930 = vsel %vm216, %v5923, 0
    %v5933 = vsel %vm216, %v5924, 0
    %5935 = vmatprep.subr.mxu0 0.0
    %5936 = vmatpush1.msra.mxu0 %v25
    %5937 = vmatprep.subr.mxu0 0.0
    %5938 = vmatpush1.msra.mxu0 %v27
    %5939 = vmatprep.subr.mxu0 0.0
    %5940 = vmatpush1.msra.mxu0 %v29
    %5941 = vmatprep.subr.mxu0 0.0
    %5942 = vmatpush1.msra.mxu0 %v31
    %5943 = vmatprep.subr.mxu0 0.0
    %5944 = vmatpush1.msra.mxu0 0.0
    %5945 = vmatprep.subr.mxu0 0.0
    %5946 = vmatpush1.msra.mxu0 0.0
    %5947 = vmatprep.subr.mxu0 0.0
    %5948 = vmatpush1.msra.mxu0 0.0
    %5949 = vmatprep.subr.mxu0 0.0
    %5950 = vmatpush1.msra.mxu0 0.0
    %5951 = vmatprep.subr.mxu0 0.0
    %5952 = vmatpush1.msra.mxu0 0.0
    %5953 = vmatprep.subr.mxu0 0.0
    %5954 = vmatpush1.msra.mxu0 0.0
    %5955 = vmatprep.subr.mxu0 0.0
    %5956 = vmatpush1.msra.mxu0 0.0
    %5957 = vmatprep.subr.mxu0 0.0
    %5958 = vmatpush1.msra.mxu0 0.0
    %5959 = vmatprep.subr.mxu0 0.0
    %5960 = vmatpush1.msra.mxu0 0.0
    %5961 = vmatprep.subr.mxu0 0.0
    %5962 = vmatpush1.msra.mxu0 0.0
    %5963 = vmatprep.subr.mxu0 0.0
    %5964 = vmatpush1.msra.mxu0 0.0
    %5965 = vmatprep.subr.mxu0 0.0
    %5966 = vmatpush1.msra.mxu0 0.0
    %5967 = vmatprep.subr.mxu0 0.0
    %5968 = vmatpush1.msra.mxu0 0.0
    %5969 = vmatprep.subr.mxu0 0.0
    %5970 = vmatpush1.msra.mxu0 0.0
    %5971 = vmatprep.subr.mxu0 0.0
    %5972 = vmatpush1.msra.mxu0 0.0
    %5973 = vmatprep.subr.mxu0 0.0
    %5974 = vmatpush1.msra.mxu0 0.0
    %5975 = vmatprep.subr.mxu0 0.0
    %5976 = vmatpush1.msra.mxu0 0.0
    %5977 = vmatprep.subr.mxu0 0.0
    %5978 = vmatpush1.msra.mxu0 0.0
    %5979 = vmatprep.subr.mxu0 0.0
    %5980 = vmatpush1.msra.mxu0 0.0
    %5981 = vmatprep.subr.mxu0 0.0
    %5982 = vmatpush1.msra.mxu0 0.0
    %5983 = vmatprep.subr.mxu0 0.0
    %5984 = vmatpush1.msra.mxu0 0.0
    %5985 = vmatprep.subr.mxu0 0.0
    %5986 = vmatpush1.msra.mxu0 0.0
    %5987 = vmatprep.subr.mxu0 0.0
    %5988 = vmatpush1.msra.mxu0 0.0
    %5989 = vmatprep.subr.mxu0 0.0
    %5990 = vmatpush1.msra.mxu0 0.0
    %5991 = vmatprep.subr.mxu0 0.0
    %5992 = vmatpush1.msra.mxu0 0.0
    %5993 = vmatprep.subr.mxu0 0.0
    %5994 = vmatpush1.msra.mxu0 0.0
    %5995 = vmatprep.subr.mxu0 0.0
    %5996 = vmatpush1.msra.mxu0 0.0
    %5997 = vmatprep.subr.mxu0 0.0
    %5998 = vmatpush1.msra.mxu0 0.0
    %5999 = vmatprep.mubr.f32.mxu0 0.0
    %6000 = vmatmul.mubr.f32.gmra.mrb[0].mxu0 %v5930
    %v6001 = vpop.f32.mrb[0].mxu0
    %v6002 = vadd.f32 %v5928, %v6001
    %v6003 = vpop.f32.mrb[0].mxu0
    %6004 = vmatprep.mubr.f32.mxu0 0.0
    %6005 = vmatmul.mubr.f32.gmra.mrb[0].mxu0 %v5933
    %v6006 = vpop.f32.mrb[0].mxu0
    %v6007 = vadd.f32 %v5928, %v6006
    %v6008 = vpop.f32.mrb[0].mxu0
    %6009 = vdwg.mxu0
    %v6010 = vmax.f32 %v6002, 0.0
    %v6011 = vmax.f32 %v6007, 0.0
    %v6012 = vlaneseq
    %v6013 = vshrl.u32 %v6012, 7
    %v6014 = vsub.s32 7, %v6013
    %v6015 = vrot.slane %v23, %v6014
    %v6017 = vsel %vm5803, %v6010, 0
    %v6020 = vsel %vm5803, %v6011, 0
    %6022 = vmatprep.subr.mxu0 0.0
    %6023 = vmatpush1.msra.mxu0 %v40
    %6024 = vmatprep.subr.mxu0 0.0
    %6025 = vmatpush1.msra.mxu0 %v41
    %6026 = vmatprep.subr.mxu0 0.0
    %6027 = vmatpush1.msra.mxu0 %v42
    %6028 = vmatprep.subr.mxu0 0.0
    %6029 = vmatpush1.msra.mxu0 %v43
    %6030 = vmatprep.subr.mxu0 0.0
    %6031 = vmatpush1.msra.mxu0 %v44
    %6032 = vmatprep.subr.mxu0 0.0
    %6033 = vmatpush1.msra.mxu0 %v45
    %6034 = vmatprep.subr.mxu0 0.0
    %6035 = vmatpush1.msra.mxu0 %v46
    %6036 = vmatprep.subr.mxu0 0.0
    %6037 = vmatpush1.msra.mxu0 %v47
    %6038 = vmatprep.subr.mxu0 0.0
    %6039 = vmatpush1.msra.mxu0 0.0
    %6040 = vmatprep.subr.mxu0 0.0
    %6041 = vmatpush1.msra.mxu0 0.0
    %6042 = vmatprep.subr.mxu0 0.0
    %6043 = vmatpush1.msra.mxu0 0.0
    %6044 = vmatprep.subr.mxu0 0.0
    %6045 = vmatpush1.msra.mxu0 0.0
    %6046 = vmatprep.subr.mxu0 0.0
    %6047 = vmatpush1.msra.mxu0 0.0
    %6048 = vmatprep.subr.mxu0 0.0
    %6049 = vmatpush1.msra.mxu0 0.0
    %6050 = vmatprep.subr.mxu0 0.0
    %6051 = vmatpush1.msra.mxu0 0.0
    %6052 = vmatprep.subr.mxu0 0.0
    %6053 = vmatpush1.msra.mxu0 0.0
    %6054 = vmatprep.subr.mxu0 0.0
    %6055 = vmatpush1.msra.mxu0 0.0
    %6056 = vmatprep.subr.mxu0 0.0
    %6057 = vmatpush1.msra.mxu0 0.0
    %6058 = vmatprep.subr.mxu0 0.0
    %6059 = vmatpush1.msra.mxu0 0.0
    %6060 = vmatprep.subr.mxu0 0.0
    %6061 = vmatpush1.msra.mxu0 0.0
    %6062 = vmatprep.subr.mxu0 0.0
    %6063 = vmatpush1.msra.mxu0 0.0
    %6064 = vmatprep.subr.mxu0 0.0
    %6065 = vmatpush1.msra.mxu0 0.0
    %6066 = vmatprep.subr.mxu0 0.0
    %6067 = vmatpush1.msra.mxu0 0.0
    %6068 = vmatprep.subr.mxu0 0.0
    %6069 = vmatpush1.msra.mxu0 0.0
    %6070 = vmatprep.subr.mxu0 0.0
    %6071 = vmatpush1.msra.mxu0 0.0
    %6072 = vmatprep.subr.mxu0 0.0
    %6073 = vmatpush1.msra.mxu0 0.0
    %6074 = vmatprep.subr.mxu0 0.0
    %6075 = vmatpush1.msra.mxu0 0.0
    %6076 = vmatprep.subr.mxu0 0.0
    %6077 = vmatpush1.msra.mxu0 0.0
    %6078 = vmatprep.subr.mxu0 0.0
    %6079 = vmatpush1.msra.mxu0 0.0
    %6080 = vmatprep.subr.mxu0 0.0
    %6081 = vmatpush1.msra.mxu0 0.0
    %6082 = vmatprep.subr.mxu0 0.0
    %6083 = vmatpush1.msra.mxu0 0.0
    %6084 = vmatprep.subr.mxu0 0.0
    %6085 = vmatpush1.msra.mxu0 0.0
    %6086 = vmatprep.mubr.f32.mxu0 0.0
    %6087 = vmatmul.mubr.f32.gmra.mrb[0].mxu0 %v6017
    %v6088 = vpop.f32.mrb[0].mxu0
    %v6089 = vadd.f32 %v6015, %v6088
    %v6090 = vpop.f32.mrb[0].mxu0
    %6091 = vmatprep.mubr.f32.mxu0 0.0
    %6092 = vmatmul.mubr.f32.gmra.mrb[0].mxu0 %v6020
    %v6093 = vpop.f32.mrb[0].mxu0
    %v6094 = vadd.f32 %v6015, %v6093
    %v6095 = vpop.f32.mrb[0].mxu0
    %6096 = vdwg.mxu0
    %v6097 = vadd.f32 %v5885, %v6089
    %v6098 = vadd.f32 %v5886, %v6094
    %6099 = vst.msk [vmem:[#allocation2] sm:$0xff] %vm216, %v6097
    %6100 = vst.msk [vmem:[#allocation2 + $0x8] sm:$0xff] %vm216, %v6098
    // Predicated region
    $region22: #{tpu_custom_call.1} parent=1 // pred_check
      _
    $region23: #{tpu_custom_call.1} parent=1 // pred_check_branch
      %6102 = sbr.rel (0) target = $region25
    $region24: #{tpu_custom_call.1} parent=1 // pred_region
      %s6104 = ssub.s32 256, 256
      %6105 = vsyncadd [#allocation3], %s6104
      %s6106 = sshll.u32 [#allocation2], 4
      %s6107 = int_to_ptr.vmem [resolvable:$true] %s6106
      %6112 = dma.vmem_to_hbm [thread:$0]  %s6107, 256, %s5, [#allocation3], 128, 128, 8
    $region25: #{tpu_custom_call.1} parent=1 // pred_fallthru
      _
    // Predicated region
    $region26: #{tpu_custom_call.1} parent=1 // pred_check
      _
    $region27: #{tpu_custom_call.1} parent=1 // pred_check_branch
      %6114 = sbr.rel (0) target = $region29
    $region28: #{tpu_custom_call.1} parent=1 // pred_region
      %6115 = dma.done [#allocation3], 256
    $region29: #{tpu_custom_call.1} parent=1 // pred_fallthru
      _
    %6116 = vsyncpa [#allocation3], 1

</llo_original>
